<compile_context>
chip_gen: v7x
topology: tpu7x:2x2x1
jax: 0.10.0
libtpu: 0.0.40
codegen_flags: <defaults>
</compile_context>

<pallas_src>
import jax
import jax.numpy as jnp
from jax.experimental import pallas as pl
from jax.experimental.pallas import tpu as pltpu


def _round_up(v, m):
    return (v + m - 1) // m * m


def _cdiv(a, b):
    return -(-a // b)


def _supports_bf16_elementwise():
    """bf16 VPU/EUP exists on v6e/v7x; v5e (and earlier) only have an f32 elementwise path."""
    try:
        kind = jax.devices()[0].device_kind.lower()
    except Exception:
        return False
    return not any(old in kind for old in ("v2", "v3", "v4", "v5"))


def _vmem_budget_cap_bytes():
    """Generation-aware VMEM cap: physical capacity minus headroom for compiler scratch /
    semaphores / pipeline buffers (~56 MiB on v7x, up to ~112 MiB on v5e/v6e)."""
    try:
        cap = int(pltpu.get_tpu_info().vmem_capacity_bytes)
    except Exception:
        cap = 64 * 1024 * 1024  # conservative fallback (v7x per-core size)
    return int(max(32 * 1024 * 1024, min(cap - 8 * 1024 * 1024, 112 * 1024 * 1024)))


def _make_mlp_kernel(num_hidden, mxu_dtype, ew_dtype):
    """num_hidden = num_layers - 1 (number of (Linear, Dropout) pairs)."""

    def dense(a, w, b):
        # MXU matmul; accumulate and bias-add in f32 (VPU has slack -- tanh/EUP binds here).
        return jnp.dot(a.astype(mxu_dtype), w, preferred_element_type=jnp.float32) + b

    def act(z):
        # tanh is the binding (EUP-slot) op for small-N MLPs.  bf16 tanh on v6e/v7x roughly
        # doubles EUP throughput and halves vreg pressure; exact f32 elsewhere.
        return jnp.tanh(z.astype(ew_dtype))

    if num_hidden > 0:
        def mlp_kernel(x_ref, w_in_ref, b_in_ref, w_hid_ref, b_hid_ref,
                       w_out_ref, b_out_ref, o_ref):
            h = act(dense(x_ref[...], w_in_ref[...], b_in_ref[...]))
            for l in range(num_hidden):          # static Python loop, small fixed depth
                h = act(dense(h, w_hid_ref[l], b_hid_ref[l]))
                # Dropout (eval) == identity, but the module's forward applies tanh to it too.
                h = act(h)
            o_ref[...] = dense(h, w_out_ref[...], b_out_ref[...]).astype(o_ref.dtype)
    else:
        def mlp_kernel(x_ref, w_in_ref, b_in_ref, w_out_ref, b_out_ref, o_ref):
            h = act(dense(x_ref[...], w_in_ref[...], b_in_ref[...]))
            o_ref[...] = dense(h, w_out_ref[...], b_out_ref[...]).astype(o_ref.dtype)

    return mlp_kernel


def prepare_params(params, *, use_bf16_mxu=False):
    """Pad the hidden width to a lane-dense multiple of 128 and cast weights ONCE (hoisted out
    of the per-call forward).  Zero padding of the hidden width is mathematically exact for
    this network: tanh(0) = 0 propagates and zero weight rows/cols contribute nothing."""
    w_in, b_in = params["w_in"], params["b_in"]          # [Fin, N], [1, N]
    w_hid, b_hid = params["w_hid"], params["b_hid"]      # [L-1, N, N], [L-1, 1, N]
    w_out, b_out = params["w_out"], params["b_out"]      # [N, Fout], [1, Fout]

    Fin, N = w_in.shape
    Fout = w_out.shape[1]
    num_hidden = int(w_hid.shape[0])
    N_p = _round_up(max(N, 1), 128)
    wdt = jnp.bfloat16 if use_bf16_mxu else jnp.float32

    prep = dict(
        w_in=jnp.pad(w_in, ((0, 0), (0, N_p - N))).astype(wdt),
        b_in=jnp.pad(b_in, ((0, 0), (0, N_p - N))).astype(jnp.float32),
        w_out=jnp.pad(w_out, ((0, N_p - N), (0, 0))).astype(wdt),
        b_out=b_out.astype(jnp.float32),
        Fin=Fin, Fout=Fout, N_p=N_p, num_hidden=num_hidden,
        use_bf16_mxu=use_bf16_mxu,
    )
    if num_hidden > 0:
        prep["w_hid"] = jnp.pad(w_hid, ((0, 0), (0, N_p - N), (0, N_p - N))).astype(wdt)
        prep["b_hid"] = jnp.pad(b_hid, ((0, 0), (0, 0), (0, N_p - N))).astype(jnp.float32)
    return prep


def mlp_dropout_forward(x, prep, *, batch_tile=1024, single_buffer_weights=True):
    """x: [B, in_features] float32.  prep: output of prepare_params()."""
    B, Fin = x.shape
    assert Fin == prep["Fin"], "input feature mismatch with prepared params"
    Fout, N_p = prep["Fout"], prep["N_p"]
    num_hidden = prep["num_hidden"]
    use_bf16_mxu = prep["use_bf16_mxu"]

    mxu_dtype = jnp.bfloat16 if use_bf16_mxu else jnp.float32
    ew_dtype = jnp.bfloat16 if (use_bf16_mxu and _supports_bf16_elementwise()) else jnp.float32

    if x.dtype != jnp.float32:
        x = x.astype(jnp.float32)

    # ---- VMEM budget (generation-aware) ---------------------------------------------------
    wbytes_per = 2 if use_bf16_mxu else 4
    weight_bytes = (prep["w_in"].size + prep["w_out"].size
                    + (prep["w_hid"].size if num_hidden > 0 else 0)) * wbytes_per
    bias_bytes = (prep["b_in"].size + prep["b_out"].size
                  + (prep["b_hid"].size if num_hidden > 0 else 0)) * 4
    vmem_cap = _vmem_budget_cap_bytes()

    def est_needed(tb, weight_buffers):
        io_bytes = 2 * tb * (Fin + Fout) * 4     # double-buffered x / out blocks
        act_bytes = 4 * tb * N_p * 4             # hidden working set + compiler temps (rough)
        return weight_buffers * (weight_bytes + bias_bytes) + io_bytes + act_bytes + (2 << 20)

    # ---- Batch tiling: multiples of 8 sublanes; >=2 (even) grid steps so the "parallel"
    # batch axis splits evenly across v7x's two TensorCores (no-op on v5e/v6e). --------------
    TB = max(8, _round_up(min(batch_tile, B), 8))
    steps = _cdiv(B, TB)
    if B >= 16:
        steps = max(2, steps)
        if steps % 2:
            steps += 1
        TB = max(8, _round_up(_cdiv(B, steps), 8))
    while TB > 8 and est_needed(TB, 2) > vmem_cap:   # conservative (double-buffered) estimate
        TB = max(8, _round_up(TB // 2, 8))
    steps = _cdiv(B, TB)

    vmem_limit = int(min(max(est_needed(TB, 2), 32 * 1024 * 1024), vmem_cap))

    kernel = _make_mlp_kernel(num_hidden, mxu_dtype, ew_dtype)

    flops = 2 * B * (Fin * N_p + num_hidden * N_p * N_p + N_p * Fout)
    transcendentals = B * N_p * (1 + 2 * num_hidden)
    bytes_accessed = B * Fin * 4 + weight_bytes + bias_bytes + B * Fout * 4

    def _call(single_buf):
        def wspec(shape):
            nd = len(shape)
            idx = lambda i, _nd=nd: (0,) * _nd   # constant across the grid -> VMEM-resident
            if single_buf:
                # Single buffer: no point double-buffering blocks that never change.
                return pl.BlockSpec(shape, idx, pipeline_mode=pl.Buffered(1))
            return pl.BlockSpec(shape, idx)

        in_specs = [pl.BlockSpec((TB, Fin), lambda i: (i, 0)),       # x: tiled over batch
                    wspec((Fin, N_p)), wspec((1, N_p))]
        args = [x, prep["w_in"], prep["b_in"]]
        if num_hidden > 0:
            in_specs += [wspec((num_hidden, N_p, N_p)), wspec((num_hidden, 1, N_p))]
            args += [prep["w_hid"], prep["b_hid"]]
        in_specs += [wspec((N_p, Fout)), wspec((1, Fout))]
        args += [prep["w_out"], prep["b_out"]]

        grid_spec = pltpu.PrefetchScalarGridSpec(
            num_scalar_prefetch=0,
            grid=(steps,),
            in_specs=in_specs,
            out_specs=pl.BlockSpec((TB, Fout), lambda i: (i, 0)),
        )
        return pl.pallas_call(
            kernel,
            out_shape=jax.ShapeDtypeStruct((B, Fout), jnp.float32),
            grid_spec=grid_spec,
            compiler_params=pltpu.CompilerParams(
                dimension_semantics=("parallel",),
                vmem_limit_bytes=vmem_limit),
            cost_estimate=pl.CostEstimate(
                flops=int(flops),
                transcendentals=int(transcendentals),
                bytes_accessed=int(bytes_accessed)),
        )(*args)

    if single_buffer_weights:
        try:
            out = _call(True)
            jax.block_until_ready(out)
            return out
        except Exception:
            # pipeline_mode / pl.Buffered(1) unsupported on this jax build -> default buffering.
            pass
    return _call(False)


def init_params(key, in_features, out_features, num_layers, num_neurons):
    """Deterministic init mimicking nn.Linear's U(-1/sqrt(fan_in), 1/sqrt(fan_in)).
    Weights stored pre-transposed as [fan_in, fan_out]."""
    ks = jax.random.split(key, 2 * (num_layers + 1))
    num_hidden = num_layers - 1

    def linear(kw, kb, fan_in, fan_out):
        bound = 1.0 / jnp.sqrt(fan_in)
        w = jax.random.uniform(kw, (fan_in, fan_out), jnp.float32, -bound, bound)
        b = jax.random.uniform(kb, (1, fan_out), jnp.float32, -bound, bound)
        return w, b

    w_in, b_in = linear(ks[0], ks[1], in_features, num_neurons)

    w_hid_list, b_hid_list = [], []
    for l in range(num_hidden):
        w, b = linear(ks[2 + 2 * l], ks[3 + 2 * l], num_neurons, num_neurons)
        w_hid_list.append(w)
        b_hid_list.append(b)
    if num_hidden > 0:
        w_hid = jnp.stack(w_hid_list, axis=0)              # [L-1, N, N]
        b_hid = jnp.stack(b_hid_list, axis=0)              # [L-1, 1, N]
    else:
        w_hid = jnp.zeros((0, num_neurons, num_neurons), jnp.float32)
        b_hid = jnp.zeros((0, 1, num_neurons), jnp.float32)

    w_out, b_out = linear(ks[-2], ks[-1], num_neurons, out_features)

    return dict(w_in=w_in, b_in=b_in, w_hid=w_hid, b_hid=b_hid,
                w_out=w_out, b_out=b_out)


def reference_forward(x, params):
    """Plain-JAX reference matching the PyTorch forward (dropout in eval mode)."""
    hp = jax.lax.Precision.HIGHEST
    h = jnp.tanh(jnp.dot(x, params["w_in"], precision=hp) + params["b_in"])
    for l in range(params["w_hid"].shape[0]):
        h = jnp.tanh(jnp.dot(h, params["w_hid"][l], precision=hp) + params["b_hid"][l])
        h = jnp.tanh(h)  # tanh applied to the (identity) dropout output
    return jnp.dot(h, params["w_out"], precision=hp) + params["b_out"]


if __name__ == "__main__":
    # Shapes consistent with the module's constructor; N=128 keeps hidden dims lane-dense.
    in_features, out_features = 8, 4
    num_layers, num_neurons = 3, 128   # -> 2 hidden (Linear, Dropout) blocks
    batch = 512                        # -> 2 even grid steps (TB=256), one per v7x TensorCore

    key = jax.random.PRNGKey(0)
    k_x, k_p = jax.random.split(key)
    x = jax.random.normal(k_x, (batch, in_features), jnp.float32)
    params = init_params(k_p, in_features, out_features, num_layers, num_neurons)

    y_ref = reference_forward(x, params)

    # f32 MXU path (default in-kernel matmul precision; agreement with the HIGHEST-precision
    # reference is asserted to the documented 1e-3 tolerance).
    prep_f32 = prepare_params(params, use_bf16_mxu=False)
    y = mlp_dropout_forward(x, prep_f32)
    jax.block_until_ready(y)
    assert y.shape == (batch, out_features)
    assert jnp.allclose(y, y_ref, atol=1e-3, rtol=1e-3), "f32 mismatch vs JAX reference"

    # bf16 MXU operands (+ bf16 tanh on v6e/v7x); f32 accumulation / bias; looser tolerance.
    prep_bf16 = prepare_params(params, use_bf16_mxu=True)
    y_bf16 = mlp_dropout_forward(x, prep_bf16)
    jax.block_until_ready(y_bf16)
    assert y_bf16.shape == (batch, out_features)
    assert jnp.allclose(y_bf16, y_ref, atol=5e-2, rtol=5e-2), "bf16 mismatch vs JAX reference"

    print("KERNEL_OK")
</pallas_src>

<mosaic_0001>
module attributes {stable_mosaic.version = 11 : i64} {
  func.func @mlp_kernel(%arg0: i32, %arg1: memref<256x8xf32, #tpu.memory_space<vmem>>, %arg2: memref<8x128xf32, #tpu.memory_space<vmem>>, %arg3: memref<1x128xf32, #tpu.memory_space<vmem>>, %arg4: memref<2x128x128xf32, #tpu.memory_space<vmem>>, %arg5: memref<2x1x128xf32, #tpu.memory_space<vmem>>, %arg6: memref<128x4xf32, #tpu.memory_space<vmem>>, %arg7: memref<1x4xf32, #tpu.memory_space<vmem>>, %arg8: memref<256x4xf32, #tpu.memory_space<vmem>>) attributes {dimension_semantics = [#tpu.dimension_semantics<parallel>], iteration_bounds = array<i64: 2>, scalar_prefetch = 0 : i64, scratch_operands = 0 : i64, tpu.core_type = #tpu.core_type<tc>, window_params = [{transform_indices = @transform_0, window_bounds = array<i64: 256, 8>}, {pipeline_mode = #tpu.pipeline_mode<synchronous>, transform_indices = @transform_1, window_bounds = array<i64: 8, 128>}, {pipeline_mode = #tpu.pipeline_mode<synchronous>, transform_indices = @transform_2, window_bounds = array<i64: 1, 128>}, {pipeline_mode = #tpu.pipeline_mode<synchronous>, transform_indices = @transform_3, window_bounds = array<i64: 2, 128, 128>}, {pipeline_mode = #tpu.pipeline_mode<synchronous>, transform_indices = @transform_4, window_bounds = array<i64: 2, 1, 128>}, {pipeline_mode = #tpu.pipeline_mode<synchronous>, transform_indices = @transform_5, window_bounds = array<i64: 128, 4>}, {pipeline_mode = #tpu.pipeline_mode<synchronous>, transform_indices = @transform_6, window_bounds = array<i64: 1, 4>}, {transform_indices = @transform_7, window_bounds = array<i64: 256, 4>}]} {
    %c0 = arith.constant 0 : index
    %c0_0 = arith.constant 0 : index
    %0 = vector.load %arg1[%c0, %c0_0] : memref<256x8xf32, #tpu.memory_space<vmem>>, vector<256x8xf32>
    %c0_1 = arith.constant 0 : index
    %c0_2 = arith.constant 0 : index
    %1 = vector.load %arg2[%c0_1, %c0_2] : memref<8x128xf32, #tpu.memory_space<vmem>>, vector<8x128xf32>
    %c0_3 = arith.constant 0 : index
    %c0_4 = arith.constant 0 : index
    %2 = vector.load %arg3[%c0_3, %c0_4] : memref<1x128xf32, #tpu.memory_space<vmem>>, vector<1x128xf32>
    %cst = arith.constant dense<0.000000e+00> : vector<256x128xf32>
    %3 = tpu.matmul %0, %1, %cst {dimension_numbers = #tpu.dot_dimension_numbers<[1], [0], [0], [1], [0, 0, 1, 1], [], []>} : vector<256x8xf32>, vector<8x128xf32>, vector<256x128xf32> -> vector<256x128xf32>
    %4 = vector.broadcast %2 : vector<1x128xf32> to vector<256x128xf32>
    %5 = arith.addf %3, %4 : vector<256x128xf32>
    %6 = math.tanh %5 : vector<256x128xf32>
    %c0_5 = arith.constant 0 : index
    %c0_6 = arith.constant 0 : index
    %c0_7 = arith.constant 0 : index
    %7 = vector.load %arg4[%c0_5, %c0_6, %c0_7] : memref<2x128x128xf32, #tpu.memory_space<vmem>>, vector<1x128x128xf32>
    %8 = vector.shape_cast %7 : vector<1x128x128xf32> to vector<128x128xf32>
    %c0_8 = arith.constant 0 : index
    %c0_9 = arith.constant 0 : index
    %c0_10 = arith.constant 0 : index
    %9 = vector.load %arg5[%c0_8, %c0_9, %c0_10] : memref<2x1x128xf32, #tpu.memory_space<vmem>>, vector<1x1x128xf32>
    %10 = vector.shape_cast %9 : vector<1x1x128xf32> to vector<1x128xf32>
    %cst_11 = arith.constant dense<0.000000e+00> : vector<256x128xf32>
    %11 = tpu.matmul %6, %8, %cst_11 {dimension_numbers = #tpu.dot_dimension_numbers<[1], [0], [0], [1], [0, 0, 1, 1], [], []>} : vector<256x128xf32>, vector<128x128xf32>, vector<256x128xf32> -> vector<256x128xf32>
    %12 = vector.broadcast %10 : vector<1x128xf32> to vector<256x128xf32>
    %13 = arith.addf %11, %12 : vector<256x128xf32>
    %14 = math.tanh %13 : vector<256x128xf32>
    %15 = math.tanh %14 : vector<256x128xf32>
    %c1 = arith.constant 1 : index
    %c0_12 = arith.constant 0 : index
    %c0_13 = arith.constant 0 : index
    %16 = vector.load %arg4[%c1, %c0_12, %c0_13] : memref<2x128x128xf32, #tpu.memory_space<vmem>>, vector<1x128x128xf32>
    %17 = vector.shape_cast %16 : vector<1x128x128xf32> to vector<128x128xf32>
    %c1_14 = arith.constant 1 : index
    %c0_15 = arith.constant 0 : index
    %c0_16 = arith.constant 0 : index
    %18 = vector.load %arg5[%c1_14, %c0_15, %c0_16] : memref<2x1x128xf32, #tpu.memory_space<vmem>>, vector<1x1x128xf32>
    %19 = vector.shape_cast %18 : vector<1x1x128xf32> to vector<1x128xf32>
    %cst_17 = arith.constant dense<0.000000e+00> : vector<256x128xf32>
    %20 = tpu.matmul %15, %17, %cst_17 {dimension_numbers = #tpu.dot_dimension_numbers<[1], [0], [0], [1], [0, 0, 1, 1], [], []>} : vector<256x128xf32>, vector<128x128xf32>, vector<256x128xf32> -> vector<256x128xf32>
    %21 = vector.broadcast %19 : vector<1x128xf32> to vector<256x128xf32>
    %22 = arith.addf %20, %21 : vector<256x128xf32>
    %23 = math.tanh %22 : vector<256x128xf32>
    %24 = math.tanh %23 : vector<256x128xf32>
    %c0_18 = arith.constant 0 : index
    %c0_19 = arith.constant 0 : index
    %25 = vector.load %arg6[%c0_18, %c0_19] : memref<128x4xf32, #tpu.memory_space<vmem>>, vector<128x4xf32>
    %c0_20 = arith.constant 0 : index
    %c0_21 = arith.constant 0 : index
    %26 = vector.load %arg7[%c0_20, %c0_21] : memref<1x4xf32, #tpu.memory_space<vmem>>, vector<1x4xf32>
    %cst_22 = arith.constant dense<0.000000e+00> : vector<256x4xf32>
    %27 = tpu.matmul %24, %25, %cst_22 {dimension_numbers = #tpu.dot_dimension_numbers<[1], [0], [0], [1], [0, 0, 1, 1], [], []>} : vector<256x128xf32>, vector<128x4xf32>, vector<256x4xf32> -> vector<256x4xf32>
    %28 = vector.broadcast %26 : vector<1x4xf32> to vector<256x4xf32>
    %29 = arith.addf %27, %28 : vector<256x4xf32>
    %c0_23 = arith.constant 0 : index
    %c0_24 = arith.constant 0 : index
    %30 = vector.load %arg8[%c0_23, %c0_24] : memref<256x4xf32, #tpu.memory_space<vmem>>, vector<256x4xf32>
    tpu.vector_store %arg8[%c0_23, %c0_24], %29 {strides = array<i32>} : memref<256x4xf32, #tpu.memory_space<vmem>>, vector<256x4xf32>,
    return
  }
  func.func @transform_0(%arg0: i32) -> (i32, i32) {
    %c0_i32 = arith.constant 0 : i32
    %c0_i32_0 = arith.constant 0 : i32
    return %arg0, %c0_i32 : i32, i32
  }
  func.func @transform_1(%arg0: i32) -> (i32, i32) {
    %c0_i32 = arith.constant 0 : i32
    %c0_i32_0 = arith.constant 0 : i32
    %c0_i32_1 = arith.constant 0 : i32
    return %c0_i32, %c0_i32_0 : i32, i32
  }
  func.func @transform_2(%arg0: i32) -> (i32, i32) {
    %c0_i32 = arith.constant 0 : i32
    %c0_i32_0 = arith.constant 0 : i32
    %c0_i32_1 = arith.constant 0 : i32
    return %c0_i32, %c0_i32_0 : i32, i32
  }
  func.func @transform_3(%arg0: i32) -> (i32, i32, i32) {
    %c0_i32 = arith.constant 0 : i32
    %c0_i32_0 = arith.constant 0 : i32
    %c0_i32_1 = arith.constant 0 : i32
    %c0_i32_2 = arith.constant 0 : i32
    return %c0_i32, %c0_i32_0, %c0_i32_1 : i32, i32, i32
  }
  func.func @transform_4(%arg0: i32) -> (i32, i32, i32) {
    %c0_i32 = arith.constant 0 : i32
    %c0_i32_0 = arith.constant 0 : i32
    %c0_i32_1 = arith.constant 0 : i32
    %c0_i32_2 = arith.constant 0 : i32
    return %c0_i32, %c0_i32_0, %c0_i32_1 : i32, i32, i32
  }
  func.func @transform_5(%arg0: i32) -> (i32, i32) {
    %c0_i32 = arith.constant 0 : i32
    %c0_i32_0 = arith.constant 0 : i32
    %c0_i32_1 = arith.constant 0 : i32
    return %c0_i32, %c0_i32_0 : i32, i32
  }
  func.func @transform_6(%arg0: i32) -> (i32, i32) {
    %c0_i32 = arith.constant 0 : i32
    %c0_i32_0 = arith.constant 0 : i32
    %c0_i32_1 = arith.constant 0 : i32
    return %c0_i32, %c0_i32_0 : i32, i32
  }
  func.func @transform_7(%arg0: i32) -> (i32, i32) {
    %c0_i32 = arith.constant 0 : i32
    %c0_i32_0 = arith.constant 0 : i32
    return %arg0, %c0_i32 : i32, i32
  }
}

module attributes {stable_mosaic.version = 11 : i64} {
  func.func @mlp_kernel(%arg0: i32, %arg1: memref<256x8xf32, #tpu.memory_space<vmem>>, %arg2: memref<8x128xf32, #tpu.memory_space<vmem>>, %arg3: memref<1x128xf32, #tpu.memory_space<vmem>>, %arg4: memref<2x128x128xf32, #tpu.memory_space<vmem>>, %arg5: memref<2x1x128xf32, #tpu.memory_space<vmem>>, %arg6: memref<128x4xf32, #tpu.memory_space<vmem>>, %arg7: memref<1x4xf32, #tpu.memory_space<vmem>>, %arg8: memref<256x4xf32, #tpu.memory_space<vmem>>) attributes {dimension_semantics = [#tpu.dimension_semantics<parallel>], iteration_bounds = array<i64: 2>, scalar_prefetch = 0 : i64, scratch_operands = 0 : i64, tpu.core_type = #tpu.core_type<tc>, window_params = [{transform_indices = @transform_0, window_bounds = array<i64: 256, 8>}, {pipeline_mode = #tpu.pipeline_mode<synchronous>, transform_indices = @transform_1, window_bounds = array<i64: 8, 128>}, {pipeline_mode = #tpu.pipeline_mode<synchronous>, transform_indices = @transform_2, window_bounds = array<i64: 1, 128>}, {pipeline_mode = #tpu.pipeline_mode<synchronous>, transform_indices = @transform_3, window_bounds = array<i64: 2, 128, 128>}, {pipeline_mode = #tpu.pipeline_mode<synchronous>, transform_indices = @transform_4, window_bounds = array<i64: 2, 1, 128>}, {pipeline_mode = #tpu.pipeline_mode<synchronous>, transform_indices = @transform_5, window_bounds = array<i64: 128, 4>}, {pipeline_mode = #tpu.pipeline_mode<synchronous>, transform_indices = @transform_6, window_bounds = array<i64: 1, 4>}, {transform_indices = @transform_7, window_bounds = array<i64: 256, 4>}]} {
    %c0 = arith.constant 0 : index
    %c0_0 = arith.constant 0 : index
    %0 = vector.load %arg1[%c0, %c0_0] : memref<256x8xf32, #tpu.memory_space<vmem>>, vector<256x8xf32>
    %c0_1 = arith.constant 0 : index
    %c0_2 = arith.constant 0 : index
    %1 = vector.load %arg2[%c0_1, %c0_2] : memref<8x128xf32, #tpu.memory_space<vmem>>, vector<8x128xf32>
    %c0_3 = arith.constant 0 : index
    %c0_4 = arith.constant 0 : index
    %2 = vector.load %arg3[%c0_3, %c0_4] : memref<1x128xf32, #tpu.memory_space<vmem>>, vector<1x128xf32>
    %cst = arith.constant dense<0.000000e+00> : vector<256x128xf32>
    %3 = tpu.matmul %0, %1, %cst {dimension_numbers = #tpu.dot_dimension_numbers<[1], [0], [0], [1], [0, 0, 1, 1], [], []>} : vector<256x8xf32>, vector<8x128xf32>, vector<256x128xf32> -> vector<256x128xf32>
    %4 = vector.broadcast %2 : vector<1x128xf32> to vector<256x128xf32>
    %5 = arith.addf %3, %4 : vector<256x128xf32>
    %6 = math.tanh %5 : vector<256x128xf32>
    %c0_5 = arith.constant 0 : index
    %c0_6 = arith.constant 0 : index
    %c0_7 = arith.constant 0 : index
    %7 = vector.load %arg4[%c0_5, %c0_6, %c0_7] : memref<2x128x128xf32, #tpu.memory_space<vmem>>, vector<1x128x128xf32>
    %8 = vector.shape_cast %7 : vector<1x128x128xf32> to vector<128x128xf32>
    %c0_8 = arith.constant 0 : index
    %c0_9 = arith.constant 0 : index
    %c0_10 = arith.constant 0 : index
    %9 = vector.load %arg5[%c0_8, %c0_9, %c0_10] : memref<2x1x128xf32, #tpu.memory_space<vmem>>, vector<1x1x128xf32>
    %10 = vector.shape_cast %9 : vector<1x1x128xf32> to vector<1x128xf32>
    %cst_11 = arith.constant dense<0.000000e+00> : vector<256x128xf32>
    %11 = tpu.matmul %6, %8, %cst_11 {dimension_numbers = #tpu.dot_dimension_numbers<[1], [0], [0], [1], [0, 0, 1, 1], [], []>} : vector<256x128xf32>, vector<128x128xf32>, vector<256x128xf32> -> vector<256x128xf32>
    %12 = vector.broadcast %10 : vector<1x128xf32> to vector<256x128xf32>
    %13 = arith.addf %11, %12 : vector<256x128xf32>
    %14 = math.tanh %13 : vector<256x128xf32>
    %15 = math.tanh %14 : vector<256x128xf32>
    %c1 = arith.constant 1 : index
    %c0_12 = arith.constant 0 : index
    %c0_13 = arith.constant 0 : index
    %16 = vector.load %arg4[%c1, %c0_12, %c0_13] : memref<2x128x128xf32, #tpu.memory_space<vmem>>, vector<1x128x128xf32>
    %17 = vector.shape_cast %16 : vector<1x128x128xf32> to vector<128x128xf32>
    %c1_14 = arith.constant 1 : index
    %c0_15 = arith.constant 0 : index
    %c0_16 = arith.constant 0 : index
    %18 = vector.load %arg5[%c1_14, %c0_15, %c0_16] : memref<2x1x128xf32, #tpu.memory_space<vmem>>, vector<1x1x128xf32>
    %19 = vector.shape_cast %18 : vector<1x1x128xf32> to vector<1x128xf32>
    %cst_17 = arith.constant dense<0.000000e+00> : vector<256x128xf32>
    %20 = tpu.matmul %15, %17, %cst_17 {dimension_numbers = #tpu.dot_dimension_numbers<[1], [0], [0], [1], [0, 0, 1, 1], [], []>} : vector<256x128xf32>, vector<128x128xf32>, vector<256x128xf32> -> vector<256x128xf32>
    %21 = vector.broadcast %19 : vector<1x128xf32> to vector<256x128xf32>
    %22 = arith.addf %20, %21 : vector<256x128xf32>
    %23 = math.tanh %22 : vector<256x128xf32>
    %24 = math.tanh %23 : vector<256x128xf32>
    %c0_18 = arith.constant 0 : index
    %c0_19 = arith.constant 0 : index
    %25 = vector.load %arg6[%c0_18, %c0_19] : memref<128x4xf32, #tpu.memory_space<vmem>>, vector<128x4xf32>
    %c0_20 = arith.constant 0 : index
    %c0_21 = arith.constant 0 : index
    %26 = vector.load %arg7[%c0_20, %c0_21] : memref<1x4xf32, #tpu.memory_space<vmem>>, vector<1x4xf32>
    %cst_22 = arith.constant dense<0.000000e+00> : vector<256x4xf32>
    %27 = tpu.matmul %24, %25, %cst_22 {dimension_numbers = #tpu.dot_dimension_numbers<[1], [0], [0], [1], [0, 0, 1, 1], [], []>} : vector<256x128xf32>, vector<128x4xf32>, vector<256x4xf32> -> vector<256x4xf32>
    %28 = vector.broadcast %26 : vector<1x4xf32> to vector<256x4xf32>
    %29 = arith.addf %27, %28 : vector<256x4xf32>
    %c0_23 = arith.constant 0 : index
    %c0_24 = arith.constant 0 : index
    %30 = vector.load %arg8[%c0_23, %c0_24] : memref<256x4xf32, #tpu.memory_space<vmem>>, vector<256x4xf32>
    tpu.vector_store %arg8[%c0_23, %c0_24], %29 {strides = array<i32>} : memref<256x4xf32, #tpu.memory_space<vmem>>, vector<256x4xf32>,
    return
  }
  func.func @transform_0(%arg0: i32) -> (i32, i32) {
    %c0_i32 = arith.constant 0 : i32
    %c0_i32_0 = arith.constant 0 : i32
    return %arg0, %c0_i32 : i32, i32
  }
  func.func @transform_1(%arg0: i32) -> (i32, i32) {
    %c0_i32 = arith.constant 0 : i32
    %c0_i32_0 = arith.constant 0 : i32
    %c0_i32_1 = arith.constant 0 : i32
    return %c0_i32, %c0_i32_0 : i32, i32
  }
  func.func @transform_2(%arg0: i32) -> (i32, i32) {
    %c0_i32 = arith.constant 0 : i32
    %c0_i32_0 = arith.constant 0 : i32
    %c0_i32_1 = arith.constant 0 : i32
    return %c0_i32, %c0_i32_0 : i32, i32
  }
  func.func @transform_3(%arg0: i32) -> (i32, i32, i32) {
    %c0_i32 = arith.constant 0 : i32
    %c0_i32_0 = arith.constant 0 : i32
    %c0_i32_1 = arith.constant 0 : i32
    %c0_i32_2 = arith.constant 0 : i32
    return %c0_i32, %c0_i32_0, %c0_i32_1 : i32, i32, i32
  }
  func.func @transform_4(%arg0: i32) -> (i32, i32, i32) {
    %c0_i32 = arith.constant 0 : i32
    %c0_i32_0 = arith.constant 0 : i32
    %c0_i32_1 = arith.constant 0 : i32
    %c0_i32_2 = arith.constant 0 : i32
    return %c0_i32, %c0_i32_0, %c0_i32_1 : i32, i32, i32
  }
  func.func @transform_5(%arg0: i32) -> (i32, i32) {
    %c0_i32 = arith.constant 0 : i32
    %c0_i32_0 = arith.constant 0 : i32
    %c0_i32_1 = arith.constant 0 : i32
    return %c0_i32, %c0_i32_0 : i32, i32
  }
  func.func @transform_6(%arg0: i32) -> (i32, i32) {
    %c0_i32 = arith.constant 0 : i32
    %c0_i32_0 = arith.constant 0 : i32
    %c0_i32_1 = arith.constant 0 : i32
    return %c0_i32, %c0_i32_0 : i32, i32
  }
  func.func @transform_7(%arg0: i32) -> (i32, i32) {
    %c0_i32 = arith.constant 0 : i32
    %c0_i32_0 = arith.constant 0 : i32
    return %arg0, %c0_i32 : i32, i32
  }
}

</mosaic_0001>

<llo_original>
// kernel: tpu_custom_call.1
$region0: #{tpu_custom_call.1}
  #allocation0 [shape = 'u32[]', space=smem, size = 0x4, offset = 0x4, fixed_abs, tag = 'smem constant byte address 0x4 - core index']
  #allocation1 [shape = 'u32[144,128]{1,0:T(1,128)}', space=vmem, size = 0x12000, scoped, tag = 'internal scratch']
  %s0 = inlined_call_operand.vmem [shape: f32[512,8], index: 0, kind: input, shape index: {}]
  %s1 = inlined_call_operand.vmem [shape: f32[8,128], index: 1, kind: input, shape index: {}]
  %s2 = inlined_call_operand.vmem [shape: f32[1,128], index: 2, kind: input, shape index: {}]
  %s3 = inlined_call_operand.vmem [shape: f32[2,128,128], index: 3, kind: input, shape index: {}]
  %s4 = inlined_call_operand.vmem [shape: f32[2,1,128], index: 4, kind: input, shape index: {}]
  %s5 = inlined_call_operand.vmem [shape: f32[128,4], index: 5, kind: input, shape index: {}]
  %s6 = inlined_call_operand.vmem [shape: f32[1,4], index: 6, kind: input, shape index: {}]
  %s7 = inlined_call_operand.vmem [shape: f32[512,4], index: 7, kind: output, shape index: {}]
  %s8 = sld [smem:[#allocation0]]
  $region61: #{tpu_custom_call.1} parent=0
    _
  %s10 = ssub.s32 1, %s8
  %s11 = scalar_select 0, %s10, %s8
  loop: start=0, step=1, limit=4
  $region2: #{tpu_custom_call.1} parent=0 // loop_pre_header
    _
  $region3: #{tpu_custom_call.1} parent=0 // loop_header
    %s13 = sphi 0, %s17
    %p14 = scmp.ge.s32.totalorder %s13, 4
    %s23 = sphi 0, %s25
    %s26 = sphi 0, %s23
    %s27 = sphi 0, %s26
    %s43 = sphi 0, %s27
    %s47 = sphi 0, %s47
    %s49 = sphi 0, %s47
    %s50 = sphi 0, %s49
    %s64 = sphi 0, %s50
    %s68 = sphi 0, %s68
    %s70 = sphi 0, %s68
    %s71 = sphi 0, %s70
    %s85 = sphi 0, %s71
    %s89 = sphi 0, %s89
    %s91 = sphi 0, %s89
    %s92 = sphi 0, %s91
    %s106 = sphi 0, %s92
    %s110 = sphi 0, %s110
    %s112 = sphi 0, %s110
    %s113 = sphi 0, %s112
    %s127 = sphi 0, %s113
    %s131 = sphi 0, %s131
    %s133 = sphi 0, %s131
    %s134 = sphi 0, %s133
    %s148 = sphi 0, %s134
    %s152 = sphi 0, %s152
    %s154 = sphi 0, %s152
    %s155 = sphi 0, %s154
    %s169 = sphi 0, %s155
    %s175 = sphi 0, %s177
    %s178 = sphi 0, %s175
    %s179 = sphi 0, %s178
    %s195 = sphi 0, %s179
  $region4: #{tpu_custom_call.1} parent=0 // loop_header_branch
    %16 = sbr.rel (%p14) target = $region8
  $region5: #{tpu_custom_call.1} parent=0 // loop_body
    %s18 = ssub.s32 %s13, 1
    %s19 = ssub.s32 %s13, 2
    %s20 = sadd.s32 %s13, 1
    %s21 = ssub.s32 %s13, %s20
    %p22 = scmp.eq.s32.totalorder %s21, 0
    %s24 = sadd.s32 %s23, 1
    %s25 = scalar_select %p22, %s23, %s24
    %p28 = pneg %p22
    %p29 = scmp.eq.s32.totalorder %s13, 1
    %p30 = por %p28, %p29
    %p31 = scmp.ne.s32.totalorder %s23, %s26
    %p32 = scmp.eq.s32.totalorder %s13, 0
    %p33 = por %p31, %p32
    %p34 = scmp.ne.s32.totalorder %s23, %s26
    %p35 = scmp.eq.s32.totalorder %s18, 1
    %p36 = por %p34, %p35
    %p37 = scmp.ne.s32.totalorder %s26, %s27
    %p38 = scmp.eq.s32.totalorder %s18, 0
    %p39 = por %p37, %p38
    %p40 = scmp.ne.s32.totalorder %s26, %s27
    %p41 = scmp.eq.s32.totalorder %s19, 1
    %p42 = por %p40, %p41
    %p44 = scmp.ne.s32.totalorder %s27, %s43
    %p45 = scmp.eq.s32.totalorder %s19, 0
    %p46 = por %p44, %p45
    %s48 = sadd.s32 %s47, 1
    %p51 = scmp.eq.s32.totalorder %s13, 1
    %p52 = scmp.ne.s32.totalorder %s47, %s49
    %p53 = scmp.eq.s32.totalorder %s13, 0
    %p54 = por %p52, %p53
    %p55 = scmp.ne.s32.totalorder %s47, %s49
    %p56 = scmp.eq.s32.totalorder %s18, 1
    %p57 = por %p55, %p56
    %p58 = scmp.ne.s32.totalorder %s49, %s50
    %p59 = scmp.eq.s32.totalorder %s18, 0
    %p60 = por %p58, %p59
    %p61 = scmp.ne.s32.totalorder %s49, %s50
    %p62 = scmp.eq.s32.totalorder %s19, 1
    %p63 = por %p61, %p62
    %p65 = scmp.ne.s32.totalorder %s50, %s64
    %p66 = scmp.eq.s32.totalorder %s19, 0
    %p67 = por %p65, %p66
    %s69 = sadd.s32 %s68, 1
    %p72 = scmp.eq.s32.totalorder %s13, 1
    %p73 = scmp.ne.s32.totalorder %s68, %s70
    %p74 = scmp.eq.s32.totalorder %s13, 0
    %p75 = por %p73, %p74
    %p76 = scmp.ne.s32.totalorder %s68, %s70
    %p77 = scmp.eq.s32.totalorder %s18, 1
    %p78 = por %p76, %p77
    %p79 = scmp.ne.s32.totalorder %s70, %s71
    %p80 = scmp.eq.s32.totalorder %s18, 0
    %p81 = por %p79, %p80
    %p82 = scmp.ne.s32.totalorder %s70, %s71
    %p83 = scmp.eq.s32.totalorder %s19, 1
    %p84 = por %p82, %p83
    %p86 = scmp.ne.s32.totalorder %s71, %s85
    %p87 = scmp.eq.s32.totalorder %s19, 0
    %p88 = por %p86, %p87
    %s90 = sadd.s32 %s89, 1
    %p93 = scmp.eq.s32.totalorder %s13, 1
    %p94 = scmp.ne.s32.totalorder %s89, %s91
    %p95 = scmp.eq.s32.totalorder %s13, 0
    %p96 = por %p94, %p95
    %p97 = scmp.ne.s32.totalorder %s89, %s91
    %p98 = scmp.eq.s32.totalorder %s18, 1
    %p99 = por %p97, %p98
    %p100 = scmp.ne.s32.totalorder %s91, %s92
    %p101 = scmp.eq.s32.totalorder %s18, 0
    %p102 = por %p100, %p101
    %p103 = scmp.ne.s32.totalorder %s91, %s92
    %p104 = scmp.eq.s32.totalorder %s19, 1
    %p105 = por %p103, %p104
    %p107 = scmp.ne.s32.totalorder %s92, %s106
    %p108 = scmp.eq.s32.totalorder %s19, 0
    %p109 = por %p107, %p108
    %s111 = sadd.s32 %s110, 1
    %p114 = scmp.eq.s32.totalorder %s13, 1
    %p115 = scmp.ne.s32.totalorder %s110, %s112
    %p116 = scmp.eq.s32.totalorder %s13, 0
    %p117 = por %p115, %p116
    %p118 = scmp.ne.s32.totalorder %s110, %s112
    %p119 = scmp.eq.s32.totalorder %s18, 1
    %p120 = por %p118, %p119
    %p121 = scmp.ne.s32.totalorder %s112, %s113
    %p122 = scmp.eq.s32.totalorder %s18, 0
    %p123 = por %p121, %p122
    %p124 = scmp.ne.s32.totalorder %s112, %s113
    %p125 = scmp.eq.s32.totalorder %s19, 1
    %p126 = por %p124, %p125
    %p128 = scmp.ne.s32.totalorder %s113, %s127
    %p129 = scmp.eq.s32.totalorder %s19, 0
    %p130 = por %p128, %p129
    %s132 = sadd.s32 %s131, 1
    %p135 = scmp.eq.s32.totalorder %s13, 1
    %p136 = scmp.ne.s32.totalorder %s131, %s133
    %p137 = scmp.eq.s32.totalorder %s13, 0
    %p138 = por %p136, %p137
    %p139 = scmp.ne.s32.totalorder %s131, %s133
    %p140 = scmp.eq.s32.totalorder %s18, 1
    %p141 = por %p139, %p140
    %p142 = scmp.ne.s32.totalorder %s133, %s134
    %p143 = scmp.eq.s32.totalorder %s18, 0
    %p144 = por %p142, %p143
    %p145 = scmp.ne.s32.totalorder %s133, %s134
    %p146 = scmp.eq.s32.totalorder %s19, 1
    %p147 = por %p145, %p146
    %p149 = scmp.ne.s32.totalorder %s134, %s148
    %p150 = scmp.eq.s32.totalorder %s19, 0
    %p151 = por %p149, %p150
    %s153 = sadd.s32 %s152, 1
    %p156 = scmp.eq.s32.totalorder %s13, 1
    %p157 = scmp.ne.s32.totalorder %s152, %s154
    %p158 = scmp.eq.s32.totalorder %s13, 0
    %p159 = por %p157, %p158
    %p160 = scmp.ne.s32.totalorder %s152, %s154
    %p161 = scmp.eq.s32.totalorder %s18, 1
    %p162 = por %p160, %p161
    %p163 = scmp.ne.s32.totalorder %s154, %s155
    %p164 = scmp.eq.s32.totalorder %s18, 0
    %p165 = por %p163, %p164
    %p166 = scmp.ne.s32.totalorder %s154, %s155
    %p167 = scmp.eq.s32.totalorder %s19, 1
    %p168 = por %p166, %p167
    %p170 = scmp.ne.s32.totalorder %s155, %s169
    %p171 = scmp.eq.s32.totalorder %s19, 0
    %p172 = por %p170, %p171
    %s173 = ssub.s32 %s13, %s20
    %p174 = scmp.eq.s32.totalorder %s173, 0
    %s176 = sadd.s32 %s175, 1
    %s177 = scalar_select %p174, %s175, %s176
    %p180 = pneg %p174
    %p181 = scmp.eq.s32.totalorder %s13, 1
    %p182 = por %p180, %p181
    %p183 = scmp.ne.s32.totalorder %s175, %s178
    %p184 = scmp.eq.s32.totalorder %s13, 0
    %p185 = por %p183, %p184
    %p186 = scmp.ne.s32.totalorder %s175, %s178
    %p187 = scmp.eq.s32.totalorder %s18, 1
    %p188 = por %p186, %p187
    %p189 = scmp.ne.s32.totalorder %s178, %s179
    %p190 = scmp.eq.s32.totalorder %s18, 0
    %p191 = por %p189, %p190
    %p192 = scmp.ne.s32.totalorder %s178, %s179
    %p193 = scmp.eq.s32.totalorder %s19, 1
    %p194 = por %p192, %p193
    %p196 = scmp.ne.s32.totalorder %s179, %s195
    %p197 = scmp.eq.s32.totalorder %s19, 0
    %p198 = por %p196, %p197
    %p199 = scmp.le.s32.totalorder 1, %s13
    %p200 = scmp.lt.s32.totalorder %s13, 3
    %p201 = pnand %p199, %p200
    %p202 = pneg %p201
    // Predicated region
    $region9: #{tpu_custom_call.1} parent=5 // pred_check
      _
    $region10: #{tpu_custom_call.1} parent=5 // pred_check_branch
      %204 = sbr.rel (%p201) target = $region12
    $region11: #{tpu_custom_call.1} parent=5 // pred_region
      %s205 = ssub.s32 %s13, 1
      // Predicated region
      $region13: #{tpu_custom_call.1} parent=11 // pred_check
        %p206 = pneg %p60
      $region14: #{tpu_custom_call.1} parent=11 // pred_check_branch
        %208 = sbr.rel (%p206) target = $region16
      $region15: #{tpu_custom_call.1} parent=11 // pred_region
        _
      $region16: #{tpu_custom_call.1} parent=11 // pred_fallthru
        _
      // Predicated region
      $region17: #{tpu_custom_call.1} parent=11 // pred_check
        %p209 = pneg %p81
      $region18: #{tpu_custom_call.1} parent=11 // pred_check_branch
        %211 = sbr.rel (%p209) target = $region20
      $region19: #{tpu_custom_call.1} parent=11 // pred_region
        _
      $region20: #{tpu_custom_call.1} parent=11 // pred_fallthru
        _
      // Predicated region
      $region21: #{tpu_custom_call.1} parent=11 // pred_check
        %p212 = pneg %p102
      $region22: #{tpu_custom_call.1} parent=11 // pred_check_branch
        %214 = sbr.rel (%p212) target = $region24
      $region23: #{tpu_custom_call.1} parent=11 // pred_region
        _
      $region24: #{tpu_custom_call.1} parent=11 // pred_fallthru
        _
      // Predicated region
      $region25: #{tpu_custom_call.1} parent=11 // pred_check
        %p215 = pneg %p123
      $region26: #{tpu_custom_call.1} parent=11 // pred_check_branch
        %217 = sbr.rel (%p215) target = $region28
      $region27: #{tpu_custom_call.1} parent=11 // pred_region
        _
      $region28: #{tpu_custom_call.1} parent=11 // pred_fallthru
        _
      // Predicated region
      $region29: #{tpu_custom_call.1} parent=11 // pred_check
        %p218 = pneg %p144
      $region30: #{tpu_custom_call.1} parent=11 // pred_check_branch
        %220 = sbr.rel (%p218) target = $region32
      $region31: #{tpu_custom_call.1} parent=11 // pred_region
        _
      $region32: #{tpu_custom_call.1} parent=11 // pred_fallthru
        _
      // Predicated region
      $region33: #{tpu_custom_call.1} parent=11 // pred_check
        %p221 = pneg %p165
      $region34: #{tpu_custom_call.1} parent=11 // pred_check_branch
        %223 = sbr.rel (%p221) target = $region36
      $region35: #{tpu_custom_call.1} parent=11 // pred_region
        _
      $region36: #{tpu_custom_call.1} parent=11 // pred_fallthru
        _
    $region12: #{tpu_custom_call.1} parent=5 // pred_fallthru
      _
    %p224 = scmp.lt.s32.totalorder %s13, 2
    // Predicated region
    $region37: #{tpu_custom_call.1} parent=5 // pred_check
      %p225 = pneg %p224
    $region38: #{tpu_custom_call.1} parent=5 // pred_check_branch
      %227 = sbr.rel (%p225) target = $region40
    $region39: #{tpu_custom_call.1} parent=5 // pred_region
      // Predicated region
      $region41: #{tpu_custom_call.1} parent=39 // pred_check
        %p228 = pneg %p33
      $region42: #{tpu_custom_call.1} parent=39 // pred_check_branch
        %230 = sbr.rel (%p228) target = $region44
      $region43: #{tpu_custom_call.1} parent=39 // pred_region
        %s231 = smul.u32 32, %s13
        %p232 = scmp.lt.s32.totalorder %s231, 63
        %s233 = scalar_select %p232, %s231, 63
        %s234 = smul.addr %s233, 8
        %s235 = scalar_lea.vmem %s0, %s234
        %s236 = smul.u32 32, %s13
      $region44: #{tpu_custom_call.1} parent=39 // pred_fallthru
        _
    $region40: #{tpu_custom_call.1} parent=5 // pred_fallthru
      _
    %p237 = scmp.le.s32.totalorder 1, %s13
    %p238 = scmp.lt.s32.totalorder %s13, 3
    %p239 = pnand %p237, %p238
    %p240 = pneg %p239
    // Predicated region
    $region45: #{tpu_custom_call.1} parent=5 // pred_check
      _
    $region46: #{tpu_custom_call.1} parent=5 // pred_check_branch
      %242 = sbr.rel (%p239) target = $region48
    $region47: #{tpu_custom_call.1} parent=5 // pred_region
      %s243 = ssub.s32 %s13, 1
      %s244 = smul.u32 32, %s18
      %p245 = scmp.lt.s32.totalorder %s244, 63
      %s246 = scalar_select %p245, %s244, 63
      %s247 = smul.addr %s246, 8
      %s248 = scalar_lea.vmem %s0, %s247
      %p249 = pneg %p39
      %p250 = pneg %p36
      %p251 = pneg %p60
      %p252 = pneg %p57
      %p253 = pneg %p81
      %p254 = pneg %p78
      %p255 = pneg %p102
      %p256 = pneg %p99
      %p257 = pneg %p123
      %p258 = pneg %p120
      %p259 = pneg %p144
      %p260 = pneg %p141
      %p261 = pneg %p165
      %p262 = pneg %p162
      %p263 = pneg %p191
      %p264 = pneg %p188
      %s265 = smul.u32 32, %s18
      %p266 = scmp.lt.s32.totalorder %s265, 63
      %s267 = scalar_select %p266, %s265, 63
      %s268 = smul.addr %s267, 8
      %s269 = scalar_lea.vmem %s7, %s268
      %s270 = smul.u32 32, %s18
      %p271 = scmp.lt.s32.totalorder %s270, 63
      %s272 = scalar_select %p271, %s270, 63
      %s273 = smul.addr %s272, 8
      %s274 = scalar_lea.vmem %s0, %s273
      %s275 = smul.u32 32, %s18
      %s276 = smul.u32 32, %s18
      %p277 = scmp.lt.s32.totalorder %s276, 63
      %s278 = scalar_select %p277, %s276, 63
      %s279 = smul.addr %s278, 8
      %s280 = scalar_lea.vmem %s7, %s279
      %s281 = smul.u32 32, %s18
      %v282 = vld [vmem:[%s274] sm:$0xff]
      %v283 = vld [vmem:[%s274 + $0x8] sm:$0xff]
      %v284 = vld [vmem:[%s274 + $0x10] sm:$0xff]
      %v285 = vld [vmem:[%s274 + $0x18] sm:$0xff]
      %v286 = vld [vmem:[%s274 + $0x20] sm:$0xff]
      %v287 = vld [vmem:[%s274 + $0x28] sm:$0xff]
      %v288 = vld [vmem:[%s274 + $0x30] sm:$0xff]
      %v289 = vld [vmem:[%s274 + $0x38] sm:$0xff]
      %v290 = vld [vmem:[%s274 + $0x40] sm:$0xff]
      %v291 = vld [vmem:[%s274 + $0x48] sm:$0xff]
      %v292 = vld [vmem:[%s274 + $0x50] sm:$0xff]
      %v293 = vld [vmem:[%s274 + $0x58] sm:$0xff]
      %v294 = vld [vmem:[%s274 + $0x60] sm:$0xff]
      %v295 = vld [vmem:[%s274 + $0x68] sm:$0xff]
      %v296 = vld [vmem:[%s274 + $0x70] sm:$0xff]
      %v297 = vld [vmem:[%s274 + $0x78] sm:$0xff]
      %v298 = vld [vmem:[%s274 + $0x80] sm:$0xff]
      %v299 = vld [vmem:[%s274 + $0x88] sm:$0xff]
      %v300 = vld [vmem:[%s274 + $0x90] sm:$0xff]
      %v301 = vld [vmem:[%s274 + $0x98] sm:$0xff]
      %v302 = vld [vmem:[%s274 + $0xa0] sm:$0xff]
      %v303 = vld [vmem:[%s274 + $0xa8] sm:$0xff]
      %v304 = vld [vmem:[%s274 + $0xb0] sm:$0xff]
      %v305 = vld [vmem:[%s274 + $0xb8] sm:$0xff]
      %v306 = vld [vmem:[%s274 + $0xc0] sm:$0xff]
      %v307 = vld [vmem:[%s274 + $0xc8] sm:$0xff]
      %v308 = vld [vmem:[%s274 + $0xd0] sm:$0xff]
      %v309 = vld [vmem:[%s274 + $0xd8] sm:$0xff]
      %v310 = vld [vmem:[%s274 + $0xe0] sm:$0xff]
      %v311 = vld [vmem:[%s274 + $0xe8] sm:$0xff]
      %v312 = vld [vmem:[%s274 + $0xf0] sm:$0xff]
      %v313 = vld [vmem:[%s274 + $0xf8] sm:$0xff]
      %v314 = vld [vmem:[%s1] sm:$0xff]
      %v315 = vld [vmem:[%s2] sm:$0x1]
      %v317 = vlaneseq
      %v318 = vshrl.u32 %v317, 7
      %v319 = vsub.s32 0, %v318
      %v320 = vrot.slane %v315, %v319
      %vm322 = vcmask 64512
      %v324 = vsel %vm322, %v282, 0
      %v327 = vsel %vm322, %v283, 0
      %v330 = vsel %vm322, %v284, 0
      %v333 = vsel %vm322, %v285, 0
      %v336 = vsel %vm322, %v286, 0
      %v339 = vsel %vm322, %v287, 0
      %v342 = vsel %vm322, %v288, 0
      %v345 = vsel %vm322, %v289, 0
      %v348 = vsel %vm322, %v290, 0
      %v351 = vsel %vm322, %v291, 0
      %v354 = vsel %vm322, %v292, 0
      %v357 = vsel %vm322, %v293, 0
      %v360 = vsel %vm322, %v294, 0
      %v363 = vsel %vm322, %v295, 0
      %v366 = vsel %vm322, %v296, 0
      %v369 = vsel %vm322, %v297, 0
      %v372 = vsel %vm322, %v298, 0
      %v375 = vsel %vm322, %v299, 0
      %v378 = vsel %vm322, %v300, 0
      %v381 = vsel %vm322, %v301, 0
      %v384 = vsel %vm322, %v302, 0
      %v387 = vsel %vm322, %v303, 0
      %v390 = vsel %vm322, %v304, 0
      %v393 = vsel %vm322, %v305, 0
      %v396 = vsel %vm322, %v306, 0
      %v399 = vsel %vm322, %v307, 0
      %v402 = vsel %vm322, %v308, 0
      %v405 = vsel %vm322, %v309, 0
      %v408 = vsel %vm322, %v310, 0
      %v411 = vsel %vm322, %v311, 0
      %v414 = vsel %vm322, %v312, 0
      %v417 = vsel %vm322, %v313, 0
      %419 = vmatprep.subr.mxu0 0.0
      %420 = vmatpush1.msra.mxu0 %v314
      %421 = vmatprep.subr.mxu0 0.0
      %422 = vmatpush1.msra.mxu0 0.0
      %423 = vmatprep.subr.mxu0 0.0
      %424 = vmatpush1.msra.mxu0 0.0
      %425 = vmatprep.subr.mxu0 0.0
      %426 = vmatpush1.msra.mxu0 0.0
      %427 = vmatprep.subr.mxu0 0.0
      %428 = vmatpush1.msra.mxu0 0.0
      %429 = vmatprep.subr.mxu0 0.0
      %430 = vmatpush1.msra.mxu0 0.0
      %431 = vmatprep.subr.mxu0 0.0
      %432 = vmatpush1.msra.mxu0 0.0
      %433 = vmatprep.subr.mxu0 0.0
      %434 = vmatpush1.msra.mxu0 0.0
      %435 = vmatprep.subr.mxu0 0.0
      %436 = vmatpush1.msra.mxu0 0.0
      %437 = vmatprep.subr.mxu0 0.0
      %438 = vmatpush1.msra.mxu0 0.0
      %439 = vmatprep.subr.mxu0 0.0
      %440 = vmatpush1.msra.mxu0 0.0
      %441 = vmatprep.subr.mxu0 0.0
      %442 = vmatpush1.msra.mxu0 0.0
      %443 = vmatprep.subr.mxu0 0.0
      %444 = vmatpush1.msra.mxu0 0.0
      %445 = vmatprep.subr.mxu0 0.0
      %446 = vmatpush1.msra.mxu0 0.0
      %447 = vmatprep.subr.mxu0 0.0
      %448 = vmatpush1.msra.mxu0 0.0
      %449 = vmatprep.subr.mxu0 0.0
      %450 = vmatpush1.msra.mxu0 0.0
      %451 = vmatprep.subr.mxu0 0.0
      %452 = vmatpush1.msra.mxu0 0.0
      %453 = vmatprep.subr.mxu0 0.0
      %454 = vmatpush1.msra.mxu0 0.0
      %455 = vmatprep.subr.mxu0 0.0
      %456 = vmatpush1.msra.mxu0 0.0
      %457 = vmatprep.subr.mxu0 0.0
      %458 = vmatpush1.msra.mxu0 0.0
      %459 = vmatprep.subr.mxu0 0.0
      %460 = vmatpush1.msra.mxu0 0.0
      %461 = vmatprep.subr.mxu0 0.0
      %462 = vmatpush1.msra.mxu0 0.0
      %463 = vmatprep.subr.mxu0 0.0
      %464 = vmatpush1.msra.mxu0 0.0
      %465 = vmatprep.subr.mxu0 0.0
      %466 = vmatpush1.msra.mxu0 0.0
      %467 = vmatprep.subr.mxu0 0.0
      %468 = vmatpush1.msra.mxu0 0.0
      %469 = vmatprep.subr.mxu0 0.0
      %470 = vmatpush1.msra.mxu0 0.0
      %471 = vmatprep.subr.mxu0 0.0
      %472 = vmatpush1.msra.mxu0 0.0
      %473 = vmatprep.subr.mxu0 0.0
      %474 = vmatpush1.msra.mxu0 0.0
      %475 = vmatprep.subr.mxu0 0.0
      %476 = vmatpush1.msra.mxu0 0.0
      %477 = vmatprep.subr.mxu0 0.0
      %478 = vmatpush1.msra.mxu0 0.0
      %479 = vmatprep.subr.mxu0 0.0
      %480 = vmatpush1.msra.mxu0 0.0
      %481 = vmatprep.subr.mxu0 0.0
      %482 = vmatpush1.msra.mxu0 0.0
      %483 = vmatprep.mubr.f32.mxu0 0.0
      %484 = vmatmul.mubr.f32.gmra.mrb[0].mxu0 %v324
      %v485 = vpop.f32.mrb[0].mxu0
      %v486 = vadd.f32 %v320, %v485
      %v487 = vpop.f32.mrb[0].mxu0
      %488 = vmatprep.mubr.f32.mxu0 0.0
      %489 = vmatmul.mubr.f32.gmra.mrb[0].mxu0 %v327
      %v490 = vpop.f32.mrb[0].mxu0
      %v491 = vadd.f32 %v320, %v490
      %v492 = vpop.f32.mrb[0].mxu0
      %493 = vmatprep.mubr.f32.mxu0 0.0
      %494 = vmatmul.mubr.f32.gmra.mrb[0].mxu0 %v330
      %v495 = vpop.f32.mrb[0].mxu0
      %v496 = vadd.f32 %v320, %v495
      %v497 = vpop.f32.mrb[0].mxu0
      %498 = vmatprep.mubr.f32.mxu0 0.0
      %499 = vmatmul.mubr.f32.gmra.mrb[0].mxu0 %v333
      %v500 = vpop.f32.mrb[0].mxu0
      %v501 = vadd.f32 %v320, %v500
      %v502 = vpop.f32.mrb[0].mxu0
      %503 = vmatprep.mubr.f32.mxu0 0.0
      %504 = vmatmul.mubr.f32.gmra.mrb[0].mxu0 %v336
      %v505 = vpop.f32.mrb[0].mxu0
      %v506 = vadd.f32 %v320, %v505
      %v507 = vpop.f32.mrb[0].mxu0
      %508 = vmatprep.mubr.f32.mxu0 0.0
      %509 = vmatmul.mubr.f32.gmra.mrb[0].mxu0 %v339
      %v510 = vpop.f32.mrb[0].mxu0
      %v511 = vadd.f32 %v320, %v510
      %v512 = vpop.f32.mrb[0].mxu0
      %513 = vmatprep.mubr.f32.mxu0 0.0
      %514 = vmatmul.mubr.f32.gmra.mrb[0].mxu0 %v342
      %v515 = vpop.f32.mrb[0].mxu0
      %v516 = vadd.f32 %v320, %v515
      %v517 = vpop.f32.mrb[0].mxu0
      %518 = vmatprep.mubr.f32.mxu0 0.0
      %519 = vmatmul.mubr.f32.gmra.mrb[0].mxu0 %v345
      %v520 = vpop.f32.mrb[0].mxu0
      %v521 = vadd.f32 %v320, %v520
      %v522 = vpop.f32.mrb[0].mxu0
      %523 = vmatprep.mubr.f32.mxu0 0.0
      %524 = vmatmul.mubr.f32.gmra.mrb[0].mxu0 %v348
      %v525 = vpop.f32.mrb[0].mxu0
      %v526 = vadd.f32 %v320, %v525
      %v527 = vpop.f32.mrb[0].mxu0
      %528 = vmatprep.mubr.f32.mxu0 0.0
      %529 = vmatmul.mubr.f32.gmra.mrb[0].mxu0 %v351
      %v530 = vpop.f32.mrb[0].mxu0
      %v531 = vadd.f32 %v320, %v530
      %v532 = vpop.f32.mrb[0].mxu0
      %533 = vmatprep.mubr.f32.mxu0 0.0
      %534 = vmatmul.mubr.f32.gmra.mrb[0].mxu0 %v354
      %v535 = vpop.f32.mrb[0].mxu0
      %v536 = vadd.f32 %v320, %v535
      %v537 = vpop.f32.mrb[0].mxu0
      %538 = vmatprep.mubr.f32.mxu0 0.0
      %539 = vmatmul.mubr.f32.gmra.mrb[0].mxu0 %v357
      %v540 = vpop.f32.mrb[0].mxu0
      %v541 = vadd.f32 %v320, %v540
      %v542 = vpop.f32.mrb[0].mxu0
      %543 = vmatprep.mubr.f32.mxu0 0.0
      %544 = vmatmul.mubr.f32.gmra.mrb[0].mxu0 %v360
      %v545 = vpop.f32.mrb[0].mxu0
      %v546 = vadd.f32 %v320, %v545
      %v547 = vpop.f32.mrb[0].mxu0
      %548 = vmatprep.mubr.f32.mxu0 0.0
      %549 = vmatmul.mubr.f32.gmra.mrb[0].mxu0 %v363
      %v550 = vpop.f32.mrb[0].mxu0
      %v551 = vadd.f32 %v320, %v550
      %v552 = vpop.f32.mrb[0].mxu0
      %553 = vmatprep.mubr.f32.mxu0 0.0
      %554 = vmatmul.mubr.f32.gmra.mrb[0].mxu0 %v366
      %v555 = vpop.f32.mrb[0].mxu0
      %v556 = vadd.f32 %v320, %v555
      %v557 = vpop.f32.mrb[0].mxu0
      %558 = vmatprep.mubr.f32.mxu0 0.0
      %559 = vmatmul.mubr.f32.gmra.mrb[0].mxu0 %v369
      %v560 = vpop.f32.mrb[0].mxu0
      %v561 = vadd.f32 %v320, %v560
      %v562 = vpop.f32.mrb[0].mxu0
      %563 = vmatprep.mubr.f32.mxu0 0.0
      %564 = vmatmul.mubr.f32.gmra.mrb[0].mxu0 %v372
      %v565 = vpop.f32.mrb[0].mxu0
      %v566 = vadd.f32 %v320, %v565
      %v567 = vpop.f32.mrb[0].mxu0
      %568 = vmatprep.mubr.f32.mxu0 0.0
      %569 = vmatmul.mubr.f32.gmra.mrb[0].mxu0 %v375
      %v570 = vpop.f32.mrb[0].mxu0
      %v571 = vadd.f32 %v320, %v570
      %v572 = vpop.f32.mrb[0].mxu0
      %573 = vmatprep.mubr.f32.mxu0 0.0
      %574 = vmatmul.mubr.f32.gmra.mrb[0].mxu0 %v378
      %v575 = vpop.f32.mrb[0].mxu0
      %v576 = vadd.f32 %v320, %v575
      %v577 = vpop.f32.mrb[0].mxu0
      %578 = vmatprep.mubr.f32.mxu0 0.0
      %579 = vmatmul.mubr.f32.gmra.mrb[0].mxu0 %v381
      %v580 = vpop.f32.mrb[0].mxu0
      %v581 = vadd.f32 %v320, %v580
      %v582 = vpop.f32.mrb[0].mxu0
      %583 = vmatprep.mubr.f32.mxu0 0.0
      %584 = vmatmul.mubr.f32.gmra.mrb[0].mxu0 %v384
      %v585 = vpop.f32.mrb[0].mxu0
      %v586 = vadd.f32 %v320, %v585
      %v587 = vpop.f32.mrb[0].mxu0
      %588 = vmatprep.mubr.f32.mxu0 0.0
      %589 = vmatmul.mubr.f32.gmra.mrb[0].mxu0 %v387
      %v590 = vpop.f32.mrb[0].mxu0
      %v591 = vadd.f32 %v320, %v590
      %v592 = vpop.f32.mrb[0].mxu0
      %593 = vmatprep.mubr.f32.mxu0 0.0
      %594 = vmatmul.mubr.f32.gmra.mrb[0].mxu0 %v390
      %v595 = vpop.f32.mrb[0].mxu0
      %v596 = vadd.f32 %v320, %v595
      %v597 = vpop.f32.mrb[0].mxu0
      %598 = vmatprep.mubr.f32.mxu0 0.0
      %599 = vmatmul.mubr.f32.gmra.mrb[0].mxu0 %v393
      %v600 = vpop.f32.mrb[0].mxu0
      %v601 = vadd.f32 %v320, %v600
      %v602 = vpop.f32.mrb[0].mxu0
      %603 = vmatprep.mubr.f32.mxu0 0.0
      %604 = vmatmul.mubr.f32.gmra.mrb[0].mxu0 %v396
      %v605 = vpop.f32.mrb[0].mxu0
      %v606 = vadd.f32 %v320, %v605
      %v607 = vpop.f32.mrb[0].mxu0
      %608 = vmatprep.mubr.f32.mxu0 0.0
      %609 = vmatmul.mubr.f32.gmra.mrb[0].mxu0 %v399
      %v610 = vpop.f32.mrb[0].mxu0
      %v611 = vadd.f32 %v320, %v610
      %v612 = vpop.f32.mrb[0].mxu0
      %613 = vmatprep.mubr.f32.mxu0 0.0
      %614 = vmatmul.mubr.f32.gmra.mrb[0].mxu0 %v402
      %v615 = vpop.f32.mrb[0].mxu0
      %v616 = vadd.f32 %v320, %v615
      %v617 = vpop.f32.mrb[0].mxu0
      %618 = vmatprep.mubr.f32.mxu0 0.0
      %619 = vmatmul.mubr.f32.gmra.mrb[0].mxu0 %v405
      %v620 = vpop.f32.mrb[0].mxu0
      %v621 = vadd.f32 %v320, %v620
      %v622 = vpop.f32.mrb[0].mxu0
      %623 = vmatprep.mubr.f32.mxu0 0.0
      %624 = vmatmul.mubr.f32.gmra.mrb[0].mxu0 %v408
      %v625 = vpop.f32.mrb[0].mxu0
      %v626 = vadd.f32 %v320, %v625
      %v627 = vpop.f32.mrb[0].mxu0
      %628 = vmatprep.mubr.f32.mxu0 0.0
      %629 = vmatmul.mubr.f32.gmra.mrb[0].mxu0 %v411
      %v630 = vpop.f32.mrb[0].mxu0
      %v631 = vadd.f32 %v320, %v630
      %v632 = vpop.f32.mrb[0].mxu0
      %633 = vmatprep.mubr.f32.mxu0 0.0
      %634 = vmatmul.mubr.f32.gmra.mrb[0].mxu0 %v414
      %v635 = vpop.f32.mrb[0].mxu0
      %v636 = vadd.f32 %v320, %v635
      %v637 = vpop.f32.mrb[0].mxu0
      %638 = vmatprep.mubr.f32.mxu0 0.0
      %639 = vmatmul.mubr.f32.gmra.mrb[0].mxu0 %v417
      %v640 = vpop.f32.mrb[0].mxu0
      %v641 = vadd.f32 %v320, %v640
      %v642 = vpop.f32.mrb[0].mxu0
      %643 = vdwg.mxu0
      %v644 = vtanh.pop %v486
      %v645 = vtanh.pop %v491
      %v646 = vtanh.pop %v496
      %v647 = vtanh.pop %v501
      %v648 = vtanh.pop %v506
      %v649 = vtanh.pop %v511
      %v650 = vtanh.pop %v516
      %v651 = vtanh.pop %v521
      %v652 = vtanh.pop %v526
      %v653 = vtanh.pop %v531
      %v654 = vtanh.pop %v536
      %v655 = vtanh.pop %v541
      %v656 = vtanh.pop %v546
      %v657 = vtanh.pop %v551
      %v658 = vtanh.pop %v556
      %v659 = vtanh.pop %v561
      %v660 = vtanh.pop %v566
      %v661 = vtanh.pop %v571
      %v662 = vtanh.pop %v576
      %v663 = vtanh.pop %v581
      %v664 = vtanh.pop %v586
      %v665 = vtanh.pop %v591
      %v666 = vtanh.pop %v596
      %v667 = vtanh.pop %v601
      %v668 = vtanh.pop %v606
      %v669 = vtanh.pop %v611
      %v670 = vtanh.pop %v616
      %v671 = vtanh.pop %v621
      %v672 = vtanh.pop %v626
      %v673 = vtanh.pop %v631
      %v674 = vtanh.pop %v636
      %v675 = vtanh.pop %v641
      %v676 = vld [vmem:[%s3] sm:$0xff]
      %v677 = vld [vmem:[%s3 + $0x8] sm:$0xff]
      %v678 = vld [vmem:[%s3 + $0x10] sm:$0xff]
      %v679 = vld [vmem:[%s3 + $0x18] sm:$0xff]
      %v680 = vld [vmem:[%s3 + $0x20] sm:$0xff]
      %v681 = vld [vmem:[%s3 + $0x28] sm:$0xff]
      %v682 = vld [vmem:[%s3 + $0x30] sm:$0xff]
      %v683 = vld [vmem:[%s3 + $0x38] sm:$0xff]
      %v684 = vld [vmem:[%s3 + $0x40] sm:$0xff]
      %v685 = vld [vmem:[%s3 + $0x48] sm:$0xff]
      %v686 = vld [vmem:[%s3 + $0x50] sm:$0xff]
      %v687 = vld [vmem:[%s3 + $0x58] sm:$0xff]
      %v688 = vld [vmem:[%s3 + $0x60] sm:$0xff]
      %v689 = vld [vmem:[%s3 + $0x68] sm:$0xff]
      %v690 = vld [vmem:[%s3 + $0x70] sm:$0xff]
      %v691 = vld [vmem:[%s3 + $0x78] sm:$0xff]
      %v692 = vld [vmem:[%s4] sm:$0x1]
      %v694 = vlaneseq
      %v695 = vshrl.u32 %v694, 7
      %v696 = vsub.s32 0, %v695
      %v697 = vrot.slane %v692, %v696
      %699 = vmatprep.subr.mxu0 0.0
      %700 = vmatpush1.msra.mxu0 %v676
      %701 = vmatprep.subr.mxu0 0.0
      %702 = vmatpush1.msra.mxu0 %v677
      %703 = vmatprep.subr.mxu0 0.0
      %704 = vmatpush1.msra.mxu0 %v678
      %705 = vmatprep.subr.mxu0 0.0
      %706 = vmatpush1.msra.mxu0 %v679
      %707 = vmatprep.subr.mxu0 0.0
      %708 = vmatpush1.msra.mxu0 %v680
      %709 = vmatprep.subr.mxu0 0.0
      %710 = vmatpush1.msra.mxu0 %v681
      %711 = vmatprep.subr.mxu0 0.0
      %712 = vmatpush1.msra.mxu0 %v682
      %713 = vmatprep.subr.mxu0 0.0
      %714 = vmatpush1.msra.mxu0 %v683
      %715 = vmatprep.subr.mxu0 0.0
      %716 = vmatpush1.msra.mxu0 %v684
      %717 = vmatprep.subr.mxu0 0.0
      %718 = vmatpush1.msra.mxu0 %v685
      %719 = vmatprep.subr.mxu0 0.0
      %720 = vmatpush1.msra.mxu0 %v686
      %721 = vmatprep.subr.mxu0 0.0
      %722 = vmatpush1.msra.mxu0 %v687
      %723 = vmatprep.subr.mxu0 0.0
      %724 = vmatpush1.msra.mxu0 %v688
      %725 = vmatprep.subr.mxu0 0.0
      %726 = vmatpush1.msra.mxu0 %v689
      %727 = vmatprep.subr.mxu0 0.0
      %728 = vmatpush1.msra.mxu0 %v690
      %729 = vmatprep.subr.mxu0 0.0
      %730 = vmatpush1.msra.mxu0 %v691
      %731 = vmatprep.subr.mxu0 0.0
      %732 = vmatpush1.msra.mxu0 0.0
      %733 = vmatprep.subr.mxu0 0.0
      %734 = vmatpush1.msra.mxu0 0.0
      %735 = vmatprep.subr.mxu0 0.0
      %736 = vmatpush1.msra.mxu0 0.0
      %737 = vmatprep.subr.mxu0 0.0
      %738 = vmatpush1.msra.mxu0 0.0
      %739 = vmatprep.subr.mxu0 0.0
      %740 = vmatpush1.msra.mxu0 0.0
      %741 = vmatprep.subr.mxu0 0.0
      %742 = vmatpush1.msra.mxu0 0.0
      %743 = vmatprep.subr.mxu0 0.0
      %744 = vmatpush1.msra.mxu0 0.0
      %745 = vmatprep.subr.mxu0 0.0
      %746 = vmatpush1.msra.mxu0 0.0
      %747 = vmatprep.subr.mxu0 0.0
      %748 = vmatpush1.msra.mxu0 0.0
      %749 = vmatprep.subr.mxu0 0.0
      %750 = vmatpush1.msra.mxu0 0.0
      %751 = vmatprep.subr.mxu0 0.0
      %752 = vmatpush1.msra.mxu0 0.0
      %753 = vmatprep.subr.mxu0 0.0
      %754 = vmatpush1.msra.mxu0 0.0
      %755 = vmatprep.subr.mxu0 0.0
      %756 = vmatpush1.msra.mxu0 0.0
      %757 = vmatprep.subr.mxu0 0.0
      %758 = vmatpush1.msra.mxu0 0.0
      %759 = vmatprep.subr.mxu0 0.0
      %760 = vmatpush1.msra.mxu0 0.0
      %761 = vmatprep.subr.mxu0 0.0
      %762 = vmatpush1.msra.mxu0 0.0
      %763 = vmatprep.mubr.f32.mxu0 0.0
      %764 = vmatmul.mubr.f32.gmra.mrb[0].mxu0 %v644
      %v765 = vpop.f32.mrb[0].mxu0
      %v766 = vadd.f32 %v697, %v765
      %v767 = vpop.f32.mrb[0].mxu0
      %768 = vmatprep.mubr.f32.mxu0 0.0
      %769 = vmatmul.mubr.f32.gmra.mrb[0].mxu0 %v645
      %v770 = vpop.f32.mrb[0].mxu0
      %v771 = vadd.f32 %v697, %v770
      %v772 = vpop.f32.mrb[0].mxu0
      %773 = vmatprep.mubr.f32.mxu0 0.0
      %774 = vmatmul.mubr.f32.gmra.mrb[0].mxu0 %v646
      %v775 = vpop.f32.mrb[0].mxu0
      %v776 = vadd.f32 %v697, %v775
      %v777 = vpop.f32.mrb[0].mxu0
      %778 = vmatprep.mubr.f32.mxu0 0.0
      %779 = vmatmul.mubr.f32.gmra.mrb[0].mxu0 %v647
      %v780 = vpop.f32.mrb[0].mxu0
      %v781 = vadd.f32 %v697, %v780
      %v782 = vpop.f32.mrb[0].mxu0
      %783 = vmatprep.mubr.f32.mxu0 0.0
      %784 = vmatmul.mubr.f32.gmra.mrb[0].mxu0 %v648
      %v785 = vpop.f32.mrb[0].mxu0
      %v786 = vadd.f32 %v697, %v785
      %v787 = vpop.f32.mrb[0].mxu0
      %788 = vmatprep.mubr.f32.mxu0 0.0
      %789 = vmatmul.mubr.f32.gmra.mrb[0].mxu0 %v649
      %v790 = vpop.f32.mrb[0].mxu0
      %v791 = vadd.f32 %v697, %v790
      %v792 = vpop.f32.mrb[0].mxu0
      %793 = vmatprep.mubr.f32.mxu0 0.0
      %794 = vmatmul.mubr.f32.gmra.mrb[0].mxu0 %v650
      %v795 = vpop.f32.mrb[0].mxu0
      %v796 = vadd.f32 %v697, %v795
      %v797 = vpop.f32.mrb[0].mxu0
      %798 = vmatprep.mubr.f32.mxu0 0.0
      %799 = vmatmul.mubr.f32.gmra.mrb[0].mxu0 %v651
      %v800 = vpop.f32.mrb[0].mxu0
      %v801 = vadd.f32 %v697, %v800
      %v802 = vpop.f32.mrb[0].mxu0
      %803 = vmatprep.mubr.f32.mxu0 0.0
      %804 = vmatmul.mubr.f32.gmra.mrb[0].mxu0 %v652
      %v805 = vpop.f32.mrb[0].mxu0
      %v806 = vadd.f32 %v697, %v805
      %v807 = vpop.f32.mrb[0].mxu0
      %808 = vmatprep.mubr.f32.mxu0 0.0
      %809 = vmatmul.mubr.f32.gmra.mrb[0].mxu0 %v653
      %v810 = vpop.f32.mrb[0].mxu0
      %v811 = vadd.f32 %v697, %v810
      %v812 = vpop.f32.mrb[0].mxu0
      %813 = vmatprep.mubr.f32.mxu0 0.0
      %814 = vmatmul.mubr.f32.gmra.mrb[0].mxu0 %v654
      %v815 = vpop.f32.mrb[0].mxu0
      %v816 = vadd.f32 %v697, %v815
      %v817 = vpop.f32.mrb[0].mxu0
      %818 = vmatprep.mubr.f32.mxu0 0.0
      %819 = vmatmul.mubr.f32.gmra.mrb[0].mxu0 %v655
      %v820 = vpop.f32.mrb[0].mxu0
      %v821 = vadd.f32 %v697, %v820
      %v822 = vpop.f32.mrb[0].mxu0
      %823 = vmatprep.mubr.f32.mxu0 0.0
      %824 = vmatmul.mubr.f32.gmra.mrb[0].mxu0 %v656
      %v825 = vpop.f32.mrb[0].mxu0
      %v826 = vadd.f32 %v697, %v825
      %v827 = vpop.f32.mrb[0].mxu0
      %828 = vmatprep.mubr.f32.mxu0 0.0
      %829 = vmatmul.mubr.f32.gmra.mrb[0].mxu0 %v657
      %v830 = vpop.f32.mrb[0].mxu0
      %v831 = vadd.f32 %v697, %v830
      %v832 = vpop.f32.mrb[0].mxu0
      %833 = vmatprep.mubr.f32.mxu0 0.0
      %834 = vmatmul.mubr.f32.gmra.mrb[0].mxu0 %v658
      %v835 = vpop.f32.mrb[0].mxu0
      %v836 = vadd.f32 %v697, %v835
      %v837 = vpop.f32.mrb[0].mxu0
      %838 = vmatprep.mubr.f32.mxu0 0.0
      %839 = vmatmul.mubr.f32.gmra.mrb[0].mxu0 %v659
      %v840 = vpop.f32.mrb[0].mxu0
      %v841 = vadd.f32 %v697, %v840
      %v842 = vpop.f32.mrb[0].mxu0
      %843 = vmatprep.mubr.f32.mxu0 0.0
      %844 = vmatmul.mubr.f32.gmra.mrb[0].mxu0 %v660
      %v845 = vpop.f32.mrb[0].mxu0
      %v846 = vadd.f32 %v697, %v845
      %v847 = vpop.f32.mrb[0].mxu0
      %848 = vmatprep.mubr.f32.mxu0 0.0
      %849 = vmatmul.mubr.f32.gmra.mrb[0].mxu0 %v661
      %v850 = vpop.f32.mrb[0].mxu0
      %v851 = vadd.f32 %v697, %v850
      %v852 = vpop.f32.mrb[0].mxu0
      %853 = vmatprep.mubr.f32.mxu0 0.0
      %854 = vmatmul.mubr.f32.gmra.mrb[0].mxu0 %v662
      %v855 = vpop.f32.mrb[0].mxu0
      %v856 = vadd.f32 %v697, %v855
      %v857 = vpop.f32.mrb[0].mxu0
      %858 = vmatprep.mubr.f32.mxu0 0.0
      %859 = vmatmul.mubr.f32.gmra.mrb[0].mxu0 %v663
      %v860 = vpop.f32.mrb[0].mxu0
      %v861 = vadd.f32 %v697, %v860
      %v862 = vpop.f32.mrb[0].mxu0
      %863 = vmatprep.mubr.f32.mxu0 0.0
      %864 = vmatmul.mubr.f32.gmra.mrb[0].mxu0 %v664
      %v865 = vpop.f32.mrb[0].mxu0
      %v866 = vadd.f32 %v697, %v865
      %v867 = vpop.f32.mrb[0].mxu0
      %868 = vmatprep.mubr.f32.mxu0 0.0
      %869 = vmatmul.mubr.f32.gmra.mrb[0].mxu0 %v665
      %v870 = vpop.f32.mrb[0].mxu0
      %v871 = vadd.f32 %v697, %v870
      %v872 = vpop.f32.mrb[0].mxu0
      %873 = vmatprep.mubr.f32.mxu0 0.0
      %874 = vmatmul.mubr.f32.gmra.mrb[0].mxu0 %v666
      %v875 = vpop.f32.mrb[0].mxu0
      %v876 = vadd.f32 %v697, %v875
      %v877 = vpop.f32.mrb[0].mxu0
      %878 = vmatprep.mubr.f32.mxu0 0.0
      %879 = vmatmul.mubr.f32.gmra.mrb[0].mxu0 %v667
      %v880 = vpop.f32.mrb[0].mxu0
      %v881 = vadd.f32 %v697, %v880
      %v882 = vpop.f32.mrb[0].mxu0
      %883 = vmatprep.mubr.f32.mxu0 0.0
      %884 = vmatmul.mubr.f32.gmra.mrb[0].mxu0 %v668
      %v885 = vpop.f32.mrb[0].mxu0
      %v886 = vadd.f32 %v697, %v885
      %v887 = vpop.f32.mrb[0].mxu0
      %888 = vmatprep.mubr.f32.mxu0 0.0
      %889 = vmatmul.mubr.f32.gmra.mrb[0].mxu0 %v669
      %v890 = vpop.f32.mrb[0].mxu0
      %v891 = vadd.f32 %v697, %v890
      %v892 = vpop.f32.mrb[0].mxu0
      %893 = vmatprep.mubr.f32.mxu0 0.0
      %894 = vmatmul.mubr.f32.gmra.mrb[0].mxu0 %v670
      %v895 = vpop.f32.mrb[0].mxu0
      %v896 = vadd.f32 %v697, %v895
      %v897 = vpop.f32.mrb[0].mxu0
      %898 = vmatprep.mubr.f32.mxu0 0.0
      %899 = vmatmul.mubr.f32.gmra.mrb[0].mxu0 %v671
      %v900 = vpop.f32.mrb[0].mxu0
      %v901 = vadd.f32 %v697, %v900
      %v902 = vpop.f32.mrb[0].mxu0
      %903 = vmatprep.mubr.f32.mxu0 0.0
      %904 = vmatmul.mubr.f32.gmra.mrb[0].mxu0 %v672
      %v905 = vpop.f32.mrb[0].mxu0
      %v906 = vadd.f32 %v697, %v905
      %v907 = vpop.f32.mrb[0].mxu0
      %908 = vmatprep.mubr.f32.mxu0 0.0
      %909 = vmatmul.mubr.f32.gmra.mrb[0].mxu0 %v673
      %v910 = vpop.f32.mrb[0].mxu0
      %v911 = vadd.f32 %v697, %v910
      %v912 = vpop.f32.mrb[0].mxu0
      %913 = vmatprep.mubr.f32.mxu0 0.0
      %914 = vmatmul.mubr.f32.gmra.mrb[0].mxu0 %v674
      %v915 = vpop.f32.mrb[0].mxu0
      %v916 = vadd.f32 %v697, %v915
      %v917 = vpop.f32.mrb[0].mxu0
      %918 = vmatprep.mubr.f32.mxu0 0.0
      %919 = vmatmul.mubr.f32.gmra.mrb[0].mxu0 %v675
      %v920 = vpop.f32.mrb[0].mxu0
      %v921 = vadd.f32 %v697, %v920
      %v922 = vpop.f32.mrb[0].mxu0
      %923 = vdwg.mxu0
      %v924 = vtanh.pop %v766
      %v925 = vtanh.pop %v771
      %v926 = vtanh.pop %v776
      %v927 = vtanh.pop %v781
      %v928 = vtanh.pop %v786
      %v929 = vtanh.pop %v791
      %v930 = vtanh.pop %v796
      %v931 = vtanh.pop %v801
      %v932 = vtanh.pop %v806
      %v933 = vtanh.pop %v811
      %v934 = vtanh.pop %v816
      %v935 = vtanh.pop %v821
      %v936 = vtanh.pop %v826
      %v937 = vtanh.pop %v831
      %v938 = vtanh.pop %v836
      %v939 = vtanh.pop %v841
      %v940 = vtanh.pop %v846
      %v941 = vtanh.pop %v851
      %v942 = vtanh.pop %v856
      %v943 = vtanh.pop %v861
      %v944 = vtanh.pop %v866
      %v945 = vtanh.pop %v871
      %v946 = vtanh.pop %v876
      %v947 = vtanh.pop %v881
      %v948 = vtanh.pop %v886
      %v949 = vtanh.pop %v891
      %v950 = vtanh.pop %v896
      %v951 = vtanh.pop %v901
      %v952 = vtanh.pop %v906
      %v953 = vtanh.pop %v911
      %v954 = vtanh.pop %v916
      %v955 = vtanh.pop %v921
      %v956 = vtanh.pop %v924
      %v957 = vtanh.pop %v925
      %v958 = vtanh.pop %v926
      %v959 = vtanh.pop %v927
      %v960 = vtanh.pop %v928
      %v961 = vtanh.pop %v929
      %v962 = vtanh.pop %v930
      %v963 = vtanh.pop %v931
      %v964 = vtanh.pop %v932
      %v965 = vtanh.pop %v933
      %v966 = vtanh.pop %v934
      %v967 = vtanh.pop %v935
      %v968 = vtanh.pop %v936
      %v969 = vtanh.pop %v937
      %v970 = vtanh.pop %v938
      %v971 = vtanh.pop %v939
      %v972 = vtanh.pop %v940
      %v973 = vtanh.pop %v941
      %v974 = vtanh.pop %v942
      %v975 = vtanh.pop %v943
      %v976 = vtanh.pop %v944
      %v977 = vtanh.pop %v945
      %v978 = vtanh.pop %v946
      %v979 = vtanh.pop %v947
      %v980 = vtanh.pop %v948
      %v981 = vtanh.pop %v949
      %v982 = vtanh.pop %v950
      %v983 = vtanh.pop %v951
      %v984 = vtanh.pop %v952
      %v985 = vtanh.pop %v953
      %v986 = vtanh.pop %v954
      %v987 = vtanh.pop %v955
      %s988 = scalar_lea.vmem %s3, 128
      %v989 = vld [vmem:[%s988] sm:$0xff]
      %v990 = vld [vmem:[%s988 + $0x8] sm:$0xff]
      %v991 = vld [vmem:[%s988 + $0x10] sm:$0xff]
      %v992 = vld [vmem:[%s988 + $0x18] sm:$0xff]
      %v993 = vld [vmem:[%s988 + $0x20] sm:$0xff]
      %v994 = vld [vmem:[%s988 + $0x28] sm:$0xff]
      %v995 = vld [vmem:[%s988 + $0x30] sm:$0xff]
      %v996 = vld [vmem:[%s988 + $0x38] sm:$0xff]
      %v997 = vld [vmem:[%s988 + $0x40] sm:$0xff]
      %v998 = vld [vmem:[%s988 + $0x48] sm:$0xff]
      %v999 = vld [vmem:[%s988 + $0x50] sm:$0xff]
      %v1000 = vld [vmem:[%s988 + $0x58] sm:$0xff]
      %v1001 = vld [vmem:[%s988 + $0x60] sm:$0xff]
      %v1002 = vld [vmem:[%s988 + $0x68] sm:$0xff]
      %v1003 = vld [vmem:[%s988 + $0x70] sm:$0xff]
      %v1004 = vld [vmem:[%s988 + $0x78] sm:$0xff]
      %s1005 = scalar_lea.vmem %s4, 1
      %v1006 = vld [vmem:[%s1005] sm:$0x1]
      %v1008 = vlaneseq
      %v1009 = vshrl.u32 %v1008, 7
      %v1010 = vsub.s32 0, %v1009
      %v1011 = vrot.slane %v1006, %v1010
      %1013 = vmatprep.subr.mxu0 0.0
      %1014 = vmatpush1.msra.mxu0 %v989
      %1015 = vmatprep.subr.mxu0 0.0
      %1016 = vmatpush1.msra.mxu0 %v990
      %1017 = vmatprep.subr.mxu0 0.0
      %1018 = vmatpush1.msra.mxu0 %v991
      %1019 = vmatprep.subr.mxu0 0.0
      %1020 = vmatpush1.msra.mxu0 %v992
      %1021 = vmatprep.subr.mxu0 0.0
      %1022 = vmatpush1.msra.mxu0 %v993
      %1023 = vmatprep.subr.mxu0 0.0
      %1024 = vmatpush1.msra.mxu0 %v994
      %1025 = vmatprep.subr.mxu0 0.0
      %1026 = vmatpush1.msra.mxu0 %v995
      %1027 = vmatprep.subr.mxu0 0.0
      %1028 = vmatpush1.msra.mxu0 %v996
      %1029 = vmatprep.subr.mxu0 0.0
      %1030 = vmatpush1.msra.mxu0 %v997
      %1031 = vmatprep.subr.mxu0 0.0
      %1032 = vmatpush1.msra.mxu0 %v998
      %1033 = vmatprep.subr.mxu0 0.0
      %1034 = vmatpush1.msra.mxu0 %v999
      %1035 = vmatprep.subr.mxu0 0.0
      %1036 = vmatpush1.msra.mxu0 %v1000
      %1037 = vmatprep.subr.mxu0 0.0
      %1038 = vmatpush1.msra.mxu0 %v1001
      %1039 = vmatprep.subr.mxu0 0.0
      %1040 = vmatpush1.msra.mxu0 %v1002
      %1041 = vmatprep.subr.mxu0 0.0
      %1042 = vmatpush1.msra.mxu0 %v1003
      %1043 = vmatprep.subr.mxu0 0.0
      %1044 = vmatpush1.msra.mxu0 %v1004
      %1045 = vmatprep.subr.mxu0 0.0
      %1046 = vmatpush1.msra.mxu0 0.0
      %1047 = vmatprep.subr.mxu0 0.0
      %1048 = vmatpush1.msra.mxu0 0.0
      %1049 = vmatprep.subr.mxu0 0.0
      %1050 = vmatpush1.msra.mxu0 0.0
      %1051 = vmatprep.subr.mxu0 0.0
      %1052 = vmatpush1.msra.mxu0 0.0
      %1053 = vmatprep.subr.mxu0 0.0
      %1054 = vmatpush1.msra.mxu0 0.0
      %1055 = vmatprep.subr.mxu0 0.0
      %1056 = vmatpush1.msra.mxu0 0.0
      %1057 = vmatprep.subr.mxu0 0.0
      %1058 = vmatpush1.msra.mxu0 0.0
      %1059 = vmatprep.subr.mxu0 0.0
      %1060 = vmatpush1.msra.mxu0 0.0
      %1061 = vmatprep.subr.mxu0 0.0
      %1062 = vmatpush1.msra.mxu0 0.0
      %1063 = vmatprep.subr.mxu0 0.0
      %1064 = vmatpush1.msra.mxu0 0.0
      %1065 = vmatprep.subr.mxu0 0.0
      %1066 = vmatpush1.msra.mxu0 0.0
      %1067 = vmatprep.subr.mxu0 0.0
      %1068 = vmatpush1.msra.mxu0 0.0
      %1069 = vmatprep.subr.mxu0 0.0
      %1070 = vmatpush1.msra.mxu0 0.0
      %1071 = vmatprep.subr.mxu0 0.0
      %1072 = vmatpush1.msra.mxu0 0.0
      %1073 = vmatprep.subr.mxu0 0.0
      %1074 = vmatpush1.msra.mxu0 0.0
      %1075 = vmatprep.subr.mxu0 0.0
      %1076 = vmatpush1.msra.mxu0 0.0
      %1077 = vmatprep.mubr.f32.mxu0 0.0
      %1078 = vmatmul.mubr.f32.gmra.mrb[0].mxu0 %v956
      %v1079 = vpop.f32.mrb[0].mxu0
      %v1080 = vadd.f32 %v1011, %v1079
      %v1081 = vpop.f32.mrb[0].mxu0
      %1082 = vmatprep.mubr.f32.mxu0 0.0
      %1083 = vmatmul.mubr.f32.gmra.mrb[0].mxu0 %v957
      %v1084 = vpop.f32.mrb[0].mxu0
      %v1085 = vadd.f32 %v1011, %v1084
      %v1086 = vpop.f32.mrb[0].mxu0
      %1087 = vmatprep.mubr.f32.mxu0 0.0
      %1088 = vmatmul.mubr.f32.gmra.mrb[0].mxu0 %v958
      %v1089 = vpop.f32.mrb[0].mxu0
      %v1090 = vadd.f32 %v1011, %v1089
      %v1091 = vpop.f32.mrb[0].mxu0
      %1092 = vmatprep.mubr.f32.mxu0 0.0
      %1093 = vmatmul.mubr.f32.gmra.mrb[0].mxu0 %v959
      %v1094 = vpop.f32.mrb[0].mxu0
      %v1095 = vadd.f32 %v1011, %v1094
      %v1096 = vpop.f32.mrb[0].mxu0
      %1097 = vmatprep.mubr.f32.mxu0 0.0
      %1098 = vmatmul.mubr.f32.gmra.mrb[0].mxu0 %v960
      %v1099 = vpop.f32.mrb[0].mxu0
      %v1100 = vadd.f32 %v1011, %v1099
      %v1101 = vpop.f32.mrb[0].mxu0
      %1102 = vmatprep.mubr.f32.mxu0 0.0
      %1103 = vmatmul.mubr.f32.gmra.mrb[0].mxu0 %v961
      %v1104 = vpop.f32.mrb[0].mxu0
      %v1105 = vadd.f32 %v1011, %v1104
      %v1106 = vpop.f32.mrb[0].mxu0
      %1107 = vmatprep.mubr.f32.mxu0 0.0
      %1108 = vmatmul.mubr.f32.gmra.mrb[0].mxu0 %v962
      %v1109 = vpop.f32.mrb[0].mxu0
      %v1110 = vadd.f32 %v1011, %v1109
      %v1111 = vpop.f32.mrb[0].mxu0
      %1112 = vmatprep.mubr.f32.mxu0 0.0
      %1113 = vmatmul.mubr.f32.gmra.mrb[0].mxu0 %v963
      %v1114 = vpop.f32.mrb[0].mxu0
      %v1115 = vadd.f32 %v1011, %v1114
      %v1116 = vpop.f32.mrb[0].mxu0
      %1117 = vmatprep.mubr.f32.mxu0 0.0
      %1118 = vmatmul.mubr.f32.gmra.mrb[0].mxu0 %v964
      %v1119 = vpop.f32.mrb[0].mxu0
      %v1120 = vadd.f32 %v1011, %v1119
      %v1121 = vpop.f32.mrb[0].mxu0
      %1122 = vmatprep.mubr.f32.mxu0 0.0
      %1123 = vmatmul.mubr.f32.gmra.mrb[0].mxu0 %v965
      %v1124 = vpop.f32.mrb[0].mxu0
      %v1125 = vadd.f32 %v1011, %v1124
      %v1126 = vpop.f32.mrb[0].mxu0
      %1127 = vmatprep.mubr.f32.mxu0 0.0
      %1128 = vmatmul.mubr.f32.gmra.mrb[0].mxu0 %v966
      %v1129 = vpop.f32.mrb[0].mxu0
      %v1130 = vadd.f32 %v1011, %v1129
      %v1131 = vpop.f32.mrb[0].mxu0
      %1132 = vmatprep.mubr.f32.mxu0 0.0
      %1133 = vmatmul.mubr.f32.gmra.mrb[0].mxu0 %v967
      %v1134 = vpop.f32.mrb[0].mxu0
      %v1135 = vadd.f32 %v1011, %v1134
      %v1136 = vpop.f32.mrb[0].mxu0
      %1137 = vmatprep.mubr.f32.mxu0 0.0
      %1138 = vmatmul.mubr.f32.gmra.mrb[0].mxu0 %v968
      %v1139 = vpop.f32.mrb[0].mxu0
      %v1140 = vadd.f32 %v1011, %v1139
      %v1141 = vpop.f32.mrb[0].mxu0
      %1142 = vmatprep.mubr.f32.mxu0 0.0
      %1143 = vmatmul.mubr.f32.gmra.mrb[0].mxu0 %v969
      %v1144 = vpop.f32.mrb[0].mxu0
      %v1145 = vadd.f32 %v1011, %v1144
      %v1146 = vpop.f32.mrb[0].mxu0
      %1147 = vmatprep.mubr.f32.mxu0 0.0
      %1148 = vmatmul.mubr.f32.gmra.mrb[0].mxu0 %v970
      %v1149 = vpop.f32.mrb[0].mxu0
      %v1150 = vadd.f32 %v1011, %v1149
      %v1151 = vpop.f32.mrb[0].mxu0
      %1152 = vmatprep.mubr.f32.mxu0 0.0
      %1153 = vmatmul.mubr.f32.gmra.mrb[0].mxu0 %v971
      %v1154 = vpop.f32.mrb[0].mxu0
      %v1155 = vadd.f32 %v1011, %v1154
      %v1156 = vpop.f32.mrb[0].mxu0
      %1157 = vmatprep.mubr.f32.mxu0 0.0
      %1158 = vmatmul.mubr.f32.gmra.mrb[0].mxu0 %v972
      %v1159 = vpop.f32.mrb[0].mxu0
      %v1160 = vadd.f32 %v1011, %v1159
      %v1161 = vpop.f32.mrb[0].mxu0
      %1162 = vmatprep.mubr.f32.mxu0 0.0
      %1163 = vmatmul.mubr.f32.gmra.mrb[0].mxu0 %v973
      %v1164 = vpop.f32.mrb[0].mxu0
      %v1165 = vadd.f32 %v1011, %v1164
      %v1166 = vpop.f32.mrb[0].mxu0
      %1167 = vmatprep.mubr.f32.mxu0 0.0
      %1168 = vmatmul.mubr.f32.gmra.mrb[0].mxu0 %v974
      %v1169 = vpop.f32.mrb[0].mxu0
      %v1170 = vadd.f32 %v1011, %v1169
      %v1171 = vpop.f32.mrb[0].mxu0
      %1172 = vmatprep.mubr.f32.mxu0 0.0
      %1173 = vmatmul.mubr.f32.gmra.mrb[0].mxu0 %v975
      %v1174 = vpop.f32.mrb[0].mxu0
      %v1175 = vadd.f32 %v1011, %v1174
      %v1176 = vpop.f32.mrb[0].mxu0
      %1177 = vmatprep.mubr.f32.mxu0 0.0
      %1178 = vmatmul.mubr.f32.gmra.mrb[0].mxu0 %v976
      %v1179 = vpop.f32.mrb[0].mxu0
      %v1180 = vadd.f32 %v1011, %v1179
      %v1181 = vpop.f32.mrb[0].mxu0
      %1182 = vmatprep.mubr.f32.mxu0 0.0
      %1183 = vmatmul.mubr.f32.gmra.mrb[0].mxu0 %v977
      %v1184 = vpop.f32.mrb[0].mxu0
      %v1185 = vadd.f32 %v1011, %v1184
      %v1186 = vpop.f32.mrb[0].mxu0
      %1187 = vmatprep.mubr.f32.mxu0 0.0
      %1188 = vmatmul.mubr.f32.gmra.mrb[0].mxu0 %v978
      %v1189 = vpop.f32.mrb[0].mxu0
      %v1190 = vadd.f32 %v1011, %v1189
      %v1191 = vpop.f32.mrb[0].mxu0
      %1192 = vmatprep.mubr.f32.mxu0 0.0
      %1193 = vmatmul.mubr.f32.gmra.mrb[0].mxu0 %v979
      %v1194 = vpop.f32.mrb[0].mxu0
      %v1195 = vadd.f32 %v1011, %v1194
      %v1196 = vpop.f32.mrb[0].mxu0
      %1197 = vmatprep.mubr.f32.mxu0 0.0
      %1198 = vmatmul.mubr.f32.gmra.mrb[0].mxu0 %v980
      %v1199 = vpop.f32.mrb[0].mxu0
      %v1200 = vadd.f32 %v1011, %v1199
      %v1201 = vpop.f32.mrb[0].mxu0
      %1202 = vmatprep.mubr.f32.mxu0 0.0
      %1203 = vmatmul.mubr.f32.gmra.mrb[0].mxu0 %v981
      %v1204 = vpop.f32.mrb[0].mxu0
      %v1205 = vadd.f32 %v1011, %v1204
      %v1206 = vpop.f32.mrb[0].mxu0
      %1207 = vmatprep.mubr.f32.mxu0 0.0
      %1208 = vmatmul.mubr.f32.gmra.mrb[0].mxu0 %v982
      %v1209 = vpop.f32.mrb[0].mxu0
      %v1210 = vadd.f32 %v1011, %v1209
      %v1211 = vpop.f32.mrb[0].mxu0
      %1212 = vmatprep.mubr.f32.mxu0 0.0
      %1213 = vmatmul.mubr.f32.gmra.mrb[0].mxu0 %v983
      %v1214 = vpop.f32.mrb[0].mxu0
      %v1215 = vadd.f32 %v1011, %v1214
      %v1216 = vpop.f32.mrb[0].mxu0
      %1217 = vmatprep.mubr.f32.mxu0 0.0
      %1218 = vmatmul.mubr.f32.gmra.mrb[0].mxu0 %v984
      %v1219 = vpop.f32.mrb[0].mxu0
      %v1220 = vadd.f32 %v1011, %v1219
      %v1221 = vpop.f32.mrb[0].mxu0
      %1222 = vmatprep.mubr.f32.mxu0 0.0
      %1223 = vmatmul.mubr.f32.gmra.mrb[0].mxu0 %v985
      %v1224 = vpop.f32.mrb[0].mxu0
      %v1225 = vadd.f32 %v1011, %v1224
      %v1226 = vpop.f32.mrb[0].mxu0
      %1227 = vmatprep.mubr.f32.mxu0 0.0
      %1228 = vmatmul.mubr.f32.gmra.mrb[0].mxu0 %v986
      %v1229 = vpop.f32.mrb[0].mxu0
      %v1230 = vadd.f32 %v1011, %v1229
      %v1231 = vpop.f32.mrb[0].mxu0
      %1232 = vmatprep.mubr.f32.mxu0 0.0
      %1233 = vmatmul.mubr.f32.gmra.mrb[0].mxu0 %v987
      %v1234 = vpop.f32.mrb[0].mxu0
      %v1235 = vadd.f32 %v1011, %v1234
      %v1236 = vpop.f32.mrb[0].mxu0
      %1237 = vdwg.mxu0
      %v1238 = vtanh.pop %v1080
      %v1239 = vtanh.pop %v1085
      %v1240 = vtanh.pop %v1090
      %v1241 = vtanh.pop %v1095
      %v1242 = vtanh.pop %v1100
      %v1243 = vtanh.pop %v1105
      %v1244 = vtanh.pop %v1110
      %v1245 = vtanh.pop %v1115
      %v1246 = vtanh.pop %v1120
      %v1247 = vtanh.pop %v1125
      %v1248 = vtanh.pop %v1130
      %v1249 = vtanh.pop %v1135
      %v1250 = vtanh.pop %v1140
      %v1251 = vtanh.pop %v1145
      %v1252 = vtanh.pop %v1150
      %v1253 = vtanh.pop %v1155
      %v1254 = vtanh.pop %v1160
      %v1255 = vtanh.pop %v1165
      %v1256 = vtanh.pop %v1170
      %v1257 = vtanh.pop %v1175
      %v1258 = vtanh.pop %v1180
      %v1259 = vtanh.pop %v1185
      %v1260 = vtanh.pop %v1190
      %v1261 = vtanh.pop %v1195
      %v1262 = vtanh.pop %v1200
      %v1263 = vtanh.pop %v1205
      %v1264 = vtanh.pop %v1210
      %v1265 = vtanh.pop %v1215
      %v1266 = vtanh.pop %v1220
      %v1267 = vtanh.pop %v1225
      %v1268 = vtanh.pop %v1230
      %v1269 = vtanh.pop %v1235
      %v1270 = vtanh.pop %v1238
      %v1271 = vtanh.pop %v1239
      %v1272 = vtanh.pop %v1240
      %v1273 = vtanh.pop %v1241
      %v1274 = vtanh.pop %v1242
      %v1275 = vtanh.pop %v1243
      %v1276 = vtanh.pop %v1244
      %v1277 = vtanh.pop %v1245
      %v1278 = vtanh.pop %v1246
      %v1279 = vtanh.pop %v1247
      %v1280 = vtanh.pop %v1248
      %v1281 = vtanh.pop %v1249
      %v1282 = vtanh.pop %v1250
      %v1283 = vtanh.pop %v1251
      %v1284 = vtanh.pop %v1252
      %v1285 = vtanh.pop %v1253
      %v1286 = vtanh.pop %v1254
      %v1287 = vtanh.pop %v1255
      %v1288 = vtanh.pop %v1256
      %v1289 = vtanh.pop %v1257
      %v1290 = vtanh.pop %v1258
      %v1291 = vtanh.pop %v1259
      %v1292 = vtanh.pop %v1260
      %v1293 = vtanh.pop %v1261
      %v1294 = vtanh.pop %v1262
      %v1295 = vtanh.pop %v1263
      %v1296 = vtanh.pop %v1264
      %v1297 = vtanh.pop %v1265
      %v1298 = vtanh.pop %v1266
      %v1299 = vtanh.pop %v1267
      %v1300 = vtanh.pop %v1268
      %v1301 = vtanh.pop %v1269
      %v1302 = vld [vmem:[%s5] sm:$0xff]
      %v1303 = vld [vmem:[%s5 + $0x8] sm:$0xff]
      %v1304 = vld [vmem:[%s5 + $0x10] sm:$0xff]
      %v1305 = vld [vmem:[%s5 + $0x18] sm:$0xff]
      %v1306 = vld [vmem:[%s5 + $0x20] sm:$0xff]
      %v1307 = vld [vmem:[%s5 + $0x28] sm:$0xff]
      %v1308 = vld [vmem:[%s5 + $0x30] sm:$0xff]
      %v1309 = vld [vmem:[%s5 + $0x38] sm:$0xff]
      %v1310 = vld [vmem:[%s5 + $0x40] sm:$0xff]
      %v1311 = vld [vmem:[%s5 + $0x48] sm:$0xff]
      %v1312 = vld [vmem:[%s5 + $0x50] sm:$0xff]
      %v1313 = vld [vmem:[%s5 + $0x58] sm:$0xff]
      %v1314 = vld [vmem:[%s5 + $0x60] sm:$0xff]
      %v1315 = vld [vmem:[%s5 + $0x68] sm:$0xff]
      %v1316 = vld [vmem:[%s5 + $0x70] sm:$0xff]
      %v1317 = vld [vmem:[%s5 + $0x78] sm:$0xff]
      %v1318 = vld [vmem:[%s6] sm:$0x1]
      %v1320 = vlaneseq
      %v1321 = vshrl.u32 %v1320, 7
      %v1322 = vsub.s32 0, %v1321
      %v1323 = vrot.slane %v1318, %v1322
      %1325 = vmatprep.subr.mxu0 0.0
      %1326 = vmatpush1.msra.mxu0 %v1302
      %1327 = vmatprep.subr.mxu0 0.0
      %1328 = vmatpush1.msra.mxu0 %v1303
      %1329 = vmatprep.subr.mxu0 0.0
      %1330 = vmatpush1.msra.mxu0 %v1304
      %1331 = vmatprep.subr.mxu0 0.0
      %1332 = vmatpush1.msra.mxu0 %v1305
      %1333 = vmatprep.subr.mxu0 0.0
      %1334 = vmatpush1.msra.mxu0 %v1306
      %1335 = vmatprep.subr.mxu0 0.0
      %1336 = vmatpush1.msra.mxu0 %v1307
      %1337 = vmatprep.subr.mxu0 0.0
      %1338 = vmatpush1.msra.mxu0 %v1308
      %1339 = vmatprep.subr.mxu0 0.0
      %1340 = vmatpush1.msra.mxu0 %v1309
      %1341 = vmatprep.subr.mxu0 0.0
      %1342 = vmatpush1.msra.mxu0 %v1310
      %1343 = vmatprep.subr.mxu0 0.0
      %1344 = vmatpush1.msra.mxu0 %v1311
      %1345 = vmatprep.subr.mxu0 0.0
      %1346 = vmatpush1.msra.mxu0 %v1312
      %1347 = vmatprep.subr.mxu0 0.0
      %1348 = vmatpush1.msra.mxu0 %v1313
      %1349 = vmatprep.subr.mxu0 0.0
      %1350 = vmatpush1.msra.mxu0 %v1314
      %1351 = vmatprep.subr.mxu0 0.0
      %1352 = vmatpush1.msra.mxu0 %v1315
      %1353 = vmatprep.subr.mxu0 0.0
      %1354 = vmatpush1.msra.mxu0 %v1316
      %1355 = vmatprep.subr.mxu0 0.0
      %1356 = vmatpush1.msra.mxu0 %v1317
      %1357 = vmatprep.subr.mxu0 0.0
      %1358 = vmatpush1.msra.mxu0 0.0
      %1359 = vmatprep.subr.mxu0 0.0
      %1360 = vmatpush1.msra.mxu0 0.0
      %1361 = vmatprep.subr.mxu0 0.0
      %1362 = vmatpush1.msra.mxu0 0.0
      %1363 = vmatprep.subr.mxu0 0.0
      %1364 = vmatpush1.msra.mxu0 0.0
      %1365 = vmatprep.subr.mxu0 0.0
      %1366 = vmatpush1.msra.mxu0 0.0
      %1367 = vmatprep.subr.mxu0 0.0
      %1368 = vmatpush1.msra.mxu0 0.0
      %1369 = vmatprep.subr.mxu0 0.0
      %1370 = vmatpush1.msra.mxu0 0.0
      %1371 = vmatprep.subr.mxu0 0.0
      %1372 = vmatpush1.msra.mxu0 0.0
      %1373 = vmatprep.subr.mxu0 0.0
      %1374 = vmatpush1.msra.mxu0 0.0
      %1375 = vmatprep.subr.mxu0 0.0
      %1376 = vmatpush1.msra.mxu0 0.0
      %1377 = vmatprep.subr.mxu0 0.0
      %1378 = vmatpush1.msra.mxu0 0.0
      %1379 = vmatprep.subr.mxu0 0.0
      %1380 = vmatpush1.msra.mxu0 0.0
      %1381 = vmatprep.subr.mxu0 0.0
      %1382 = vmatpush1.msra.mxu0 0.0
      %1383 = vmatprep.subr.mxu0 0.0
      %1384 = vmatpush1.msra.mxu0 0.0
      %1385 = vmatprep.subr.mxu0 0.0
      %1386 = vmatpush1.msra.mxu0 0.0
      %1387 = vmatprep.subr.mxu0 0.0
      %1388 = vmatpush1.msra.mxu0 0.0
      %1389 = vmatprep.mubr.f32.mxu0 0.0
      %1390 = vmatmul.mubr.f32.gmra.mrb[0].mxu0 %v1270
      %v1391 = vpop.f32.mrb[0].mxu0
      %v1392 = vadd.f32 %v1323, %v1391
      %v1393 = vpop.f32.mrb[0].mxu0
      %1394 = vmatprep.mubr.f32.mxu0 0.0
      %1395 = vmatmul.mubr.f32.gmra.mrb[0].mxu0 %v1271
      %v1396 = vpop.f32.mrb[0].mxu0
      %v1397 = vadd.f32 %v1323, %v1396
      %v1398 = vpop.f32.mrb[0].mxu0
      %1399 = vmatprep.mubr.f32.mxu0 0.0
      %1400 = vmatmul.mubr.f32.gmra.mrb[0].mxu0 %v1272
      %v1401 = vpop.f32.mrb[0].mxu0
      %v1402 = vadd.f32 %v1323, %v1401
      %v1403 = vpop.f32.mrb[0].mxu0
      %1404 = vmatprep.mubr.f32.mxu0 0.0
      %1405 = vmatmul.mubr.f32.gmra.mrb[0].mxu0 %v1273
      %v1406 = vpop.f32.mrb[0].mxu0
      %v1407 = vadd.f32 %v1323, %v1406
      %v1408 = vpop.f32.mrb[0].mxu0
      %1409 = vmatprep.mubr.f32.mxu0 0.0
      %1410 = vmatmul.mubr.f32.gmra.mrb[0].mxu0 %v1274
      %v1411 = vpop.f32.mrb[0].mxu0
      %v1412 = vadd.f32 %v1323, %v1411
      %v1413 = vpop.f32.mrb[0].mxu0
      %1414 = vmatprep.mubr.f32.mxu0 0.0
      %1415 = vmatmul.mubr.f32.gmra.mrb[0].mxu0 %v1275
      %v1416 = vpop.f32.mrb[0].mxu0
      %v1417 = vadd.f32 %v1323, %v1416
      %v1418 = vpop.f32.mrb[0].mxu0
      %1419 = vmatprep.mubr.f32.mxu0 0.0
      %1420 = vmatmul.mubr.f32.gmra.mrb[0].mxu0 %v1276
      %v1421 = vpop.f32.mrb[0].mxu0
      %v1422 = vadd.f32 %v1323, %v1421
      %v1423 = vpop.f32.mrb[0].mxu0
      %1424 = vmatprep.mubr.f32.mxu0 0.0
      %1425 = vmatmul.mubr.f32.gmra.mrb[0].mxu0 %v1277
      %v1426 = vpop.f32.mrb[0].mxu0
      %v1427 = vadd.f32 %v1323, %v1426
      %v1428 = vpop.f32.mrb[0].mxu0
      %1429 = vmatprep.mubr.f32.mxu0 0.0
      %1430 = vmatmul.mubr.f32.gmra.mrb[0].mxu0 %v1278
      %v1431 = vpop.f32.mrb[0].mxu0
      %v1432 = vadd.f32 %v1323, %v1431
      %v1433 = vpop.f32.mrb[0].mxu0
      %1434 = vmatprep.mubr.f32.mxu0 0.0
      %1435 = vmatmul.mubr.f32.gmra.mrb[0].mxu0 %v1279
      %v1436 = vpop.f32.mrb[0].mxu0
      %v1437 = vadd.f32 %v1323, %v1436
      %v1438 = vpop.f32.mrb[0].mxu0
      %1439 = vmatprep.mubr.f32.mxu0 0.0
      %1440 = vmatmul.mubr.f32.gmra.mrb[0].mxu0 %v1280
      %v1441 = vpop.f32.mrb[0].mxu0
      %v1442 = vadd.f32 %v1323, %v1441
      %v1443 = vpop.f32.mrb[0].mxu0
      %1444 = vmatprep.mubr.f32.mxu0 0.0
      %1445 = vmatmul.mubr.f32.gmra.mrb[0].mxu0 %v1281
      %v1446 = vpop.f32.mrb[0].mxu0
      %v1447 = vadd.f32 %v1323, %v1446
      %v1448 = vpop.f32.mrb[0].mxu0
      %1449 = vmatprep.mubr.f32.mxu0 0.0
      %1450 = vmatmul.mubr.f32.gmra.mrb[0].mxu0 %v1282
      %v1451 = vpop.f32.mrb[0].mxu0
      %v1452 = vadd.f32 %v1323, %v1451
      %v1453 = vpop.f32.mrb[0].mxu0
      %1454 = vmatprep.mubr.f32.mxu0 0.0
      %1455 = vmatmul.mubr.f32.gmra.mrb[0].mxu0 %v1283
      %v1456 = vpop.f32.mrb[0].mxu0
      %v1457 = vadd.f32 %v1323, %v1456
      %v1458 = vpop.f32.mrb[0].mxu0
      %1459 = vmatprep.mubr.f32.mxu0 0.0
      %1460 = vmatmul.mubr.f32.gmra.mrb[0].mxu0 %v1284
      %v1461 = vpop.f32.mrb[0].mxu0
      %v1462 = vadd.f32 %v1323, %v1461
      %v1463 = vpop.f32.mrb[0].mxu0
      %1464 = vmatprep.mubr.f32.mxu0 0.0
      %1465 = vmatmul.mubr.f32.gmra.mrb[0].mxu0 %v1285
      %v1466 = vpop.f32.mrb[0].mxu0
      %v1467 = vadd.f32 %v1323, %v1466
      %v1468 = vpop.f32.mrb[0].mxu0
      %1469 = vmatprep.mubr.f32.mxu0 0.0
      %1470 = vmatmul.mubr.f32.gmra.mrb[0].mxu0 %v1286
      %v1471 = vpop.f32.mrb[0].mxu0
      %v1472 = vadd.f32 %v1323, %v1471
      %v1473 = vpop.f32.mrb[0].mxu0
      %1474 = vmatprep.mubr.f32.mxu0 0.0
      %1475 = vmatmul.mubr.f32.gmra.mrb[0].mxu0 %v1287
      %v1476 = vpop.f32.mrb[0].mxu0
      %v1477 = vadd.f32 %v1323, %v1476
      %v1478 = vpop.f32.mrb[0].mxu0
      %1479 = vmatprep.mubr.f32.mxu0 0.0
      %1480 = vmatmul.mubr.f32.gmra.mrb[0].mxu0 %v1288
      %v1481 = vpop.f32.mrb[0].mxu0
      %v1482 = vadd.f32 %v1323, %v1481
      %v1483 = vpop.f32.mrb[0].mxu0
      %1484 = vmatprep.mubr.f32.mxu0 0.0
      %1485 = vmatmul.mubr.f32.gmra.mrb[0].mxu0 %v1289
      %v1486 = vpop.f32.mrb[0].mxu0
      %v1487 = vadd.f32 %v1323, %v1486
      %v1488 = vpop.f32.mrb[0].mxu0
      %1489 = vmatprep.mubr.f32.mxu0 0.0
      %1490 = vmatmul.mubr.f32.gmra.mrb[0].mxu0 %v1290
      %v1491 = vpop.f32.mrb[0].mxu0
      %v1492 = vadd.f32 %v1323, %v1491
      %v1493 = vpop.f32.mrb[0].mxu0
      %1494 = vmatprep.mubr.f32.mxu0 0.0
      %1495 = vmatmul.mubr.f32.gmra.mrb[0].mxu0 %v1291
      %v1496 = vpop.f32.mrb[0].mxu0
      %v1497 = vadd.f32 %v1323, %v1496
      %v1498 = vpop.f32.mrb[0].mxu0
      %1499 = vmatprep.mubr.f32.mxu0 0.0
      %1500 = vmatmul.mubr.f32.gmra.mrb[0].mxu0 %v1292
      %v1501 = vpop.f32.mrb[0].mxu0
      %v1502 = vadd.f32 %v1323, %v1501
      %v1503 = vpop.f32.mrb[0].mxu0
      %1504 = vmatprep.mubr.f32.mxu0 0.0
      %1505 = vmatmul.mubr.f32.gmra.mrb[0].mxu0 %v1293
      %v1506 = vpop.f32.mrb[0].mxu0
      %v1507 = vadd.f32 %v1323, %v1506
      %v1508 = vpop.f32.mrb[0].mxu0
      %1509 = vmatprep.mubr.f32.mxu0 0.0
      %1510 = vmatmul.mubr.f32.gmra.mrb[0].mxu0 %v1294
      %v1511 = vpop.f32.mrb[0].mxu0
      %v1512 = vadd.f32 %v1323, %v1511
      %v1513 = vpop.f32.mrb[0].mxu0
      %1514 = vmatprep.mubr.f32.mxu0 0.0
      %1515 = vmatmul.mubr.f32.gmra.mrb[0].mxu0 %v1295
      %v1516 = vpop.f32.mrb[0].mxu0
      %v1517 = vadd.f32 %v1323, %v1516
      %v1518 = vpop.f32.mrb[0].mxu0
      %1519 = vmatprep.mubr.f32.mxu0 0.0
      %1520 = vmatmul.mubr.f32.gmra.mrb[0].mxu0 %v1296
      %v1521 = vpop.f32.mrb[0].mxu0
      %v1522 = vadd.f32 %v1323, %v1521
      %v1523 = vpop.f32.mrb[0].mxu0
      %1524 = vmatprep.mubr.f32.mxu0 0.0
      %1525 = vmatmul.mubr.f32.gmra.mrb[0].mxu0 %v1297
      %v1526 = vpop.f32.mrb[0].mxu0
      %v1527 = vadd.f32 %v1323, %v1526
      %v1528 = vpop.f32.mrb[0].mxu0
      %1529 = vmatprep.mubr.f32.mxu0 0.0
      %1530 = vmatmul.mubr.f32.gmra.mrb[0].mxu0 %v1298
      %v1531 = vpop.f32.mrb[0].mxu0
      %v1532 = vadd.f32 %v1323, %v1531
      %v1533 = vpop.f32.mrb[0].mxu0
      %1534 = vmatprep.mubr.f32.mxu0 0.0
      %1535 = vmatmul.mubr.f32.gmra.mrb[0].mxu0 %v1299
      %v1536 = vpop.f32.mrb[0].mxu0
      %v1537 = vadd.f32 %v1323, %v1536
      %v1538 = vpop.f32.mrb[0].mxu0
      %1539 = vmatprep.mubr.f32.mxu0 0.0
      %1540 = vmatmul.mubr.f32.gmra.mrb[0].mxu0 %v1300
      %v1541 = vpop.f32.mrb[0].mxu0
      %v1542 = vadd.f32 %v1323, %v1541
      %v1543 = vpop.f32.mrb[0].mxu0
      %1544 = vmatprep.mubr.f32.mxu0 0.0
      %1545 = vmatmul.mubr.f32.gmra.mrb[0].mxu0 %v1301
      %v1546 = vpop.f32.mrb[0].mxu0
      %v1547 = vadd.f32 %v1323, %v1546
      %v1548 = vpop.f32.mrb[0].mxu0
      %1549 = vdwg.mxu0
      %vm1550 = vcmask 31744
      %1551 = vst.msk [vmem:[%s280] sm:$0xff] %vm1550, %v1392
      %1552 = vst.msk [vmem:[%s280 + $0x8] sm:$0xff] %vm1550, %v1397
      %1553 = vst.msk [vmem:[%s280 + $0x10] sm:$0xff] %vm1550, %v1402
      %1554 = vst.msk [vmem:[%s280 + $0x18] sm:$0xff] %vm1550, %v1407
      %1555 = vst.msk [vmem:[%s280 + $0x20] sm:$0xff] %vm1550, %v1412
      %1556 = vst.msk [vmem:[%s280 + $0x28] sm:$0xff] %vm1550, %v1417
      %1557 = vst.msk [vmem:[%s280 + $0x30] sm:$0xff] %vm1550, %v1422
      %1558 = vst.msk [vmem:[%s280 + $0x38] sm:$0xff] %vm1550, %v1427
      %1559 = vst.msk [vmem:[%s280 + $0x40] sm:$0xff] %vm1550, %v1432
      %1560 = vst.msk [vmem:[%s280 + $0x48] sm:$0xff] %vm1550, %v1437
      %1561 = vst.msk [vmem:[%s280 + $0x50] sm:$0xff] %vm1550, %v1442
      %1562 = vst.msk [vmem:[%s280 + $0x58] sm:$0xff] %vm1550, %v1447
      %1563 = vst.msk [vmem:[%s280 + $0x60] sm:$0xff] %vm1550, %v1452
      %1564 = vst.msk [vmem:[%s280 + $0x68] sm:$0xff] %vm1550, %v1457
      %1565 = vst.msk [vmem:[%s280 + $0x70] sm:$0xff] %vm1550, %v1462
      %1566 = vst.msk [vmem:[%s280 + $0x78] sm:$0xff] %vm1550, %v1467
      %1567 = vst.msk [vmem:[%s280 + $0x80] sm:$0xff] %vm1550, %v1472
      %1568 = vst.msk [vmem:[%s280 + $0x88] sm:$0xff] %vm1550, %v1477
      %1569 = vst.msk [vmem:[%s280 + $0x90] sm:$0xff] %vm1550, %v1482
      %1570 = vst.msk [vmem:[%s280 + $0x98] sm:$0xff] %vm1550, %v1487
      %1571 = vst.msk [vmem:[%s280 + $0xa0] sm:$0xff] %vm1550, %v1492
      %1572 = vst.msk [vmem:[%s280 + $0xa8] sm:$0xff] %vm1550, %v1497
      %1573 = vst.msk [vmem:[%s280 + $0xb0] sm:$0xff] %vm1550, %v1502
      %1574 = vst.msk [vmem:[%s280 + $0xb8] sm:$0xff] %vm1550, %v1507
      %1575 = vst.msk [vmem:[%s280 + $0xc0] sm:$0xff] %vm1550, %v1512
      %1576 = vst.msk [vmem:[%s280 + $0xc8] sm:$0xff] %vm1550, %v1517
      %1577 = vst.msk [vmem:[%s280 + $0xd0] sm:$0xff] %vm1550, %v1522
      %1578 = vst.msk [vmem:[%s280 + $0xd8] sm:$0xff] %vm1550, %v1527
      %1579 = vst.msk [vmem:[%s280 + $0xe0] sm:$0xff] %vm1550, %v1532
      %1580 = vst.msk [vmem:[%s280 + $0xe8] sm:$0xff] %vm1550, %v1537
      %1581 = vst.msk [vmem:[%s280 + $0xf0] sm:$0xff] %vm1550, %v1542
      %1582 = vst.msk [vmem:[%s280 + $0xf8] sm:$0xff] %vm1550, %v1547
      %s1583 = smul.u32 32, %s18
      %p1584 = scmp.lt.s32.totalorder %s1583, 63
      %s1585 = scalar_select %p1584, %s1583, 63
      %s1586 = smul.addr %s1585, 8
      %s1587 = scalar_lea.vmem %s7, %s1586
      // Predicated region
      $region49: #{tpu_custom_call.1} parent=47 // pred_check
        %p1588 = pneg %p188
      $region50: #{tpu_custom_call.1} parent=47 // pred_check_branch
        %1590 = sbr.rel (%p1588) target = $region52
      $region51: #{tpu_custom_call.1} parent=47 // pred_region
        %s1591 = smul.u32 32, %s18
      $region52: #{tpu_custom_call.1} parent=47 // pred_fallthru
        _
    $region48: #{tpu_custom_call.1} parent=5 // pred_fallthru
      _
    %p1592 = scmp.le.s32.totalorder 2, %s13
    // Predicated region
    $region53: #{tpu_custom_call.1} parent=5 // pred_check
      %p1593 = pneg %p1592
    $region54: #{tpu_custom_call.1} parent=5 // pred_check_branch
      %1595 = sbr.rel (%p1593) target = $region56
    $region55: #{tpu_custom_call.1} parent=5 // pred_region
      %s1596 = ssub.s32 %s13, 2
      // Predicated region
      $region57: #{tpu_custom_call.1} parent=55 // pred_check
        %p1597 = pneg %p194
      $region58: #{tpu_custom_call.1} parent=55 // pred_check_branch
        %1599 = sbr.rel (%p1597) target = $region60
      $region59: #{tpu_custom_call.1} parent=55 // pred_region
        %s1600 = smul.u32 32, %s19
        %p1601 = scmp.lt.s32.totalorder %s1600, 63
        %s1602 = scalar_select %p1601, %s1600, 63
        %s1603 = smul.addr %s1602, 8
        %s1604 = scalar_lea.vmem %s7, %s1603
      $region60: #{tpu_custom_call.1} parent=55 // pred_fallthru
        _
    $region56: #{tpu_custom_call.1} parent=5 // pred_fallthru
      _
  $region6: #{tpu_custom_call.1} parent=0 // loop_footer
    %s17 = sadd.s32 1, %s13
  $region7: #{tpu_custom_call.1} parent=0 // loop_footer_branch
    %12 = sbr.rel target = $region3
  $region8: #{tpu_custom_call.1} parent=0 // loop_exit
    _

// kernel: tpu_custom_call.1
$region0: #{tpu_custom_call.1}
  #allocation0 [shape = 'u32[]', space=smem, size = 0x4, offset = 0x4, fixed_abs, tag = 'smem constant byte address 0x4 - core index']
  #allocation1 [shape = 'u32[144,128]{1,0:T(1,128)}', space=vmem, size = 0x12000, scoped, tag = 'internal scratch']
  %s0 = inlined_call_operand.vmem [shape: f32[512,8], index: 0, kind: input, shape index: {}]
  %s1 = inlined_call_operand.vmem [shape: f32[8,128], index: 1, kind: input, shape index: {}]
  %s2 = inlined_call_operand.vmem [shape: f32[1,128], index: 2, kind: input, shape index: {}]
  %s3 = inlined_call_operand.vmem [shape: f32[2,128,128], index: 3, kind: input, shape index: {}]
  %s4 = inlined_call_operand.vmem [shape: f32[2,1,128], index: 4, kind: input, shape index: {}]
  %s5 = inlined_call_operand.vmem [shape: f32[128,4], index: 5, kind: input, shape index: {}]
  %s6 = inlined_call_operand.vmem [shape: f32[1,4], index: 6, kind: input, shape index: {}]
  %s7 = inlined_call_operand.vmem [shape: f32[512,4], index: 7, kind: output, shape index: {}]
  %s8 = sld [smem:[#allocation0]]
  $region61: #{tpu_custom_call.1} parent=0
    _
  %s10 = ssub.s32 1, %s8
  %s11 = scalar_select 0, %s10, %s8
  loop: start=0, step=1, limit=4
  $region2: #{tpu_custom_call.1} parent=0 // loop_pre_header
    _
  $region3: #{tpu_custom_call.1} parent=0 // loop_header
    %s13 = sphi 0, %s17
    %p14 = scmp.ge.s32.totalorder %s13, 4
    %s23 = sphi 0, %s25
    %s26 = sphi 0, %s23
    %s27 = sphi 0, %s26
    %s43 = sphi 0, %s27
    %s47 = sphi 0, %s47
    %s49 = sphi 0, %s47
    %s50 = sphi 0, %s49
    %s64 = sphi 0, %s50
    %s68 = sphi 0, %s68
    %s70 = sphi 0, %s68
    %s71 = sphi 0, %s70
    %s85 = sphi 0, %s71
    %s89 = sphi 0, %s89
    %s91 = sphi 0, %s89
    %s92 = sphi 0, %s91
    %s106 = sphi 0, %s92
    %s110 = sphi 0, %s110
    %s112 = sphi 0, %s110
    %s113 = sphi 0, %s112
    %s127 = sphi 0, %s113
    %s131 = sphi 0, %s131
    %s133 = sphi 0, %s131
    %s134 = sphi 0, %s133
    %s148 = sphi 0, %s134
    %s152 = sphi 0, %s152
    %s154 = sphi 0, %s152
    %s155 = sphi 0, %s154
    %s169 = sphi 0, %s155
    %s175 = sphi 0, %s177
    %s178 = sphi 0, %s175
    %s179 = sphi 0, %s178
    %s195 = sphi 0, %s179
  $region4: #{tpu_custom_call.1} parent=0 // loop_header_branch
    %16 = sbr.rel (%p14) target = $region8
  $region5: #{tpu_custom_call.1} parent=0 // loop_body
    %s18 = ssub.s32 %s13, 1
    %s19 = ssub.s32 %s13, 2
    %s20 = sadd.s32 %s13, 1
    %s21 = ssub.s32 %s13, %s20
    %p22 = scmp.eq.s32.totalorder %s21, 0
    %s24 = sadd.s32 %s23, 1
    %s25 = scalar_select %p22, %s23, %s24
    %p28 = pneg %p22
    %p29 = scmp.eq.s32.totalorder %s13, 1
    %p30 = por %p28, %p29
    %p31 = scmp.ne.s32.totalorder %s23, %s26
    %p32 = scmp.eq.s32.totalorder %s13, 0
    %p33 = por %p31, %p32
    %p34 = scmp.ne.s32.totalorder %s23, %s26
    %p35 = scmp.eq.s32.totalorder %s18, 1
    %p36 = por %p34, %p35
    %p37 = scmp.ne.s32.totalorder %s26, %s27
    %p38 = scmp.eq.s32.totalorder %s18, 0
    %p39 = por %p37, %p38
    %p40 = scmp.ne.s32.totalorder %s26, %s27
    %p41 = scmp.eq.s32.totalorder %s19, 1
    %p42 = por %p40, %p41
    %p44 = scmp.ne.s32.totalorder %s27, %s43
    %p45 = scmp.eq.s32.totalorder %s19, 0
    %p46 = por %p44, %p45
    %s48 = sadd.s32 %s47, 1
    %p51 = scmp.eq.s32.totalorder %s13, 1
    %p52 = scmp.ne.s32.totalorder %s47, %s49
    %p53 = scmp.eq.s32.totalorder %s13, 0
    %p54 = por %p52, %p53
    %p55 = scmp.ne.s32.totalorder %s47, %s49
    %p56 = scmp.eq.s32.totalorder %s18, 1
    %p57 = por %p55, %p56
    %p58 = scmp.ne.s32.totalorder %s49, %s50
    %p59 = scmp.eq.s32.totalorder %s18, 0
    %p60 = por %p58, %p59
    %p61 = scmp.ne.s32.totalorder %s49, %s50
    %p62 = scmp.eq.s32.totalorder %s19, 1
    %p63 = por %p61, %p62
    %p65 = scmp.ne.s32.totalorder %s50, %s64
    %p66 = scmp.eq.s32.totalorder %s19, 0
    %p67 = por %p65, %p66
    %s69 = sadd.s32 %s68, 1
    %p72 = scmp.eq.s32.totalorder %s13, 1
    %p73 = scmp.ne.s32.totalorder %s68, %s70
    %p74 = scmp.eq.s32.totalorder %s13, 0
    %p75 = por %p73, %p74
    %p76 = scmp.ne.s32.totalorder %s68, %s70
    %p77 = scmp.eq.s32.totalorder %s18, 1
    %p78 = por %p76, %p77
    %p79 = scmp.ne.s32.totalorder %s70, %s71
    %p80 = scmp.eq.s32.totalorder %s18, 0
    %p81 = por %p79, %p80
    %p82 = scmp.ne.s32.totalorder %s70, %s71
    %p83 = scmp.eq.s32.totalorder %s19, 1
    %p84 = por %p82, %p83
    %p86 = scmp.ne.s32.totalorder %s71, %s85
    %p87 = scmp.eq.s32.totalorder %s19, 0
    %p88 = por %p86, %p87
    %s90 = sadd.s32 %s89, 1
    %p93 = scmp.eq.s32.totalorder %s13, 1
    %p94 = scmp.ne.s32.totalorder %s89, %s91
    %p95 = scmp.eq.s32.totalorder %s13, 0
    %p96 = por %p94, %p95
    %p97 = scmp.ne.s32.totalorder %s89, %s91
    %p98 = scmp.eq.s32.totalorder %s18, 1
    %p99 = por %p97, %p98
    %p100 = scmp.ne.s32.totalorder %s91, %s92
    %p101 = scmp.eq.s32.totalorder %s18, 0
    %p102 = por %p100, %p101
    %p103 = scmp.ne.s32.totalorder %s91, %s92
    %p104 = scmp.eq.s32.totalorder %s19, 1
    %p105 = por %p103, %p104
    %p107 = scmp.ne.s32.totalorder %s92, %s106
    %p108 = scmp.eq.s32.totalorder %s19, 0
    %p109 = por %p107, %p108
    %s111 = sadd.s32 %s110, 1
    %p114 = scmp.eq.s32.totalorder %s13, 1
    %p115 = scmp.ne.s32.totalorder %s110, %s112
    %p116 = scmp.eq.s32.totalorder %s13, 0
    %p117 = por %p115, %p116
    %p118 = scmp.ne.s32.totalorder %s110, %s112
    %p119 = scmp.eq.s32.totalorder %s18, 1
    %p120 = por %p118, %p119
    %p121 = scmp.ne.s32.totalorder %s112, %s113
    %p122 = scmp.eq.s32.totalorder %s18, 0
    %p123 = por %p121, %p122
    %p124 = scmp.ne.s32.totalorder %s112, %s113
    %p125 = scmp.eq.s32.totalorder %s19, 1
    %p126 = por %p124, %p125
    %p128 = scmp.ne.s32.totalorder %s113, %s127
    %p129 = scmp.eq.s32.totalorder %s19, 0
    %p130 = por %p128, %p129
    %s132 = sadd.s32 %s131, 1
    %p135 = scmp.eq.s32.totalorder %s13, 1
    %p136 = scmp.ne.s32.totalorder %s131, %s133
    %p137 = scmp.eq.s32.totalorder %s13, 0
    %p138 = por %p136, %p137
    %p139 = scmp.ne.s32.totalorder %s131, %s133
    %p140 = scmp.eq.s32.totalorder %s18, 1
    %p141 = por %p139, %p140
    %p142 = scmp.ne.s32.totalorder %s133, %s134
    %p143 = scmp.eq.s32.totalorder %s18, 0
    %p144 = por %p142, %p143
    %p145 = scmp.ne.s32.totalorder %s133, %s134
    %p146 = scmp.eq.s32.totalorder %s19, 1
    %p147 = por %p145, %p146
    %p149 = scmp.ne.s32.totalorder %s134, %s148
    %p150 = scmp.eq.s32.totalorder %s19, 0
    %p151 = por %p149, %p150
    %s153 = sadd.s32 %s152, 1
    %p156 = scmp.eq.s32.totalorder %s13, 1
    %p157 = scmp.ne.s32.totalorder %s152, %s154
    %p158 = scmp.eq.s32.totalorder %s13, 0
    %p159 = por %p157, %p158
    %p160 = scmp.ne.s32.totalorder %s152, %s154
    %p161 = scmp.eq.s32.totalorder %s18, 1
    %p162 = por %p160, %p161
    %p163 = scmp.ne.s32.totalorder %s154, %s155
    %p164 = scmp.eq.s32.totalorder %s18, 0
    %p165 = por %p163, %p164
    %p166 = scmp.ne.s32.totalorder %s154, %s155
    %p167 = scmp.eq.s32.totalorder %s19, 1
    %p168 = por %p166, %p167
    %p170 = scmp.ne.s32.totalorder %s155, %s169
    %p171 = scmp.eq.s32.totalorder %s19, 0
    %p172 = por %p170, %p171
    %s173 = ssub.s32 %s13, %s20
    %p174 = scmp.eq.s32.totalorder %s173, 0
    %s176 = sadd.s32 %s175, 1
    %s177 = scalar_select %p174, %s175, %s176
    %p180 = pneg %p174
    %p181 = scmp.eq.s32.totalorder %s13, 1
    %p182 = por %p180, %p181
    %p183 = scmp.ne.s32.totalorder %s175, %s178
    %p184 = scmp.eq.s32.totalorder %s13, 0
    %p185 = por %p183, %p184
    %p186 = scmp.ne.s32.totalorder %s175, %s178
    %p187 = scmp.eq.s32.totalorder %s18, 1
    %p188 = por %p186, %p187
    %p189 = scmp.ne.s32.totalorder %s178, %s179
    %p190 = scmp.eq.s32.totalorder %s18, 0
    %p191 = por %p189, %p190
    %p192 = scmp.ne.s32.totalorder %s178, %s179
    %p193 = scmp.eq.s32.totalorder %s19, 1
    %p194 = por %p192, %p193
    %p196 = scmp.ne.s32.totalorder %s179, %s195
    %p197 = scmp.eq.s32.totalorder %s19, 0
    %p198 = por %p196, %p197
    %p199 = scmp.le.s32.totalorder 1, %s13
    %p200 = scmp.lt.s32.totalorder %s13, 3
    %p201 = pnand %p199, %p200
    %p202 = pneg %p201
    // Predicated region
    $region9: #{tpu_custom_call.1} parent=5 // pred_check
      _
    $region10: #{tpu_custom_call.1} parent=5 // pred_check_branch
      %204 = sbr.rel (%p201) target = $region12
    $region11: #{tpu_custom_call.1} parent=5 // pred_region
      %s205 = ssub.s32 %s13, 1
      // Predicated region
      $region13: #{tpu_custom_call.1} parent=11 // pred_check
        %p206 = pneg %p60
      $region14: #{tpu_custom_call.1} parent=11 // pred_check_branch
        %208 = sbr.rel (%p206) target = $region16
      $region15: #{tpu_custom_call.1} parent=11 // pred_region
        _
      $region16: #{tpu_custom_call.1} parent=11 // pred_fallthru
        _
      // Predicated region
      $region17: #{tpu_custom_call.1} parent=11 // pred_check
        %p209 = pneg %p81
      $region18: #{tpu_custom_call.1} parent=11 // pred_check_branch
        %211 = sbr.rel (%p209) target = $region20
      $region19: #{tpu_custom_call.1} parent=11 // pred_region
        _
      $region20: #{tpu_custom_call.1} parent=11 // pred_fallthru
        _
      // Predicated region
      $region21: #{tpu_custom_call.1} parent=11 // pred_check
        %p212 = pneg %p102
      $region22: #{tpu_custom_call.1} parent=11 // pred_check_branch
        %214 = sbr.rel (%p212) target = $region24
      $region23: #{tpu_custom_call.1} parent=11 // pred_region
        _
      $region24: #{tpu_custom_call.1} parent=11 // pred_fallthru
        _
      // Predicated region
      $region25: #{tpu_custom_call.1} parent=11 // pred_check
        %p215 = pneg %p123
      $region26: #{tpu_custom_call.1} parent=11 // pred_check_branch
        %217 = sbr.rel (%p215) target = $region28
      $region27: #{tpu_custom_call.1} parent=11 // pred_region
        _
      $region28: #{tpu_custom_call.1} parent=11 // pred_fallthru
        _
      // Predicated region
      $region29: #{tpu_custom_call.1} parent=11 // pred_check
        %p218 = pneg %p144
      $region30: #{tpu_custom_call.1} parent=11 // pred_check_branch
        %220 = sbr.rel (%p218) target = $region32
      $region31: #{tpu_custom_call.1} parent=11 // pred_region
        _
      $region32: #{tpu_custom_call.1} parent=11 // pred_fallthru
        _
      // Predicated region
      $region33: #{tpu_custom_call.1} parent=11 // pred_check
        %p221 = pneg %p165
      $region34: #{tpu_custom_call.1} parent=11 // pred_check_branch
        %223 = sbr.rel (%p221) target = $region36
      $region35: #{tpu_custom_call.1} parent=11 // pred_region
        _
      $region36: #{tpu_custom_call.1} parent=11 // pred_fallthru
        _
    $region12: #{tpu_custom_call.1} parent=5 // pred_fallthru
      _
    %p224 = scmp.lt.s32.totalorder %s13, 2
    // Predicated region
    $region37: #{tpu_custom_call.1} parent=5 // pred_check
      %p225 = pneg %p224
    $region38: #{tpu_custom_call.1} parent=5 // pred_check_branch
      %227 = sbr.rel (%p225) target = $region40
    $region39: #{tpu_custom_call.1} parent=5 // pred_region
      // Predicated region
      $region41: #{tpu_custom_call.1} parent=39 // pred_check
        %p228 = pneg %p33
      $region42: #{tpu_custom_call.1} parent=39 // pred_check_branch
        %230 = sbr.rel (%p228) target = $region44
      $region43: #{tpu_custom_call.1} parent=39 // pred_region
        %s231 = smul.u32 32, %s13
        %p232 = scmp.lt.s32.totalorder %s231, 63
        %s233 = scalar_select %p232, %s231, 63
        %s234 = smul.addr %s233, 8
        %s235 = scalar_lea.vmem %s0, %s234
        %s236 = smul.u32 32, %s13
      $region44: #{tpu_custom_call.1} parent=39 // pred_fallthru
        _
    $region40: #{tpu_custom_call.1} parent=5 // pred_fallthru
      _
    %p237 = scmp.le.s32.totalorder 1, %s13
    %p238 = scmp.lt.s32.totalorder %s13, 3
    %p239 = pnand %p237, %p238
    %p240 = pneg %p239
    // Predicated region
    $region45: #{tpu_custom_call.1} parent=5 // pred_check
      _
    $region46: #{tpu_custom_call.1} parent=5 // pred_check_branch
      %242 = sbr.rel (%p239) target = $region48
    $region47: #{tpu_custom_call.1} parent=5 // pred_region
      %s243 = ssub.s32 %s13, 1
      %s244 = smul.u32 32, %s18
      %p245 = scmp.lt.s32.totalorder %s244, 63
      %s246 = scalar_select %p245, %s244, 63
      %s247 = smul.addr %s246, 8
      %s248 = scalar_lea.vmem %s0, %s247
      %p249 = pneg %p39
      %p250 = pneg %p36
      %p251 = pneg %p60
      %p252 = pneg %p57
      %p253 = pneg %p81
      %p254 = pneg %p78
      %p255 = pneg %p102
      %p256 = pneg %p99
      %p257 = pneg %p123
      %p258 = pneg %p120
      %p259 = pneg %p144
      %p260 = pneg %p141
      %p261 = pneg %p165
      %p262 = pneg %p162
      %p263 = pneg %p191
      %p264 = pneg %p188
      %s265 = smul.u32 32, %s18
      %p266 = scmp.lt.s32.totalorder %s265, 63
      %s267 = scalar_select %p266, %s265, 63
      %s268 = smul.addr %s267, 8
      %s269 = scalar_lea.vmem %s7, %s268
      %s270 = smul.u32 32, %s18
      %p271 = scmp.lt.s32.totalorder %s270, 63
      %s272 = scalar_select %p271, %s270, 63
      %s273 = smul.addr %s272, 8
      %s274 = scalar_lea.vmem %s0, %s273
      %s275 = smul.u32 32, %s18
      %s276 = smul.u32 32, %s18
      %p277 = scmp.lt.s32.totalorder %s276, 63
      %s278 = scalar_select %p277, %s276, 63
      %s279 = smul.addr %s278, 8
      %s280 = scalar_lea.vmem %s7, %s279
      %s281 = smul.u32 32, %s18
      %v282 = vld [vmem:[%s274] sm:$0xff]
      %v283 = vld [vmem:[%s274 + $0x8] sm:$0xff]
      %v284 = vld [vmem:[%s274 + $0x10] sm:$0xff]
      %v285 = vld [vmem:[%s274 + $0x18] sm:$0xff]
      %v286 = vld [vmem:[%s274 + $0x20] sm:$0xff]
      %v287 = vld [vmem:[%s274 + $0x28] sm:$0xff]
      %v288 = vld [vmem:[%s274 + $0x30] sm:$0xff]
      %v289 = vld [vmem:[%s274 + $0x38] sm:$0xff]
      %v290 = vld [vmem:[%s274 + $0x40] sm:$0xff]
      %v291 = vld [vmem:[%s274 + $0x48] sm:$0xff]
      %v292 = vld [vmem:[%s274 + $0x50] sm:$0xff]
      %v293 = vld [vmem:[%s274 + $0x58] sm:$0xff]
      %v294 = vld [vmem:[%s274 + $0x60] sm:$0xff]
      %v295 = vld [vmem:[%s274 + $0x68] sm:$0xff]
      %v296 = vld [vmem:[%s274 + $0x70] sm:$0xff]
      %v297 = vld [vmem:[%s274 + $0x78] sm:$0xff]
      %v298 = vld [vmem:[%s274 + $0x80] sm:$0xff]
      %v299 = vld [vmem:[%s274 + $0x88] sm:$0xff]
      %v300 = vld [vmem:[%s274 + $0x90] sm:$0xff]
      %v301 = vld [vmem:[%s274 + $0x98] sm:$0xff]
      %v302 = vld [vmem:[%s274 + $0xa0] sm:$0xff]
      %v303 = vld [vmem:[%s274 + $0xa8] sm:$0xff]
      %v304 = vld [vmem:[%s274 + $0xb0] sm:$0xff]
      %v305 = vld [vmem:[%s274 + $0xb8] sm:$0xff]
      %v306 = vld [vmem:[%s274 + $0xc0] sm:$0xff]
      %v307 = vld [vmem:[%s274 + $0xc8] sm:$0xff]
      %v308 = vld [vmem:[%s274 + $0xd0] sm:$0xff]
      %v309 = vld [vmem:[%s274 + $0xd8] sm:$0xff]
      %v310 = vld [vmem:[%s274 + $0xe0] sm:$0xff]
      %v311 = vld [vmem:[%s274 + $0xe8] sm:$0xff]
      %v312 = vld [vmem:[%s274 + $0xf0] sm:$0xff]
      %v313 = vld [vmem:[%s274 + $0xf8] sm:$0xff]
      %v314 = vld [vmem:[%s1] sm:$0xff]
      %v315 = vld [vmem:[%s2] sm:$0x1]
      %v317 = vlaneseq
      %v318 = vshrl.u32 %v317, 7
      %v319 = vsub.s32 0, %v318
      %v320 = vrot.slane %v315, %v319
      %vm322 = vcmask 64512
      %v324 = vsel %vm322, %v282, 0
      %v327 = vsel %vm322, %v283, 0
      %v330 = vsel %vm322, %v284, 0
      %v333 = vsel %vm322, %v285, 0
      %v336 = vsel %vm322, %v286, 0
      %v339 = vsel %vm322, %v287, 0
      %v342 = vsel %vm322, %v288, 0
      %v345 = vsel %vm322, %v289, 0
      %v348 = vsel %vm322, %v290, 0
      %v351 = vsel %vm322, %v291, 0
      %v354 = vsel %vm322, %v292, 0
      %v357 = vsel %vm322, %v293, 0
      %v360 = vsel %vm322, %v294, 0
      %v363 = vsel %vm322, %v295, 0
      %v366 = vsel %vm322, %v296, 0
      %v369 = vsel %vm322, %v297, 0
      %v372 = vsel %vm322, %v298, 0
      %v375 = vsel %vm322, %v299, 0
      %v378 = vsel %vm322, %v300, 0
      %v381 = vsel %vm322, %v301, 0
      %v384 = vsel %vm322, %v302, 0
      %v387 = vsel %vm322, %v303, 0
      %v390 = vsel %vm322, %v304, 0
      %v393 = vsel %vm322, %v305, 0
      %v396 = vsel %vm322, %v306, 0
      %v399 = vsel %vm322, %v307, 0
      %v402 = vsel %vm322, %v308, 0
      %v405 = vsel %vm322, %v309, 0
      %v408 = vsel %vm322, %v310, 0
      %v411 = vsel %vm322, %v311, 0
      %v414 = vsel %vm322, %v312, 0
      %v417 = vsel %vm322, %v313, 0
      %419 = vmatprep.subr.mxu0 0.0
      %420 = vmatpush1.msra.mxu0 %v314
      %421 = vmatprep.subr.mxu0 0.0
      %422 = vmatpush1.msra.mxu0 0.0
      %423 = vmatprep.subr.mxu0 0.0
      %424 = vmatpush1.msra.mxu0 0.0
      %425 = vmatprep.subr.mxu0 0.0
      %426 = vmatpush1.msra.mxu0 0.0
      %427 = vmatprep.subr.mxu0 0.0
      %428 = vmatpush1.msra.mxu0 0.0
      %429 = vmatprep.subr.mxu0 0.0
      %430 = vmatpush1.msra.mxu0 0.0
      %431 = vmatprep.subr.mxu0 0.0
      %432 = vmatpush1.msra.mxu0 0.0
      %433 = vmatprep.subr.mxu0 0.0
      %434 = vmatpush1.msra.mxu0 0.0
      %435 = vmatprep.subr.mxu0 0.0
      %436 = vmatpush1.msra.mxu0 0.0
      %437 = vmatprep.subr.mxu0 0.0
      %438 = vmatpush1.msra.mxu0 0.0
      %439 = vmatprep.subr.mxu0 0.0
      %440 = vmatpush1.msra.mxu0 0.0
      %441 = vmatprep.subr.mxu0 0.0
      %442 = vmatpush1.msra.mxu0 0.0
      %443 = vmatprep.subr.mxu0 0.0
      %444 = vmatpush1.msra.mxu0 0.0
      %445 = vmatprep.subr.mxu0 0.0
      %446 = vmatpush1.msra.mxu0 0.0
      %447 = vmatprep.subr.mxu0 0.0
      %448 = vmatpush1.msra.mxu0 0.0
      %449 = vmatprep.subr.mxu0 0.0
      %450 = vmatpush1.msra.mxu0 0.0
      %451 = vmatprep.subr.mxu0 0.0
      %452 = vmatpush1.msra.mxu0 0.0
      %453 = vmatprep.subr.mxu0 0.0
      %454 = vmatpush1.msra.mxu0 0.0
      %455 = vmatprep.subr.mxu0 0.0
      %456 = vmatpush1.msra.mxu0 0.0
      %457 = vmatprep.subr.mxu0 0.0
      %458 = vmatpush1.msra.mxu0 0.0
      %459 = vmatprep.subr.mxu0 0.0
      %460 = vmatpush1.msra.mxu0 0.0
      %461 = vmatprep.subr.mxu0 0.0
      %462 = vmatpush1.msra.mxu0 0.0
      %463 = vmatprep.subr.mxu0 0.0
      %464 = vmatpush1.msra.mxu0 0.0
      %465 = vmatprep.subr.mxu0 0.0
      %466 = vmatpush1.msra.mxu0 0.0
      %467 = vmatprep.subr.mxu0 0.0
      %468 = vmatpush1.msra.mxu0 0.0
      %469 = vmatprep.subr.mxu0 0.0
      %470 = vmatpush1.msra.mxu0 0.0
      %471 = vmatprep.subr.mxu0 0.0
      %472 = vmatpush1.msra.mxu0 0.0
      %473 = vmatprep.subr.mxu0 0.0
      %474 = vmatpush1.msra.mxu0 0.0
      %475 = vmatprep.subr.mxu0 0.0
      %476 = vmatpush1.msra.mxu0 0.0
      %477 = vmatprep.subr.mxu0 0.0
      %478 = vmatpush1.msra.mxu0 0.0
      %479 = vmatprep.subr.mxu0 0.0
      %480 = vmatpush1.msra.mxu0 0.0
      %481 = vmatprep.subr.mxu0 0.0
      %482 = vmatpush1.msra.mxu0 0.0
      %483 = vmatprep.mubr.f32.mxu0 0.0
      %484 = vmatmul.mubr.f32.gmra.mrb[0].mxu0 %v324
      %v485 = vpop.f32.mrb[0].mxu0
      %v486 = vadd.f32 %v320, %v485
      %v487 = vpop.f32.mrb[0].mxu0
      %488 = vmatprep.mubr.f32.mxu0 0.0
      %489 = vmatmul.mubr.f32.gmra.mrb[0].mxu0 %v327
      %v490 = vpop.f32.mrb[0].mxu0
      %v491 = vadd.f32 %v320, %v490
      %v492 = vpop.f32.mrb[0].mxu0
      %493 = vmatprep.mubr.f32.mxu0 0.0
      %494 = vmatmul.mubr.f32.gmra.mrb[0].mxu0 %v330
      %v495 = vpop.f32.mrb[0].mxu0
      %v496 = vadd.f32 %v320, %v495
      %v497 = vpop.f32.mrb[0].mxu0
      %498 = vmatprep.mubr.f32.mxu0 0.0
      %499 = vmatmul.mubr.f32.gmra.mrb[0].mxu0 %v333
      %v500 = vpop.f32.mrb[0].mxu0
      %v501 = vadd.f32 %v320, %v500
      %v502 = vpop.f32.mrb[0].mxu0
      %503 = vmatprep.mubr.f32.mxu0 0.0
      %504 = vmatmul.mubr.f32.gmra.mrb[0].mxu0 %v336
      %v505 = vpop.f32.mrb[0].mxu0
      %v506 = vadd.f32 %v320, %v505
      %v507 = vpop.f32.mrb[0].mxu0
      %508 = vmatprep.mubr.f32.mxu0 0.0
      %509 = vmatmul.mubr.f32.gmra.mrb[0].mxu0 %v339
      %v510 = vpop.f32.mrb[0].mxu0
      %v511 = vadd.f32 %v320, %v510
      %v512 = vpop.f32.mrb[0].mxu0
      %513 = vmatprep.mubr.f32.mxu0 0.0
      %514 = vmatmul.mubr.f32.gmra.mrb[0].mxu0 %v342
      %v515 = vpop.f32.mrb[0].mxu0
      %v516 = vadd.f32 %v320, %v515
      %v517 = vpop.f32.mrb[0].mxu0
      %518 = vmatprep.mubr.f32.mxu0 0.0
      %519 = vmatmul.mubr.f32.gmra.mrb[0].mxu0 %v345
      %v520 = vpop.f32.mrb[0].mxu0
      %v521 = vadd.f32 %v320, %v520
      %v522 = vpop.f32.mrb[0].mxu0
      %523 = vmatprep.mubr.f32.mxu0 0.0
      %524 = vmatmul.mubr.f32.gmra.mrb[0].mxu0 %v348
      %v525 = vpop.f32.mrb[0].mxu0
      %v526 = vadd.f32 %v320, %v525
      %v527 = vpop.f32.mrb[0].mxu0
      %528 = vmatprep.mubr.f32.mxu0 0.0
      %529 = vmatmul.mubr.f32.gmra.mrb[0].mxu0 %v351
      %v530 = vpop.f32.mrb[0].mxu0
      %v531 = vadd.f32 %v320, %v530
      %v532 = vpop.f32.mrb[0].mxu0
      %533 = vmatprep.mubr.f32.mxu0 0.0
      %534 = vmatmul.mubr.f32.gmra.mrb[0].mxu0 %v354
      %v535 = vpop.f32.mrb[0].mxu0
      %v536 = vadd.f32 %v320, %v535
      %v537 = vpop.f32.mrb[0].mxu0
      %538 = vmatprep.mubr.f32.mxu0 0.0
      %539 = vmatmul.mubr.f32.gmra.mrb[0].mxu0 %v357
      %v540 = vpop.f32.mrb[0].mxu0
      %v541 = vadd.f32 %v320, %v540
      %v542 = vpop.f32.mrb[0].mxu0
      %543 = vmatprep.mubr.f32.mxu0 0.0
      %544 = vmatmul.mubr.f32.gmra.mrb[0].mxu0 %v360
      %v545 = vpop.f32.mrb[0].mxu0
      %v546 = vadd.f32 %v320, %v545
      %v547 = vpop.f32.mrb[0].mxu0
      %548 = vmatprep.mubr.f32.mxu0 0.0
      %549 = vmatmul.mubr.f32.gmra.mrb[0].mxu0 %v363
      %v550 = vpop.f32.mrb[0].mxu0
      %v551 = vadd.f32 %v320, %v550
      %v552 = vpop.f32.mrb[0].mxu0
      %553 = vmatprep.mubr.f32.mxu0 0.0
      %554 = vmatmul.mubr.f32.gmra.mrb[0].mxu0 %v366
      %v555 = vpop.f32.mrb[0].mxu0
      %v556 = vadd.f32 %v320, %v555
      %v557 = vpop.f32.mrb[0].mxu0
      %558 = vmatprep.mubr.f32.mxu0 0.0
      %559 = vmatmul.mubr.f32.gmra.mrb[0].mxu0 %v369
      %v560 = vpop.f32.mrb[0].mxu0
      %v561 = vadd.f32 %v320, %v560
      %v562 = vpop.f32.mrb[0].mxu0
      %563 = vmatprep.mubr.f32.mxu0 0.0
      %564 = vmatmul.mubr.f32.gmra.mrb[0].mxu0 %v372
      %v565 = vpop.f32.mrb[0].mxu0
      %v566 = vadd.f32 %v320, %v565
      %v567 = vpop.f32.mrb[0].mxu0
      %568 = vmatprep.mubr.f32.mxu0 0.0
      %569 = vmatmul.mubr.f32.gmra.mrb[0].mxu0 %v375
      %v570 = vpop.f32.mrb[0].mxu0
      %v571 = vadd.f32 %v320, %v570
      %v572 = vpop.f32.mrb[0].mxu0
      %573 = vmatprep.mubr.f32.mxu0 0.0
      %574 = vmatmul.mubr.f32.gmra.mrb[0].mxu0 %v378
      %v575 = vpop.f32.mrb[0].mxu0
      %v576 = vadd.f32 %v320, %v575
      %v577 = vpop.f32.mrb[0].mxu0
      %578 = vmatprep.mubr.f32.mxu0 0.0
      %579 = vmatmul.mubr.f32.gmra.mrb[0].mxu0 %v381
      %v580 = vpop.f32.mrb[0].mxu0
      %v581 = vadd.f32 %v320, %v580
      %v582 = vpop.f32.mrb[0].mxu0
      %583 = vmatprep.mubr.f32.mxu0 0.0
      %584 = vmatmul.mubr.f32.gmra.mrb[0].mxu0 %v384
      %v585 = vpop.f32.mrb[0].mxu0
      %v586 = vadd.f32 %v320, %v585
      %v587 = vpop.f32.mrb[0].mxu0
      %588 = vmatprep.mubr.f32.mxu0 0.0
      %589 = vmatmul.mubr.f32.gmra.mrb[0].mxu0 %v387
      %v590 = vpop.f32.mrb[0].mxu0
      %v591 = vadd.f32 %v320, %v590
      %v592 = vpop.f32.mrb[0].mxu0
      %593 = vmatprep.mubr.f32.mxu0 0.0
      %594 = vmatmul.mubr.f32.gmra.mrb[0].mxu0 %v390
      %v595 = vpop.f32.mrb[0].mxu0
      %v596 = vadd.f32 %v320, %v595
      %v597 = vpop.f32.mrb[0].mxu0
      %598 = vmatprep.mubr.f32.mxu0 0.0
      %599 = vmatmul.mubr.f32.gmra.mrb[0].mxu0 %v393
      %v600 = vpop.f32.mrb[0].mxu0
      %v601 = vadd.f32 %v320, %v600
      %v602 = vpop.f32.mrb[0].mxu0
      %603 = vmatprep.mubr.f32.mxu0 0.0
      %604 = vmatmul.mubr.f32.gmra.mrb[0].mxu0 %v396
      %v605 = vpop.f32.mrb[0].mxu0
      %v606 = vadd.f32 %v320, %v605
      %v607 = vpop.f32.mrb[0].mxu0
      %608 = vmatprep.mubr.f32.mxu0 0.0
      %609 = vmatmul.mubr.f32.gmra.mrb[0].mxu0 %v399
      %v610 = vpop.f32.mrb[0].mxu0
      %v611 = vadd.f32 %v320, %v610
      %v612 = vpop.f32.mrb[0].mxu0
      %613 = vmatprep.mubr.f32.mxu0 0.0
      %614 = vmatmul.mubr.f32.gmra.mrb[0].mxu0 %v402
      %v615 = vpop.f32.mrb[0].mxu0
      %v616 = vadd.f32 %v320, %v615
      %v617 = vpop.f32.mrb[0].mxu0
      %618 = vmatprep.mubr.f32.mxu0 0.0
      %619 = vmatmul.mubr.f32.gmra.mrb[0].mxu0 %v405
      %v620 = vpop.f32.mrb[0].mxu0
      %v621 = vadd.f32 %v320, %v620
      %v622 = vpop.f32.mrb[0].mxu0
      %623 = vmatprep.mubr.f32.mxu0 0.0
      %624 = vmatmul.mubr.f32.gmra.mrb[0].mxu0 %v408
      %v625 = vpop.f32.mrb[0].mxu0
      %v626 = vadd.f32 %v320, %v625
      %v627 = vpop.f32.mrb[0].mxu0
      %628 = vmatprep.mubr.f32.mxu0 0.0
      %629 = vmatmul.mubr.f32.gmra.mrb[0].mxu0 %v411
      %v630 = vpop.f32.mrb[0].mxu0
      %v631 = vadd.f32 %v320, %v630
      %v632 = vpop.f32.mrb[0].mxu0
      %633 = vmatprep.mubr.f32.mxu0 0.0
      %634 = vmatmul.mubr.f32.gmra.mrb[0].mxu0 %v414
      %v635 = vpop.f32.mrb[0].mxu0
      %v636 = vadd.f32 %v320, %v635
      %v637 = vpop.f32.mrb[0].mxu0
      %638 = vmatprep.mubr.f32.mxu0 0.0
      %639 = vmatmul.mubr.f32.gmra.mrb[0].mxu0 %v417
      %v640 = vpop.f32.mrb[0].mxu0
      %v641 = vadd.f32 %v320, %v640
      %v642 = vpop.f32.mrb[0].mxu0
      %643 = vdwg.mxu0
      %v644 = vtanh.pop %v486
      %v645 = vtanh.pop %v491
      %v646 = vtanh.pop %v496
      %v647 = vtanh.pop %v501
      %v648 = vtanh.pop %v506
      %v649 = vtanh.pop %v511
      %v650 = vtanh.pop %v516
      %v651 = vtanh.pop %v521
      %v652 = vtanh.pop %v526
      %v653 = vtanh.pop %v531
      %v654 = vtanh.pop %v536
      %v655 = vtanh.pop %v541
      %v656 = vtanh.pop %v546
      %v657 = vtanh.pop %v551
      %v658 = vtanh.pop %v556
      %v659 = vtanh.pop %v561
      %v660 = vtanh.pop %v566
      %v661 = vtanh.pop %v571
      %v662 = vtanh.pop %v576
      %v663 = vtanh.pop %v581
      %v664 = vtanh.pop %v586
      %v665 = vtanh.pop %v591
      %v666 = vtanh.pop %v596
      %v667 = vtanh.pop %v601
      %v668 = vtanh.pop %v606
      %v669 = vtanh.pop %v611
      %v670 = vtanh.pop %v616
      %v671 = vtanh.pop %v621
      %v672 = vtanh.pop %v626
      %v673 = vtanh.pop %v631
      %v674 = vtanh.pop %v636
      %v675 = vtanh.pop %v641
      %v676 = vld [vmem:[%s3] sm:$0xff]
      %v677 = vld [vmem:[%s3 + $0x8] sm:$0xff]
      %v678 = vld [vmem:[%s3 + $0x10] sm:$0xff]
      %v679 = vld [vmem:[%s3 + $0x18] sm:$0xff]
      %v680 = vld [vmem:[%s3 + $0x20] sm:$0xff]
      %v681 = vld [vmem:[%s3 + $0x28] sm:$0xff]
      %v682 = vld [vmem:[%s3 + $0x30] sm:$0xff]
      %v683 = vld [vmem:[%s3 + $0x38] sm:$0xff]
      %v684 = vld [vmem:[%s3 + $0x40] sm:$0xff]
      %v685 = vld [vmem:[%s3 + $0x48] sm:$0xff]
      %v686 = vld [vmem:[%s3 + $0x50] sm:$0xff]
      %v687 = vld [vmem:[%s3 + $0x58] sm:$0xff]
      %v688 = vld [vmem:[%s3 + $0x60] sm:$0xff]
      %v689 = vld [vmem:[%s3 + $0x68] sm:$0xff]
      %v690 = vld [vmem:[%s3 + $0x70] sm:$0xff]
      %v691 = vld [vmem:[%s3 + $0x78] sm:$0xff]
      %v692 = vld [vmem:[%s4] sm:$0x1]
      %v694 = vlaneseq
      %v695 = vshrl.u32 %v694, 7
      %v696 = vsub.s32 0, %v695
      %v697 = vrot.slane %v692, %v696
      %699 = vmatprep.subr.mxu0 0.0
      %700 = vmatpush1.msra.mxu0 %v676
      %701 = vmatprep.subr.mxu0 0.0
      %702 = vmatpush1.msra.mxu0 %v677
      %703 = vmatprep.subr.mxu0 0.0
      %704 = vmatpush1.msra.mxu0 %v678
      %705 = vmatprep.subr.mxu0 0.0
      %706 = vmatpush1.msra.mxu0 %v679
      %707 = vmatprep.subr.mxu0 0.0
      %708 = vmatpush1.msra.mxu0 %v680
      %709 = vmatprep.subr.mxu0 0.0
      %710 = vmatpush1.msra.mxu0 %v681
      %711 = vmatprep.subr.mxu0 0.0
      %712 = vmatpush1.msra.mxu0 %v682
      %713 = vmatprep.subr.mxu0 0.0
      %714 = vmatpush1.msra.mxu0 %v683
      %715 = vmatprep.subr.mxu0 0.0
      %716 = vmatpush1.msra.mxu0 %v684
      %717 = vmatprep.subr.mxu0 0.0
      %718 = vmatpush1.msra.mxu0 %v685
      %719 = vmatprep.subr.mxu0 0.0
      %720 = vmatpush1.msra.mxu0 %v686
      %721 = vmatprep.subr.mxu0 0.0
      %722 = vmatpush1.msra.mxu0 %v687
      %723 = vmatprep.subr.mxu0 0.0
      %724 = vmatpush1.msra.mxu0 %v688
      %725 = vmatprep.subr.mxu0 0.0
      %726 = vmatpush1.msra.mxu0 %v689
      %727 = vmatprep.subr.mxu0 0.0
      %728 = vmatpush1.msra.mxu0 %v690
      %729 = vmatprep.subr.mxu0 0.0
      %730 = vmatpush1.msra.mxu0 %v691
      %731 = vmatprep.subr.mxu0 0.0
      %732 = vmatpush1.msra.mxu0 0.0
      %733 = vmatprep.subr.mxu0 0.0
      %734 = vmatpush1.msra.mxu0 0.0
      %735 = vmatprep.subr.mxu0 0.0
      %736 = vmatpush1.msra.mxu0 0.0
      %737 = vmatprep.subr.mxu0 0.0
      %738 = vmatpush1.msra.mxu0 0.0
      %739 = vmatprep.subr.mxu0 0.0
      %740 = vmatpush1.msra.mxu0 0.0
      %741 = vmatprep.subr.mxu0 0.0
      %742 = vmatpush1.msra.mxu0 0.0
      %743 = vmatprep.subr.mxu0 0.0
      %744 = vmatpush1.msra.mxu0 0.0
      %745 = vmatprep.subr.mxu0 0.0
      %746 = vmatpush1.msra.mxu0 0.0
      %747 = vmatprep.subr.mxu0 0.0
      %748 = vmatpush1.msra.mxu0 0.0
      %749 = vmatprep.subr.mxu0 0.0
      %750 = vmatpush1.msra.mxu0 0.0
      %751 = vmatprep.subr.mxu0 0.0
      %752 = vmatpush1.msra.mxu0 0.0
      %753 = vmatprep.subr.mxu0 0.0
      %754 = vmatpush1.msra.mxu0 0.0
      %755 = vmatprep.subr.mxu0 0.0
      %756 = vmatpush1.msra.mxu0 0.0
      %757 = vmatprep.subr.mxu0 0.0
      %758 = vmatpush1.msra.mxu0 0.0
      %759 = vmatprep.subr.mxu0 0.0
      %760 = vmatpush1.msra.mxu0 0.0
      %761 = vmatprep.subr.mxu0 0.0
      %762 = vmatpush1.msra.mxu0 0.0
      %763 = vmatprep.mubr.f32.mxu0 0.0
      %764 = vmatmul.mubr.f32.gmra.mrb[0].mxu0 %v644
      %v765 = vpop.f32.mrb[0].mxu0
      %v766 = vadd.f32 %v697, %v765
      %v767 = vpop.f32.mrb[0].mxu0
      %768 = vmatprep.mubr.f32.mxu0 0.0
      %769 = vmatmul.mubr.f32.gmra.mrb[0].mxu0 %v645
      %v770 = vpop.f32.mrb[0].mxu0
      %v771 = vadd.f32 %v697, %v770
      %v772 = vpop.f32.mrb[0].mxu0
      %773 = vmatprep.mubr.f32.mxu0 0.0
      %774 = vmatmul.mubr.f32.gmra.mrb[0].mxu0 %v646
      %v775 = vpop.f32.mrb[0].mxu0
      %v776 = vadd.f32 %v697, %v775
      %v777 = vpop.f32.mrb[0].mxu0
      %778 = vmatprep.mubr.f32.mxu0 0.0
      %779 = vmatmul.mubr.f32.gmra.mrb[0].mxu0 %v647
      %v780 = vpop.f32.mrb[0].mxu0
      %v781 = vadd.f32 %v697, %v780
      %v782 = vpop.f32.mrb[0].mxu0
      %783 = vmatprep.mubr.f32.mxu0 0.0
      %784 = vmatmul.mubr.f32.gmra.mrb[0].mxu0 %v648
      %v785 = vpop.f32.mrb[0].mxu0
      %v786 = vadd.f32 %v697, %v785
      %v787 = vpop.f32.mrb[0].mxu0
      %788 = vmatprep.mubr.f32.mxu0 0.0
      %789 = vmatmul.mubr.f32.gmra.mrb[0].mxu0 %v649
      %v790 = vpop.f32.mrb[0].mxu0
      %v791 = vadd.f32 %v697, %v790
      %v792 = vpop.f32.mrb[0].mxu0
      %793 = vmatprep.mubr.f32.mxu0 0.0
      %794 = vmatmul.mubr.f32.gmra.mrb[0].mxu0 %v650
      %v795 = vpop.f32.mrb[0].mxu0
      %v796 = vadd.f32 %v697, %v795
      %v797 = vpop.f32.mrb[0].mxu0
      %798 = vmatprep.mubr.f32.mxu0 0.0
      %799 = vmatmul.mubr.f32.gmra.mrb[0].mxu0 %v651
      %v800 = vpop.f32.mrb[0].mxu0
      %v801 = vadd.f32 %v697, %v800
      %v802 = vpop.f32.mrb[0].mxu0
      %803 = vmatprep.mubr.f32.mxu0 0.0
      %804 = vmatmul.mubr.f32.gmra.mrb[0].mxu0 %v652
      %v805 = vpop.f32.mrb[0].mxu0
      %v806 = vadd.f32 %v697, %v805
      %v807 = vpop.f32.mrb[0].mxu0
      %808 = vmatprep.mubr.f32.mxu0 0.0
      %809 = vmatmul.mubr.f32.gmra.mrb[0].mxu0 %v653
      %v810 = vpop.f32.mrb[0].mxu0
      %v811 = vadd.f32 %v697, %v810
      %v812 = vpop.f32.mrb[0].mxu0
      %813 = vmatprep.mubr.f32.mxu0 0.0
      %814 = vmatmul.mubr.f32.gmra.mrb[0].mxu0 %v654
      %v815 = vpop.f32.mrb[0].mxu0
      %v816 = vadd.f32 %v697, %v815
      %v817 = vpop.f32.mrb[0].mxu0
      %818 = vmatprep.mubr.f32.mxu0 0.0
      %819 = vmatmul.mubr.f32.gmra.mrb[0].mxu0 %v655
      %v820 = vpop.f32.mrb[0].mxu0
      %v821 = vadd.f32 %v697, %v820
      %v822 = vpop.f32.mrb[0].mxu0
      %823 = vmatprep.mubr.f32.mxu0 0.0
      %824 = vmatmul.mubr.f32.gmra.mrb[0].mxu0 %v656
      %v825 = vpop.f32.mrb[0].mxu0
      %v826 = vadd.f32 %v697, %v825
      %v827 = vpop.f32.mrb[0].mxu0
      %828 = vmatprep.mubr.f32.mxu0 0.0
      %829 = vmatmul.mubr.f32.gmra.mrb[0].mxu0 %v657
      %v830 = vpop.f32.mrb[0].mxu0
      %v831 = vadd.f32 %v697, %v830
      %v832 = vpop.f32.mrb[0].mxu0
      %833 = vmatprep.mubr.f32.mxu0 0.0
      %834 = vmatmul.mubr.f32.gmra.mrb[0].mxu0 %v658
      %v835 = vpop.f32.mrb[0].mxu0
      %v836 = vadd.f32 %v697, %v835
      %v837 = vpop.f32.mrb[0].mxu0
      %838 = vmatprep.mubr.f32.mxu0 0.0
      %839 = vmatmul.mubr.f32.gmra.mrb[0].mxu0 %v659
      %v840 = vpop.f32.mrb[0].mxu0
      %v841 = vadd.f32 %v697, %v840
      %v842 = vpop.f32.mrb[0].mxu0
      %843 = vmatprep.mubr.f32.mxu0 0.0
      %844 = vmatmul.mubr.f32.gmra.mrb[0].mxu0 %v660
      %v845 = vpop.f32.mrb[0].mxu0
      %v846 = vadd.f32 %v697, %v845
      %v847 = vpop.f32.mrb[0].mxu0
      %848 = vmatprep.mubr.f32.mxu0 0.0
      %849 = vmatmul.mubr.f32.gmra.mrb[0].mxu0 %v661
      %v850 = vpop.f32.mrb[0].mxu0
      %v851 = vadd.f32 %v697, %v850
      %v852 = vpop.f32.mrb[0].mxu0
      %853 = vmatprep.mubr.f32.mxu0 0.0
      %854 = vmatmul.mubr.f32.gmra.mrb[0].mxu0 %v662
      %v855 = vpop.f32.mrb[0].mxu0
      %v856 = vadd.f32 %v697, %v855
      %v857 = vpop.f32.mrb[0].mxu0
      %858 = vmatprep.mubr.f32.mxu0 0.0
      %859 = vmatmul.mubr.f32.gmra.mrb[0].mxu0 %v663
      %v860 = vpop.f32.mrb[0].mxu0
      %v861 = vadd.f32 %v697, %v860
      %v862 = vpop.f32.mrb[0].mxu0
      %863 = vmatprep.mubr.f32.mxu0 0.0
      %864 = vmatmul.mubr.f32.gmra.mrb[0].mxu0 %v664
      %v865 = vpop.f32.mrb[0].mxu0
      %v866 = vadd.f32 %v697, %v865
      %v867 = vpop.f32.mrb[0].mxu0
      %868 = vmatprep.mubr.f32.mxu0 0.0
      %869 = vmatmul.mubr.f32.gmra.mrb[0].mxu0 %v665
      %v870 = vpop.f32.mrb[0].mxu0
      %v871 = vadd.f32 %v697, %v870
      %v872 = vpop.f32.mrb[0].mxu0
      %873 = vmatprep.mubr.f32.mxu0 0.0
      %874 = vmatmul.mubr.f32.gmra.mrb[0].mxu0 %v666
      %v875 = vpop.f32.mrb[0].mxu0
      %v876 = vadd.f32 %v697, %v875
      %v877 = vpop.f32.mrb[0].mxu0
      %878 = vmatprep.mubr.f32.mxu0 0.0
      %879 = vmatmul.mubr.f32.gmra.mrb[0].mxu0 %v667
      %v880 = vpop.f32.mrb[0].mxu0
      %v881 = vadd.f32 %v697, %v880
      %v882 = vpop.f32.mrb[0].mxu0
      %883 = vmatprep.mubr.f32.mxu0 0.0
      %884 = vmatmul.mubr.f32.gmra.mrb[0].mxu0 %v668
      %v885 = vpop.f32.mrb[0].mxu0
      %v886 = vadd.f32 %v697, %v885
      %v887 = vpop.f32.mrb[0].mxu0
      %888 = vmatprep.mubr.f32.mxu0 0.0
      %889 = vmatmul.mubr.f32.gmra.mrb[0].mxu0 %v669
      %v890 = vpop.f32.mrb[0].mxu0
      %v891 = vadd.f32 %v697, %v890
      %v892 = vpop.f32.mrb[0].mxu0
      %893 = vmatprep.mubr.f32.mxu0 0.0
      %894 = vmatmul.mubr.f32.gmra.mrb[0].mxu0 %v670
      %v895 = vpop.f32.mrb[0].mxu0
      %v896 = vadd.f32 %v697, %v895
      %v897 = vpop.f32.mrb[0].mxu0
      %898 = vmatprep.mubr.f32.mxu0 0.0
      %899 = vmatmul.mubr.f32.gmra.mrb[0].mxu0 %v671
      %v900 = vpop.f32.mrb[0].mxu0
      %v901 = vadd.f32 %v697, %v900
      %v902 = vpop.f32.mrb[0].mxu0
      %903 = vmatprep.mubr.f32.mxu0 0.0
      %904 = vmatmul.mubr.f32.gmra.mrb[0].mxu0 %v672
      %v905 = vpop.f32.mrb[0].mxu0
      %v906 = vadd.f32 %v697, %v905
      %v907 = vpop.f32.mrb[0].mxu0
      %908 = vmatprep.mubr.f32.mxu0 0.0
      %909 = vmatmul.mubr.f32.gmra.mrb[0].mxu0 %v673
      %v910 = vpop.f32.mrb[0].mxu0
      %v911 = vadd.f32 %v697, %v910
      %v912 = vpop.f32.mrb[0].mxu0
      %913 = vmatprep.mubr.f32.mxu0 0.0
      %914 = vmatmul.mubr.f32.gmra.mrb[0].mxu0 %v674
      %v915 = vpop.f32.mrb[0].mxu0
      %v916 = vadd.f32 %v697, %v915
      %v917 = vpop.f32.mrb[0].mxu0
      %918 = vmatprep.mubr.f32.mxu0 0.0
      %919 = vmatmul.mubr.f32.gmra.mrb[0].mxu0 %v675
      %v920 = vpop.f32.mrb[0].mxu0
      %v921 = vadd.f32 %v697, %v920
      %v922 = vpop.f32.mrb[0].mxu0
      %923 = vdwg.mxu0
      %v924 = vtanh.pop %v766
      %v925 = vtanh.pop %v771
      %v926 = vtanh.pop %v776
      %v927 = vtanh.pop %v781
      %v928 = vtanh.pop %v786
      %v929 = vtanh.pop %v791
      %v930 = vtanh.pop %v796
      %v931 = vtanh.pop %v801
      %v932 = vtanh.pop %v806
      %v933 = vtanh.pop %v811
      %v934 = vtanh.pop %v816
      %v935 = vtanh.pop %v821
      %v936 = vtanh.pop %v826
      %v937 = vtanh.pop %v831
      %v938 = vtanh.pop %v836
      %v939 = vtanh.pop %v841
      %v940 = vtanh.pop %v846
      %v941 = vtanh.pop %v851
      %v942 = vtanh.pop %v856
      %v943 = vtanh.pop %v861
      %v944 = vtanh.pop %v866
      %v945 = vtanh.pop %v871
      %v946 = vtanh.pop %v876
      %v947 = vtanh.pop %v881
      %v948 = vtanh.pop %v886
      %v949 = vtanh.pop %v891
      %v950 = vtanh.pop %v896
      %v951 = vtanh.pop %v901
      %v952 = vtanh.pop %v906
      %v953 = vtanh.pop %v911
      %v954 = vtanh.pop %v916
      %v955 = vtanh.pop %v921
      %v956 = vtanh.pop %v924
      %v957 = vtanh.pop %v925
      %v958 = vtanh.pop %v926
      %v959 = vtanh.pop %v927
      %v960 = vtanh.pop %v928
      %v961 = vtanh.pop %v929
      %v962 = vtanh.pop %v930
      %v963 = vtanh.pop %v931
      %v964 = vtanh.pop %v932
      %v965 = vtanh.pop %v933
      %v966 = vtanh.pop %v934
      %v967 = vtanh.pop %v935
      %v968 = vtanh.pop %v936
      %v969 = vtanh.pop %v937
      %v970 = vtanh.pop %v938
      %v971 = vtanh.pop %v939
      %v972 = vtanh.pop %v940
      %v973 = vtanh.pop %v941
      %v974 = vtanh.pop %v942
      %v975 = vtanh.pop %v943
      %v976 = vtanh.pop %v944
      %v977 = vtanh.pop %v945
      %v978 = vtanh.pop %v946
      %v979 = vtanh.pop %v947
      %v980 = vtanh.pop %v948
      %v981 = vtanh.pop %v949
      %v982 = vtanh.pop %v950
      %v983 = vtanh.pop %v951
      %v984 = vtanh.pop %v952
      %v985 = vtanh.pop %v953
      %v986 = vtanh.pop %v954
      %v987 = vtanh.pop %v955
      %s988 = scalar_lea.vmem %s3, 128
      %v989 = vld [vmem:[%s988] sm:$0xff]
      %v990 = vld [vmem:[%s988 + $0x8] sm:$0xff]
      %v991 = vld [vmem:[%s988 + $0x10] sm:$0xff]
      %v992 = vld [vmem:[%s988 + $0x18] sm:$0xff]
      %v993 = vld [vmem:[%s988 + $0x20] sm:$0xff]
      %v994 = vld [vmem:[%s988 + $0x28] sm:$0xff]
      %v995 = vld [vmem:[%s988 + $0x30] sm:$0xff]
      %v996 = vld [vmem:[%s988 + $0x38] sm:$0xff]
      %v997 = vld [vmem:[%s988 + $0x40] sm:$0xff]
      %v998 = vld [vmem:[%s988 + $0x48] sm:$0xff]
      %v999 = vld [vmem:[%s988 + $0x50] sm:$0xff]
      %v1000 = vld [vmem:[%s988 + $0x58] sm:$0xff]
      %v1001 = vld [vmem:[%s988 + $0x60] sm:$0xff]
      %v1002 = vld [vmem:[%s988 + $0x68] sm:$0xff]
      %v1003 = vld [vmem:[%s988 + $0x70] sm:$0xff]
      %v1004 = vld [vmem:[%s988 + $0x78] sm:$0xff]
      %s1005 = scalar_lea.vmem %s4, 1
      %v1006 = vld [vmem:[%s1005] sm:$0x1]
      %v1008 = vlaneseq
      %v1009 = vshrl.u32 %v1008, 7
      %v1010 = vsub.s32 0, %v1009
      %v1011 = vrot.slane %v1006, %v1010
      %1013 = vmatprep.subr.mxu0 0.0
      %1014 = vmatpush1.msra.mxu0 %v989
      %1015 = vmatprep.subr.mxu0 0.0
      %1016 = vmatpush1.msra.mxu0 %v990
      %1017 = vmatprep.subr.mxu0 0.0
      %1018 = vmatpush1.msra.mxu0 %v991
      %1019 = vmatprep.subr.mxu0 0.0
      %1020 = vmatpush1.msra.mxu0 %v992
      %1021 = vmatprep.subr.mxu0 0.0
      %1022 = vmatpush1.msra.mxu0 %v993
      %1023 = vmatprep.subr.mxu0 0.0
      %1024 = vmatpush1.msra.mxu0 %v994
      %1025 = vmatprep.subr.mxu0 0.0
      %1026 = vmatpush1.msra.mxu0 %v995
      %1027 = vmatprep.subr.mxu0 0.0
      %1028 = vmatpush1.msra.mxu0 %v996
      %1029 = vmatprep.subr.mxu0 0.0
      %1030 = vmatpush1.msra.mxu0 %v997
      %1031 = vmatprep.subr.mxu0 0.0
      %1032 = vmatpush1.msra.mxu0 %v998
      %1033 = vmatprep.subr.mxu0 0.0
      %1034 = vmatpush1.msra.mxu0 %v999
      %1035 = vmatprep.subr.mxu0 0.0
      %1036 = vmatpush1.msra.mxu0 %v1000
      %1037 = vmatprep.subr.mxu0 0.0
      %1038 = vmatpush1.msra.mxu0 %v1001
      %1039 = vmatprep.subr.mxu0 0.0
      %1040 = vmatpush1.msra.mxu0 %v1002
      %1041 = vmatprep.subr.mxu0 0.0
      %1042 = vmatpush1.msra.mxu0 %v1003
      %1043 = vmatprep.subr.mxu0 0.0
      %1044 = vmatpush1.msra.mxu0 %v1004
      %1045 = vmatprep.subr.mxu0 0.0
      %1046 = vmatpush1.msra.mxu0 0.0
      %1047 = vmatprep.subr.mxu0 0.0
      %1048 = vmatpush1.msra.mxu0 0.0
      %1049 = vmatprep.subr.mxu0 0.0
      %1050 = vmatpush1.msra.mxu0 0.0
      %1051 = vmatprep.subr.mxu0 0.0
      %1052 = vmatpush1.msra.mxu0 0.0
      %1053 = vmatprep.subr.mxu0 0.0
      %1054 = vmatpush1.msra.mxu0 0.0
      %1055 = vmatprep.subr.mxu0 0.0
      %1056 = vmatpush1.msra.mxu0 0.0
      %1057 = vmatprep.subr.mxu0 0.0
      %1058 = vmatpush1.msra.mxu0 0.0
      %1059 = vmatprep.subr.mxu0 0.0
      %1060 = vmatpush1.msra.mxu0 0.0
      %1061 = vmatprep.subr.mxu0 0.0
      %1062 = vmatpush1.msra.mxu0 0.0
      %1063 = vmatprep.subr.mxu0 0.0
      %1064 = vmatpush1.msra.mxu0 0.0
      %1065 = vmatprep.subr.mxu0 0.0
      %1066 = vmatpush1.msra.mxu0 0.0
      %1067 = vmatprep.subr.mxu0 0.0
      %1068 = vmatpush1.msra.mxu0 0.0
      %1069 = vmatprep.subr.mxu0 0.0
      %1070 = vmatpush1.msra.mxu0 0.0
      %1071 = vmatprep.subr.mxu0 0.0
      %1072 = vmatpush1.msra.mxu0 0.0
      %1073 = vmatprep.subr.mxu0 0.0
      %1074 = vmatpush1.msra.mxu0 0.0
      %1075 = vmatprep.subr.mxu0 0.0
      %1076 = vmatpush1.msra.mxu0 0.0
      %1077 = vmatprep.mubr.f32.mxu0 0.0
      %1078 = vmatmul.mubr.f32.gmra.mrb[0].mxu0 %v956
      %v1079 = vpop.f32.mrb[0].mxu0
      %v1080 = vadd.f32 %v1011, %v1079
      %v1081 = vpop.f32.mrb[0].mxu0
      %1082 = vmatprep.mubr.f32.mxu0 0.0
      %1083 = vmatmul.mubr.f32.gmra.mrb[0].mxu0 %v957
      %v1084 = vpop.f32.mrb[0].mxu0
      %v1085 = vadd.f32 %v1011, %v1084
      %v1086 = vpop.f32.mrb[0].mxu0
      %1087 = vmatprep.mubr.f32.mxu0 0.0
      %1088 = vmatmul.mubr.f32.gmra.mrb[0].mxu0 %v958
      %v1089 = vpop.f32.mrb[0].mxu0
      %v1090 = vadd.f32 %v1011, %v1089
      %v1091 = vpop.f32.mrb[0].mxu0
      %1092 = vmatprep.mubr.f32.mxu0 0.0
      %1093 = vmatmul.mubr.f32.gmra.mrb[0].mxu0 %v959
      %v1094 = vpop.f32.mrb[0].mxu0
      %v1095 = vadd.f32 %v1011, %v1094
      %v1096 = vpop.f32.mrb[0].mxu0
      %1097 = vmatprep.mubr.f32.mxu0 0.0
      %1098 = vmatmul.mubr.f32.gmra.mrb[0].mxu0 %v960
      %v1099 = vpop.f32.mrb[0].mxu0
      %v1100 = vadd.f32 %v1011, %v1099
      %v1101 = vpop.f32.mrb[0].mxu0
      %1102 = vmatprep.mubr.f32.mxu0 0.0
      %1103 = vmatmul.mubr.f32.gmra.mrb[0].mxu0 %v961
      %v1104 = vpop.f32.mrb[0].mxu0
      %v1105 = vadd.f32 %v1011, %v1104
      %v1106 = vpop.f32.mrb[0].mxu0
      %1107 = vmatprep.mubr.f32.mxu0 0.0
      %1108 = vmatmul.mubr.f32.gmra.mrb[0].mxu0 %v962
      %v1109 = vpop.f32.mrb[0].mxu0
      %v1110 = vadd.f32 %v1011, %v1109
      %v1111 = vpop.f32.mrb[0].mxu0
      %1112 = vmatprep.mubr.f32.mxu0 0.0
      %1113 = vmatmul.mubr.f32.gmra.mrb[0].mxu0 %v963
      %v1114 = vpop.f32.mrb[0].mxu0
      %v1115 = vadd.f32 %v1011, %v1114
      %v1116 = vpop.f32.mrb[0].mxu0
      %1117 = vmatprep.mubr.f32.mxu0 0.0
      %1118 = vmatmul.mubr.f32.gmra.mrb[0].mxu0 %v964
      %v1119 = vpop.f32.mrb[0].mxu0
      %v1120 = vadd.f32 %v1011, %v1119
      %v1121 = vpop.f32.mrb[0].mxu0
      %1122 = vmatprep.mubr.f32.mxu0 0.0
      %1123 = vmatmul.mubr.f32.gmra.mrb[0].mxu0 %v965
      %v1124 = vpop.f32.mrb[0].mxu0
      %v1125 = vadd.f32 %v1011, %v1124
      %v1126 = vpop.f32.mrb[0].mxu0
      %1127 = vmatprep.mubr.f32.mxu0 0.0
      %1128 = vmatmul.mubr.f32.gmra.mrb[0].mxu0 %v966
      %v1129 = vpop.f32.mrb[0].mxu0
      %v1130 = vadd.f32 %v1011, %v1129
      %v1131 = vpop.f32.mrb[0].mxu0
      %1132 = vmatprep.mubr.f32.mxu0 0.0
      %1133 = vmatmul.mubr.f32.gmra.mrb[0].mxu0 %v967
      %v1134 = vpop.f32.mrb[0].mxu0
      %v1135 = vadd.f32 %v1011, %v1134
      %v1136 = vpop.f32.mrb[0].mxu0
      %1137 = vmatprep.mubr.f32.mxu0 0.0
      %1138 = vmatmul.mubr.f32.gmra.mrb[0].mxu0 %v968
      %v1139 = vpop.f32.mrb[0].mxu0
      %v1140 = vadd.f32 %v1011, %v1139
      %v1141 = vpop.f32.mrb[0].mxu0
      %1142 = vmatprep.mubr.f32.mxu0 0.0
      %1143 = vmatmul.mubr.f32.gmra.mrb[0].mxu0 %v969
      %v1144 = vpop.f32.mrb[0].mxu0
      %v1145 = vadd.f32 %v1011, %v1144
      %v1146 = vpop.f32.mrb[0].mxu0
      %1147 = vmatprep.mubr.f32.mxu0 0.0
      %1148 = vmatmul.mubr.f32.gmra.mrb[0].mxu0 %v970
      %v1149 = vpop.f32.mrb[0].mxu0
      %v1150 = vadd.f32 %v1011, %v1149
      %v1151 = vpop.f32.mrb[0].mxu0
      %1152 = vmatprep.mubr.f32.mxu0 0.0
      %1153 = vmatmul.mubr.f32.gmra.mrb[0].mxu0 %v971
      %v1154 = vpop.f32.mrb[0].mxu0
      %v1155 = vadd.f32 %v1011, %v1154
      %v1156 = vpop.f32.mrb[0].mxu0
      %1157 = vmatprep.mubr.f32.mxu0 0.0
      %1158 = vmatmul.mubr.f32.gmra.mrb[0].mxu0 %v972
      %v1159 = vpop.f32.mrb[0].mxu0
      %v1160 = vadd.f32 %v1011, %v1159
      %v1161 = vpop.f32.mrb[0].mxu0
      %1162 = vmatprep.mubr.f32.mxu0 0.0
      %1163 = vmatmul.mubr.f32.gmra.mrb[0].mxu0 %v973
      %v1164 = vpop.f32.mrb[0].mxu0
      %v1165 = vadd.f32 %v1011, %v1164
      %v1166 = vpop.f32.mrb[0].mxu0
      %1167 = vmatprep.mubr.f32.mxu0 0.0
      %1168 = vmatmul.mubr.f32.gmra.mrb[0].mxu0 %v974
      %v1169 = vpop.f32.mrb[0].mxu0
      %v1170 = vadd.f32 %v1011, %v1169
      %v1171 = vpop.f32.mrb[0].mxu0
      %1172 = vmatprep.mubr.f32.mxu0 0.0
      %1173 = vmatmul.mubr.f32.gmra.mrb[0].mxu0 %v975
      %v1174 = vpop.f32.mrb[0].mxu0
      %v1175 = vadd.f32 %v1011, %v1174
      %v1176 = vpop.f32.mrb[0].mxu0
      %1177 = vmatprep.mubr.f32.mxu0 0.0
      %1178 = vmatmul.mubr.f32.gmra.mrb[0].mxu0 %v976
      %v1179 = vpop.f32.mrb[0].mxu0
      %v1180 = vadd.f32 %v1011, %v1179
      %v1181 = vpop.f32.mrb[0].mxu0
      %1182 = vmatprep.mubr.f32.mxu0 0.0
      %1183 = vmatmul.mubr.f32.gmra.mrb[0].mxu0 %v977
      %v1184 = vpop.f32.mrb[0].mxu0
      %v1185 = vadd.f32 %v1011, %v1184
      %v1186 = vpop.f32.mrb[0].mxu0
      %1187 = vmatprep.mubr.f32.mxu0 0.0
      %1188 = vmatmul.mubr.f32.gmra.mrb[0].mxu0 %v978
      %v1189 = vpop.f32.mrb[0].mxu0
      %v1190 = vadd.f32 %v1011, %v1189
      %v1191 = vpop.f32.mrb[0].mxu0
      %1192 = vmatprep.mubr.f32.mxu0 0.0
      %1193 = vmatmul.mubr.f32.gmra.mrb[0].mxu0 %v979
      %v1194 = vpop.f32.mrb[0].mxu0
      %v1195 = vadd.f32 %v1011, %v1194
      %v1196 = vpop.f32.mrb[0].mxu0
      %1197 = vmatprep.mubr.f32.mxu0 0.0
      %1198 = vmatmul.mubr.f32.gmra.mrb[0].mxu0 %v980
      %v1199 = vpop.f32.mrb[0].mxu0
      %v1200 = vadd.f32 %v1011, %v1199
      %v1201 = vpop.f32.mrb[0].mxu0
      %1202 = vmatprep.mubr.f32.mxu0 0.0
      %1203 = vmatmul.mubr.f32.gmra.mrb[0].mxu0 %v981
      %v1204 = vpop.f32.mrb[0].mxu0
      %v1205 = vadd.f32 %v1011, %v1204
      %v1206 = vpop.f32.mrb[0].mxu0
      %1207 = vmatprep.mubr.f32.mxu0 0.0
      %1208 = vmatmul.mubr.f32.gmra.mrb[0].mxu0 %v982
      %v1209 = vpop.f32.mrb[0].mxu0
      %v1210 = vadd.f32 %v1011, %v1209
      %v1211 = vpop.f32.mrb[0].mxu0
      %1212 = vmatprep.mubr.f32.mxu0 0.0
      %1213 = vmatmul.mubr.f32.gmra.mrb[0].mxu0 %v983
      %v1214 = vpop.f32.mrb[0].mxu0
      %v1215 = vadd.f32 %v1011, %v1214
      %v1216 = vpop.f32.mrb[0].mxu0
      %1217 = vmatprep.mubr.f32.mxu0 0.0
      %1218 = vmatmul.mubr.f32.gmra.mrb[0].mxu0 %v984
      %v1219 = vpop.f32.mrb[0].mxu0
      %v1220 = vadd.f32 %v1011, %v1219
      %v1221 = vpop.f32.mrb[0].mxu0
      %1222 = vmatprep.mubr.f32.mxu0 0.0
      %1223 = vmatmul.mubr.f32.gmra.mrb[0].mxu0 %v985
      %v1224 = vpop.f32.mrb[0].mxu0
      %v1225 = vadd.f32 %v1011, %v1224
      %v1226 = vpop.f32.mrb[0].mxu0
      %1227 = vmatprep.mubr.f32.mxu0 0.0
      %1228 = vmatmul.mubr.f32.gmra.mrb[0].mxu0 %v986
      %v1229 = vpop.f32.mrb[0].mxu0
      %v1230 = vadd.f32 %v1011, %v1229
      %v1231 = vpop.f32.mrb[0].mxu0
      %1232 = vmatprep.mubr.f32.mxu0 0.0
      %1233 = vmatmul.mubr.f32.gmra.mrb[0].mxu0 %v987
      %v1234 = vpop.f32.mrb[0].mxu0
      %v1235 = vadd.f32 %v1011, %v1234
      %v1236 = vpop.f32.mrb[0].mxu0
      %1237 = vdwg.mxu0
      %v1238 = vtanh.pop %v1080
      %v1239 = vtanh.pop %v1085
      %v1240 = vtanh.pop %v1090
      %v1241 = vtanh.pop %v1095
      %v1242 = vtanh.pop %v1100
      %v1243 = vtanh.pop %v1105
      %v1244 = vtanh.pop %v1110
      %v1245 = vtanh.pop %v1115
      %v1246 = vtanh.pop %v1120
      %v1247 = vtanh.pop %v1125
      %v1248 = vtanh.pop %v1130
      %v1249 = vtanh.pop %v1135
      %v1250 = vtanh.pop %v1140
      %v1251 = vtanh.pop %v1145
      %v1252 = vtanh.pop %v1150
      %v1253 = vtanh.pop %v1155
      %v1254 = vtanh.pop %v1160
      %v1255 = vtanh.pop %v1165
      %v1256 = vtanh.pop %v1170
      %v1257 = vtanh.pop %v1175
      %v1258 = vtanh.pop %v1180
      %v1259 = vtanh.pop %v1185
      %v1260 = vtanh.pop %v1190
      %v1261 = vtanh.pop %v1195
      %v1262 = vtanh.pop %v1200
      %v1263 = vtanh.pop %v1205
      %v1264 = vtanh.pop %v1210
      %v1265 = vtanh.pop %v1215
      %v1266 = vtanh.pop %v1220
      %v1267 = vtanh.pop %v1225
      %v1268 = vtanh.pop %v1230
      %v1269 = vtanh.pop %v1235
      %v1270 = vtanh.pop %v1238
      %v1271 = vtanh.pop %v1239
      %v1272 = vtanh.pop %v1240
      %v1273 = vtanh.pop %v1241
      %v1274 = vtanh.pop %v1242
      %v1275 = vtanh.pop %v1243
      %v1276 = vtanh.pop %v1244
      %v1277 = vtanh.pop %v1245
      %v1278 = vtanh.pop %v1246
      %v1279 = vtanh.pop %v1247
      %v1280 = vtanh.pop %v1248
      %v1281 = vtanh.pop %v1249
      %v1282 = vtanh.pop %v1250
      %v1283 = vtanh.pop %v1251
      %v1284 = vtanh.pop %v1252
      %v1285 = vtanh.pop %v1253
      %v1286 = vtanh.pop %v1254
      %v1287 = vtanh.pop %v1255
      %v1288 = vtanh.pop %v1256
      %v1289 = vtanh.pop %v1257
      %v1290 = vtanh.pop %v1258
      %v1291 = vtanh.pop %v1259
      %v1292 = vtanh.pop %v1260
      %v1293 = vtanh.pop %v1261
      %v1294 = vtanh.pop %v1262
      %v1295 = vtanh.pop %v1263
      %v1296 = vtanh.pop %v1264
      %v1297 = vtanh.pop %v1265
      %v1298 = vtanh.pop %v1266
      %v1299 = vtanh.pop %v1267
      %v1300 = vtanh.pop %v1268
      %v1301 = vtanh.pop %v1269
      %v1302 = vld [vmem:[%s5] sm:$0xff]
      %v1303 = vld [vmem:[%s5 + $0x8] sm:$0xff]
      %v1304 = vld [vmem:[%s5 + $0x10] sm:$0xff]
      %v1305 = vld [vmem:[%s5 + $0x18] sm:$0xff]
      %v1306 = vld [vmem:[%s5 + $0x20] sm:$0xff]
      %v1307 = vld [vmem:[%s5 + $0x28] sm:$0xff]
      %v1308 = vld [vmem:[%s5 + $0x30] sm:$0xff]
      %v1309 = vld [vmem:[%s5 + $0x38] sm:$0xff]
      %v1310 = vld [vmem:[%s5 + $0x40] sm:$0xff]
      %v1311 = vld [vmem:[%s5 + $0x48] sm:$0xff]
      %v1312 = vld [vmem:[%s5 + $0x50] sm:$0xff]
      %v1313 = vld [vmem:[%s5 + $0x58] sm:$0xff]
      %v1314 = vld [vmem:[%s5 + $0x60] sm:$0xff]
      %v1315 = vld [vmem:[%s5 + $0x68] sm:$0xff]
      %v1316 = vld [vmem:[%s5 + $0x70] sm:$0xff]
      %v1317 = vld [vmem:[%s5 + $0x78] sm:$0xff]
      %v1318 = vld [vmem:[%s6] sm:$0x1]
      %v1320 = vlaneseq
      %v1321 = vshrl.u32 %v1320, 7
      %v1322 = vsub.s32 0, %v1321
      %v1323 = vrot.slane %v1318, %v1322
      %1325 = vmatprep.subr.mxu0 0.0
      %1326 = vmatpush1.msra.mxu0 %v1302
      %1327 = vmatprep.subr.mxu0 0.0
      %1328 = vmatpush1.msra.mxu0 %v1303
      %1329 = vmatprep.subr.mxu0 0.0
      %1330 = vmatpush1.msra.mxu0 %v1304
      %1331 = vmatprep.subr.mxu0 0.0
      %1332 = vmatpush1.msra.mxu0 %v1305
      %1333 = vmatprep.subr.mxu0 0.0
      %1334 = vmatpush1.msra.mxu0 %v1306
      %1335 = vmatprep.subr.mxu0 0.0
      %1336 = vmatpush1.msra.mxu0 %v1307
      %1337 = vmatprep.subr.mxu0 0.0
      %1338 = vmatpush1.msra.mxu0 %v1308
      %1339 = vmatprep.subr.mxu0 0.0
      %1340 = vmatpush1.msra.mxu0 %v1309
      %1341 = vmatprep.subr.mxu0 0.0
      %1342 = vmatpush1.msra.mxu0 %v1310
      %1343 = vmatprep.subr.mxu0 0.0
      %1344 = vmatpush1.msra.mxu0 %v1311
      %1345 = vmatprep.subr.mxu0 0.0
      %1346 = vmatpush1.msra.mxu0 %v1312
      %1347 = vmatprep.subr.mxu0 0.0
      %1348 = vmatpush1.msra.mxu0 %v1313
      %1349 = vmatprep.subr.mxu0 0.0
      %1350 = vmatpush1.msra.mxu0 %v1314
      %1351 = vmatprep.subr.mxu0 0.0
      %1352 = vmatpush1.msra.mxu0 %v1315
      %1353 = vmatprep.subr.mxu0 0.0
      %1354 = vmatpush1.msra.mxu0 %v1316
      %1355 = vmatprep.subr.mxu0 0.0
      %1356 = vmatpush1.msra.mxu0 %v1317
      %1357 = vmatprep.subr.mxu0 0.0
      %1358 = vmatpush1.msra.mxu0 0.0
      %1359 = vmatprep.subr.mxu0 0.0
      %1360 = vmatpush1.msra.mxu0 0.0
      %1361 = vmatprep.subr.mxu0 0.0
      %1362 = vmatpush1.msra.mxu0 0.0
      %1363 = vmatprep.subr.mxu0 0.0
      %1364 = vmatpush1.msra.mxu0 0.0
      %1365 = vmatprep.subr.mxu0 0.0
      %1366 = vmatpush1.msra.mxu0 0.0
      %1367 = vmatprep.subr.mxu0 0.0
      %1368 = vmatpush1.msra.mxu0 0.0
      %1369 = vmatprep.subr.mxu0 0.0
      %1370 = vmatpush1.msra.mxu0 0.0
      %1371 = vmatprep.subr.mxu0 0.0
      %1372 = vmatpush1.msra.mxu0 0.0
      %1373 = vmatprep.subr.mxu0 0.0
      %1374 = vmatpush1.msra.mxu0 0.0
      %1375 = vmatprep.subr.mxu0 0.0
      %1376 = vmatpush1.msra.mxu0 0.0
      %1377 = vmatprep.subr.mxu0 0.0
      %1378 = vmatpush1.msra.mxu0 0.0
      %1379 = vmatprep.subr.mxu0 0.0
      %1380 = vmatpush1.msra.mxu0 0.0
      %1381 = vmatprep.subr.mxu0 0.0
      %1382 = vmatpush1.msra.mxu0 0.0
      %1383 = vmatprep.subr.mxu0 0.0
      %1384 = vmatpush1.msra.mxu0 0.0
      %1385 = vmatprep.subr.mxu0 0.0
      %1386 = vmatpush1.msra.mxu0 0.0
      %1387 = vmatprep.subr.mxu0 0.0
      %1388 = vmatpush1.msra.mxu0 0.0
      %1389 = vmatprep.mubr.f32.mxu0 0.0
      %1390 = vmatmul.mubr.f32.gmra.mrb[0].mxu0 %v1270
      %v1391 = vpop.f32.mrb[0].mxu0
      %v1392 = vadd.f32 %v1323, %v1391
      %v1393 = vpop.f32.mrb[0].mxu0
      %1394 = vmatprep.mubr.f32.mxu0 0.0
      %1395 = vmatmul.mubr.f32.gmra.mrb[0].mxu0 %v1271
      %v1396 = vpop.f32.mrb[0].mxu0
      %v1397 = vadd.f32 %v1323, %v1396
      %v1398 = vpop.f32.mrb[0].mxu0
      %1399 = vmatprep.mubr.f32.mxu0 0.0
      %1400 = vmatmul.mubr.f32.gmra.mrb[0].mxu0 %v1272
      %v1401 = vpop.f32.mrb[0].mxu0
      %v1402 = vadd.f32 %v1323, %v1401
      %v1403 = vpop.f32.mrb[0].mxu0
      %1404 = vmatprep.mubr.f32.mxu0 0.0
      %1405 = vmatmul.mubr.f32.gmra.mrb[0].mxu0 %v1273
      %v1406 = vpop.f32.mrb[0].mxu0
      %v1407 = vadd.f32 %v1323, %v1406
      %v1408 = vpop.f32.mrb[0].mxu0
      %1409 = vmatprep.mubr.f32.mxu0 0.0
      %1410 = vmatmul.mubr.f32.gmra.mrb[0].mxu0 %v1274
      %v1411 = vpop.f32.mrb[0].mxu0
      %v1412 = vadd.f32 %v1323, %v1411
      %v1413 = vpop.f32.mrb[0].mxu0
      %1414 = vmatprep.mubr.f32.mxu0 0.0
      %1415 = vmatmul.mubr.f32.gmra.mrb[0].mxu0 %v1275
      %v1416 = vpop.f32.mrb[0].mxu0
      %v1417 = vadd.f32 %v1323, %v1416
      %v1418 = vpop.f32.mrb[0].mxu0
      %1419 = vmatprep.mubr.f32.mxu0 0.0
      %1420 = vmatmul.mubr.f32.gmra.mrb[0].mxu0 %v1276
      %v1421 = vpop.f32.mrb[0].mxu0
      %v1422 = vadd.f32 %v1323, %v1421
      %v1423 = vpop.f32.mrb[0].mxu0
      %1424 = vmatprep.mubr.f32.mxu0 0.0
      %1425 = vmatmul.mubr.f32.gmra.mrb[0].mxu0 %v1277
      %v1426 = vpop.f32.mrb[0].mxu0
      %v1427 = vadd.f32 %v1323, %v1426
      %v1428 = vpop.f32.mrb[0].mxu0
      %1429 = vmatprep.mubr.f32.mxu0 0.0
      %1430 = vmatmul.mubr.f32.gmra.mrb[0].mxu0 %v1278
      %v1431 = vpop.f32.mrb[0].mxu0
      %v1432 = vadd.f32 %v1323, %v1431
      %v1433 = vpop.f32.mrb[0].mxu0
      %1434 = vmatprep.mubr.f32.mxu0 0.0
      %1435 = vmatmul.mubr.f32.gmra.mrb[0].mxu0 %v1279
      %v1436 = vpop.f32.mrb[0].mxu0
      %v1437 = vadd.f32 %v1323, %v1436
      %v1438 = vpop.f32.mrb[0].mxu0
      %1439 = vmatprep.mubr.f32.mxu0 0.0
      %1440 = vmatmul.mubr.f32.gmra.mrb[0].mxu0 %v1280
      %v1441 = vpop.f32.mrb[0].mxu0
      %v1442 = vadd.f32 %v1323, %v1441
      %v1443 = vpop.f32.mrb[0].mxu0
      %1444 = vmatprep.mubr.f32.mxu0 0.0
      %1445 = vmatmul.mubr.f32.gmra.mrb[0].mxu0 %v1281
      %v1446 = vpop.f32.mrb[0].mxu0
      %v1447 = vadd.f32 %v1323, %v1446
      %v1448 = vpop.f32.mrb[0].mxu0
      %1449 = vmatprep.mubr.f32.mxu0 0.0
      %1450 = vmatmul.mubr.f32.gmra.mrb[0].mxu0 %v1282
      %v1451 = vpop.f32.mrb[0].mxu0
      %v1452 = vadd.f32 %v1323, %v1451
      %v1453 = vpop.f32.mrb[0].mxu0
      %1454 = vmatprep.mubr.f32.mxu0 0.0
      %1455 = vmatmul.mubr.f32.gmra.mrb[0].mxu0 %v1283
      %v1456 = vpop.f32.mrb[0].mxu0
      %v1457 = vadd.f32 %v1323, %v1456
      %v1458 = vpop.f32.mrb[0].mxu0
      %1459 = vmatprep.mubr.f32.mxu0 0.0
      %1460 = vmatmul.mubr.f32.gmra.mrb[0].mxu0 %v1284
      %v1461 = vpop.f32.mrb[0].mxu0
      %v1462 = vadd.f32 %v1323, %v1461
      %v1463 = vpop.f32.mrb[0].mxu0
      %1464 = vmatprep.mubr.f32.mxu0 0.0
      %1465 = vmatmul.mubr.f32.gmra.mrb[0].mxu0 %v1285
      %v1466 = vpop.f32.mrb[0].mxu0
      %v1467 = vadd.f32 %v1323, %v1466
      %v1468 = vpop.f32.mrb[0].mxu0
      %1469 = vmatprep.mubr.f32.mxu0 0.0
      %1470 = vmatmul.mubr.f32.gmra.mrb[0].mxu0 %v1286
      %v1471 = vpop.f32.mrb[0].mxu0
      %v1472 = vadd.f32 %v1323, %v1471
      %v1473 = vpop.f32.mrb[0].mxu0
      %1474 = vmatprep.mubr.f32.mxu0 0.0
      %1475 = vmatmul.mubr.f32.gmra.mrb[0].mxu0 %v1287
      %v1476 = vpop.f32.mrb[0].mxu0
      %v1477 = vadd.f32 %v1323, %v1476
      %v1478 = vpop.f32.mrb[0].mxu0
      %1479 = vmatprep.mubr.f32.mxu0 0.0
      %1480 = vmatmul.mubr.f32.gmra.mrb[0].mxu0 %v1288
      %v1481 = vpop.f32.mrb[0].mxu0
      %v1482 = vadd.f32 %v1323, %v1481
      %v1483 = vpop.f32.mrb[0].mxu0
      %1484 = vmatprep.mubr.f32.mxu0 0.0
      %1485 = vmatmul.mubr.f32.gmra.mrb[0].mxu0 %v1289
      %v1486 = vpop.f32.mrb[0].mxu0
      %v1487 = vadd.f32 %v1323, %v1486
      %v1488 = vpop.f32.mrb[0].mxu0
      %1489 = vmatprep.mubr.f32.mxu0 0.0
      %1490 = vmatmul.mubr.f32.gmra.mrb[0].mxu0 %v1290
      %v1491 = vpop.f32.mrb[0].mxu0
      %v1492 = vadd.f32 %v1323, %v1491
      %v1493 = vpop.f32.mrb[0].mxu0
      %1494 = vmatprep.mubr.f32.mxu0 0.0
      %1495 = vmatmul.mubr.f32.gmra.mrb[0].mxu0 %v1291
      %v1496 = vpop.f32.mrb[0].mxu0
      %v1497 = vadd.f32 %v1323, %v1496
      %v1498 = vpop.f32.mrb[0].mxu0
      %1499 = vmatprep.mubr.f32.mxu0 0.0
      %1500 = vmatmul.mubr.f32.gmra.mrb[0].mxu0 %v1292
      %v1501 = vpop.f32.mrb[0].mxu0
      %v1502 = vadd.f32 %v1323, %v1501
      %v1503 = vpop.f32.mrb[0].mxu0
      %1504 = vmatprep.mubr.f32.mxu0 0.0
      %1505 = vmatmul.mubr.f32.gmra.mrb[0].mxu0 %v1293
      %v1506 = vpop.f32.mrb[0].mxu0
      %v1507 = vadd.f32 %v1323, %v1506
      %v1508 = vpop.f32.mrb[0].mxu0
      %1509 = vmatprep.mubr.f32.mxu0 0.0
      %1510 = vmatmul.mubr.f32.gmra.mrb[0].mxu0 %v1294
      %v1511 = vpop.f32.mrb[0].mxu0
      %v1512 = vadd.f32 %v1323, %v1511
      %v1513 = vpop.f32.mrb[0].mxu0
      %1514 = vmatprep.mubr.f32.mxu0 0.0
      %1515 = vmatmul.mubr.f32.gmra.mrb[0].mxu0 %v1295
      %v1516 = vpop.f32.mrb[0].mxu0
      %v1517 = vadd.f32 %v1323, %v1516
      %v1518 = vpop.f32.mrb[0].mxu0
      %1519 = vmatprep.mubr.f32.mxu0 0.0
      %1520 = vmatmul.mubr.f32.gmra.mrb[0].mxu0 %v1296
      %v1521 = vpop.f32.mrb[0].mxu0
      %v1522 = vadd.f32 %v1323, %v1521
      %v1523 = vpop.f32.mrb[0].mxu0
      %1524 = vmatprep.mubr.f32.mxu0 0.0
      %1525 = vmatmul.mubr.f32.gmra.mrb[0].mxu0 %v1297
      %v1526 = vpop.f32.mrb[0].mxu0
      %v1527 = vadd.f32 %v1323, %v1526
      %v1528 = vpop.f32.mrb[0].mxu0
      %1529 = vmatprep.mubr.f32.mxu0 0.0
      %1530 = vmatmul.mubr.f32.gmra.mrb[0].mxu0 %v1298
      %v1531 = vpop.f32.mrb[0].mxu0
      %v1532 = vadd.f32 %v1323, %v1531
      %v1533 = vpop.f32.mrb[0].mxu0
      %1534 = vmatprep.mubr.f32.mxu0 0.0
      %1535 = vmatmul.mubr.f32.gmra.mrb[0].mxu0 %v1299
      %v1536 = vpop.f32.mrb[0].mxu0
      %v1537 = vadd.f32 %v1323, %v1536
      %v1538 = vpop.f32.mrb[0].mxu0
      %1539 = vmatprep.mubr.f32.mxu0 0.0
      %1540 = vmatmul.mubr.f32.gmra.mrb[0].mxu0 %v1300
      %v1541 = vpop.f32.mrb[0].mxu0
      %v1542 = vadd.f32 %v1323, %v1541
      %v1543 = vpop.f32.mrb[0].mxu0
      %1544 = vmatprep.mubr.f32.mxu0 0.0
      %1545 = vmatmul.mubr.f32.gmra.mrb[0].mxu0 %v1301
      %v1546 = vpop.f32.mrb[0].mxu0
      %v1547 = vadd.f32 %v1323, %v1546
      %v1548 = vpop.f32.mrb[0].mxu0
      %1549 = vdwg.mxu0
      %vm1550 = vcmask 31744
      %1551 = vst.msk [vmem:[%s280] sm:$0xff] %vm1550, %v1392
      %1552 = vst.msk [vmem:[%s280 + $0x8] sm:$0xff] %vm1550, %v1397
      %1553 = vst.msk [vmem:[%s280 + $0x10] sm:$0xff] %vm1550, %v1402
      %1554 = vst.msk [vmem:[%s280 + $0x18] sm:$0xff] %vm1550, %v1407
      %1555 = vst.msk [vmem:[%s280 + $0x20] sm:$0xff] %vm1550, %v1412
      %1556 = vst.msk [vmem:[%s280 + $0x28] sm:$0xff] %vm1550, %v1417
      %1557 = vst.msk [vmem:[%s280 + $0x30] sm:$0xff] %vm1550, %v1422
      %1558 = vst.msk [vmem:[%s280 + $0x38] sm:$0xff] %vm1550, %v1427
      %1559 = vst.msk [vmem:[%s280 + $0x40] sm:$0xff] %vm1550, %v1432
      %1560 = vst.msk [vmem:[%s280 + $0x48] sm:$0xff] %vm1550, %v1437
      %1561 = vst.msk [vmem:[%s280 + $0x50] sm:$0xff] %vm1550, %v1442
      %1562 = vst.msk [vmem:[%s280 + $0x58] sm:$0xff] %vm1550, %v1447
      %1563 = vst.msk [vmem:[%s280 + $0x60] sm:$0xff] %vm1550, %v1452
      %1564 = vst.msk [vmem:[%s280 + $0x68] sm:$0xff] %vm1550, %v1457
      %1565 = vst.msk [vmem:[%s280 + $0x70] sm:$0xff] %vm1550, %v1462
      %1566 = vst.msk [vmem:[%s280 + $0x78] sm:$0xff] %vm1550, %v1467
      %1567 = vst.msk [vmem:[%s280 + $0x80] sm:$0xff] %vm1550, %v1472
      %1568 = vst.msk [vmem:[%s280 + $0x88] sm:$0xff] %vm1550, %v1477
      %1569 = vst.msk [vmem:[%s280 + $0x90] sm:$0xff] %vm1550, %v1482
      %1570 = vst.msk [vmem:[%s280 + $0x98] sm:$0xff] %vm1550, %v1487
      %1571 = vst.msk [vmem:[%s280 + $0xa0] sm:$0xff] %vm1550, %v1492
      %1572 = vst.msk [vmem:[%s280 + $0xa8] sm:$0xff] %vm1550, %v1497
      %1573 = vst.msk [vmem:[%s280 + $0xb0] sm:$0xff] %vm1550, %v1502
      %1574 = vst.msk [vmem:[%s280 + $0xb8] sm:$0xff] %vm1550, %v1507
      %1575 = vst.msk [vmem:[%s280 + $0xc0] sm:$0xff] %vm1550, %v1512
      %1576 = vst.msk [vmem:[%s280 + $0xc8] sm:$0xff] %vm1550, %v1517
      %1577 = vst.msk [vmem:[%s280 + $0xd0] sm:$0xff] %vm1550, %v1522
      %1578 = vst.msk [vmem:[%s280 + $0xd8] sm:$0xff] %vm1550, %v1527
      %1579 = vst.msk [vmem:[%s280 + $0xe0] sm:$0xff] %vm1550, %v1532
      %1580 = vst.msk [vmem:[%s280 + $0xe8] sm:$0xff] %vm1550, %v1537
      %1581 = vst.msk [vmem:[%s280 + $0xf0] sm:$0xff] %vm1550, %v1542
      %1582 = vst.msk [vmem:[%s280 + $0xf8] sm:$0xff] %vm1550, %v1547
      %s1583 = smul.u32 32, %s18
      %p1584 = scmp.lt.s32.totalorder %s1583, 63
      %s1585 = scalar_select %p1584, %s1583, 63
      %s1586 = smul.addr %s1585, 8
      %s1587 = scalar_lea.vmem %s7, %s1586
      // Predicated region
      $region49: #{tpu_custom_call.1} parent=47 // pred_check
        %p1588 = pneg %p188
      $region50: #{tpu_custom_call.1} parent=47 // pred_check_branch
        %1590 = sbr.rel (%p1588) target = $region52
      $region51: #{tpu_custom_call.1} parent=47 // pred_region
        %s1591 = smul.u32 32, %s18
      $region52: #{tpu_custom_call.1} parent=47 // pred_fallthru
        _
    $region48: #{tpu_custom_call.1} parent=5 // pred_fallthru
      _
    %p1592 = scmp.le.s32.totalorder 2, %s13
    // Predicated region
    $region53: #{tpu_custom_call.1} parent=5 // pred_check
      %p1593 = pneg %p1592
    $region54: #{tpu_custom_call.1} parent=5 // pred_check_branch
      %1595 = sbr.rel (%p1593) target = $region56
    $region55: #{tpu_custom_call.1} parent=5 // pred_region
      %s1596 = ssub.s32 %s13, 2
      // Predicated region
      $region57: #{tpu_custom_call.1} parent=55 // pred_check
        %p1597 = pneg %p194
      $region58: #{tpu_custom_call.1} parent=55 // pred_check_branch
        %1599 = sbr.rel (%p1597) target = $region60
      $region59: #{tpu_custom_call.1} parent=55 // pred_region
        %s1600 = smul.u32 32, %s19
        %p1601 = scmp.lt.s32.totalorder %s1600, 63
        %s1602 = scalar_select %p1601, %s1600, 63
        %s1603 = smul.addr %s1602, 8
        %s1604 = scalar_lea.vmem %s7, %s1603
      $region60: #{tpu_custom_call.1} parent=55 // pred_fallthru
        _
    $region56: #{tpu_custom_call.1} parent=5 // pred_fallthru
      _
  $region6: #{tpu_custom_call.1} parent=0 // loop_footer
    %s17 = sadd.s32 1, %s13
  $region7: #{tpu_custom_call.1} parent=0 // loop_footer_branch
    %12 = sbr.rel target = $region3
  $region8: #{tpu_custom_call.1} parent=0 // loop_exit
    _

</llo_original>
